<compile_context>
chip_gen: v7x
topology: tpu7x:2x2x1
jax: 0.10.0
libtpu: 0.0.40
codegen_flags: <defaults>
</compile_context>

<pallas_src>
import functools

import jax
import jax.numpy as jnp
from jax.experimental import pallas as pl
from jax.experimental.pallas import tpu as pltpu


# --------------------------------------------------------------------------
# Fused Pallas kernel
# --------------------------------------------------------------------------
def climate_encoder_kernel(x_ref,      # (T, I_pad, Bb) f32, feature-major climate (+ constant-1 row)
                           aux_ref,    # (Bb, AUXW)     f32, [feat|r|c|t|p|v|1|pad]
                           wbig_ref,   # (12H, 2H+I_pad) f32 stacked wavefront GRU weight (biases folded)
                           we_ref,     # (AUXW, 128)    f32 fused epilogue weight (biases folded)
                           out_ref,    # (Bb, 128)      f32
                           *, H, HF):
    f32 = jnp.float32
    T = x_ref.shape[0]
    Bb = x_ref.shape[2]

    wbig = wbig_ref[...]                        # hoisted single VMEM read

    h1 = jnp.zeros((H, Bb), f32)                # layer-0 hidden, feature-major
    h2 = jnp.zeros((H, Bb), f32)                # layer-1 hidden, feature-major

    def gru_gates(gi, gh, h):
        # All biases are already folded into wbig via the constant-1 input row:
        #   gi rows carry (b_ih_r+b_hh_r, b_ih_z+b_hh_z, b_ih_n); gh n-rows carry b_hh_n.
        r = jax.nn.sigmoid(gi[0:H] + gh[0:H])
        z = jax.nn.sigmoid(gi[H:2 * H] + gh[H:2 * H])
        n = jnp.tanh(gi[2 * H:3 * H] + r * gh[2 * H:3 * H])
        return (1.0 - z) * n + z * h

    # Wavefront recurrence: step s = layer-0 timestep s + layer-1 timestep s-1,
    # both derived from ONE matmul on the stacked state [h1; h2; x_s; 1].
    # TODO(synk): for long T, replace the static unroll with a time-chunked
    # pipeline (x in HBM via memory_space=pl.ANY + make_async_copy).
    for s in range(T + 1):
        xs = x_ref[min(s, T - 1)]                                # (I_pad, Bb)
        state = jnp.concatenate([h1, h2, xs], axis=0)            # (2H+I_pad, Bb)
        g = jnp.dot(wbig, state, preferred_element_type=f32)     # (12H, Bb)
        gh0, gi0 = g[0:3 * H], g[3 * H:6 * H]
        gh1, gi1 = g[6 * H:9 * H], g[9 * H:12 * H]
        h1_new = gru_gates(gi0, gh0, h1)   # layer-0: input x_s,        hidden h1^(s-1)
        h2_new = gru_gates(gi1, gh1, h2)   # layer-1: input h1^(s-1),   hidden h2^(s-2)
        if s < T:                          # layer-0 only has T real timesteps
            h1 = h1_new
        if s > 0:                          # layer-1 lags one step; stays 0 at s=0
            h2 = h2_new
    # h2 == layer-1 hidden after the last timestep == GRU output[:, -1, :]

    climate_bm = jnp.transpose(h2)                               # (Bb, H) batch-major

    # Fused epilogue: feature encoder + full embedding hierarchy in one matmul,
    # columns already placed at their final output offsets (cols HF:HF+H left zero).
    epi = jnp.dot(aux_ref[...], we_ref[...], preferred_element_type=f32)   # (Bb, 128)
    h_feat = jnp.maximum(epi[:, 0:HF], 0.0)

    # Single unmasked full-width store (pad lanes 124:128 are zero via we).
    out_ref[...] = jnp.concatenate([h_feat, climate_bm, epi[:, HF + H:]], axis=1)


# --------------------------------------------------------------------------
# Parameter construction (deterministic, weight-norm reparametrized)
# --------------------------------------------------------------------------
def _weight_norm(v, g):
    # PyTorch weight_norm default dim=0: w[i,:] = g[i] * v[i,:] / ||v[i,:]||
    return g[:, None] * v / jnp.linalg.norm(v, axis=1, keepdims=True)


def make_params(key,
                input_dim=5, embedding_dim=12, hidden_dim=32,
                n_ranches=13, n_parcels=44, n_classes=2, n_types=14,
                n_varieties=59, climate_input_dim=9, climate_hidden_dim=32):
    ks = iter(jax.random.split(key, 32))
    u = lambda shape, s=0.1: jax.random.uniform(next(ks), shape, jnp.float32, -s, s)

    p = {}
    # feature encoder (weight-normed Linear(5,32))
    p["wf"] = _weight_norm(u((hidden_dim, input_dim)), u((hidden_dim,)) + 1.0)
    p["bf"] = u((hidden_dim,))

    # 2-layer GRU (input 9 -> 32, then 32 -> 32), PyTorch gate order [r, z, n]
    H = climate_hidden_dim
    p["wih0"] = u((3 * H, climate_input_dim))
    p["whh0"] = u((3 * H, H))
    p["bih0"] = u((3 * H,))
    p["bhh0"] = u((3 * H,))
    p["wih1"] = u((3 * H, H))
    p["whh1"] = u((3 * H, H))
    p["bih1"] = u((3 * H,))
    p["bhh1"] = u((3 * H,))

    # embedding tables
    p["ranch_emb"] = u((n_ranches, embedding_dim), 1.0)
    p["parcel_emb"] = u((n_parcels, embedding_dim), 1.0)
    p["class_emb"] = u((n_classes, embedding_dim), 1.0)
    p["type_emb"] = u((n_types, embedding_dim), 1.0)
    p["variety_emb"] = u((n_varieties, embedding_dim), 1.0)

    # weight-normed hierarchy linears (12 -> 12)
    p["wpr"] = _weight_norm(u((embedding_dim, embedding_dim)), u((embedding_dim,)) + 1.0)
    p["bpr"] = u((embedding_dim,))
    p["wtc"] = _weight_norm(u((embedding_dim, embedding_dim)), u((embedding_dim,)) + 1.0)
    p["btc"] = u((embedding_dim,))
    p["wvt"] = _weight_norm(u((embedding_dim, embedding_dim)), u((embedding_dim,)) + 1.0)
    p["bvt"] = u((embedding_dim,))
    return p


# --------------------------------------------------------------------------
# Wrapper: glue + single pallas_call
# --------------------------------------------------------------------------
def _round_up(x, m):
    return (x + m - 1) // m * m


def climate_encoder_forward(params, features, encoded_features, climate_data):
    f32 = jnp.float32
    B = features.shape[0]
    _, T, I = climate_data.shape
    F_in = features.shape[1]
    H = params["whh0"].shape[1]             # climate_hidden_dim (32)
    HF = params["wf"].shape[0]              # hidden_dim (32)
    E = params["ranch_emb"].shape[1]        # embedding_dim (12)
    I_pad = _round_up(I + 1, 8)             # real features + zero pad + constant-1 row
    KIN = 2 * H + I_pad                     # stacked-state width (80)
    OUTW = 128                              # lane-dense output slab
    out_dim = HF + H + 5 * E                # 124

    # ---- batch tiling: lane-aligned blocks (batch -> lanes in the GRU) ----
    B_blk = 128 if B <= 256 else 256
    B_pad = _round_up(max(B, B_blk), B_blk)
    padb = B_pad - B

    feat = jnp.pad(features.astype(f32), ((0, padb), (0, 0)))
    clim = jnp.pad(climate_data.astype(f32), ((0, padb), (0, 0), (0, 0)))
    ids = jnp.pad(encoded_features.astype(jnp.int32), ((0, padb), (0, 0)))

    # ---- embedding gathers (plain JAX glue) ----
    r_emb = jnp.take(params["ranch_emb"], ids[:, 0], axis=0)
    p_emb = jnp.take(params["parcel_emb"], ids[:, 1], axis=0)
    c_emb = jnp.take(params["class_emb"], ids[:, 2], axis=0)
    t_emb = jnp.take(params["type_emb"], ids[:, 3], axis=0)
    v_emb = jnp.take(params["variety_emb"], ids[:, 4], axis=0)

    # ---- merged per-batch operand: [feat|r|c|t|p|v|1|pad] -> (B_pad, AUXW) ----
    FW = _round_up(F_in, 8)
    rF, rR, rC, rT, rP, rV = 0, FW, FW + E, FW + 2 * E, FW + 3 * E, FW + 4 * E
    rOne = FW + 5 * E
    AUXW = _round_up(rOne + 1, 8)
    aux = jnp.concatenate(
        [jnp.pad(feat, ((0, 0), (0, FW - F_in))),
         r_emb, c_emb, t_emb, p_emb, v_emb,
         jnp.ones((B_pad, 1), f32),
         jnp.zeros((B_pad, AUXW - rOne - 1), f32)], axis=1)

    # ---- climate in time/feature-major layout: (T, I_pad, B_pad), last row = 1 ----
    x_tib = jnp.transpose(clim, (1, 2, 0))                                  # (T, I, B_pad)
    x_fm = jnp.concatenate(
        [x_tib,
         jnp.zeros((T, I_pad - I - 1, B_pad), f32),
         jnp.ones((T, 1, B_pad), f32)], axis=1)                             # (T, I_pad, B_pad)

    # ---- stacked wavefront GRU weight: rows [gh0|gi0|gh1|gi1], cols [h1|h2|x|1] ----
    def fold(bih, bhh):
        # fold b_ih + b_hh for r/z gates into the gi rows; n gate keeps b_hn on gh rows
        bi = bih + jnp.concatenate([bhh[:2 * H], jnp.zeros((H,), f32)])
        return bi, bhh[2 * H:]

    bi0, bh0n = fold(params["bih0"], params["bhh0"])
    bi1, bh1n = fold(params["bih1"], params["bhh1"])

    wbig = jnp.zeros((12 * H, KIN), f32)
    wbig = wbig.at[0:3 * H, 0:H].set(params["whh0"])               # gh0 <- h1
    wbig = wbig.at[2 * H:3 * H, KIN - 1].set(bh0n)
    wbig = wbig.at[3 * H:6 * H, 2 * H:2 * H + I].set(params["wih0"])  # gi0 <- x
    wbig = wbig.at[3 * H:6 * H, KIN - 1].set(bi0)
    wbig = wbig.at[6 * H:9 * H, H:2 * H].set(params["whh1"])       # gh1 <- h2
    wbig = wbig.at[8 * H:9 * H, KIN - 1].set(bh1n)
    wbig = wbig.at[9 * H:12 * H, 0:H].set(params["wih1"])          # gi1 <- h1 (prev step layer-0 out)
    wbig = wbig.at[9 * H:12 * H, KIN - 1].set(bi1)

    # ---- fused epilogue weight: feature encoder + whole embedding hierarchy ----
    # output columns: [h_feat 0:HF | climate HF:HF+H (zero) | r | p | c | t | v | pad]
    cR = HF + H
    cP, cC, cT, cV = cR + E, cR + 2 * E, cR + 3 * E, cR + 4 * E
    eye = jnp.eye(E, dtype=f32)
    wpr_t, wvt_t, wtc_t = params["wpr"].T, params["wvt"].T, params["wtc"].T

    we = jnp.zeros((AUXW, OUTW), f32)
    # h_feat = relu(feat @ wf.T + bf)
    we = we.at[rF:rF + F_in, 0:HF].set(params["wf"].T)
    we = we.at[rOne, 0:HF].set(params["bf"])
    # r_new = r + p @ wpr.T + bpr
    we = we.at[rR:rR + E, cR:cR + E].set(eye)
    we = we.at[rP:rP + E, cR:cR + E].set(wpr_t)
    we = we.at[rOne, cR:cR + E].set(params["bpr"])
    # p passthrough
    we = we.at[rP:rP + E, cP:cP + E].set(eye)
    # c_new = c + t @ wtc.T + v @ (wvt.T @ wtc.T) + (bvt @ wtc.T + btc)
    we = we.at[rC:rC + E, cC:cC + E].set(eye)
    we = we.at[rT:rT + E, cC:cC + E].set(wtc_t)
    we = we.at[rV:rV + E, cC:cC + E].set(wvt_t @ wtc_t)
    we = we.at[rOne, cC:cC + E].set(params["bvt"] @ wtc_t + params["btc"])
    # t_new = t + v @ wvt.T + bvt
    we = we.at[rT:rT + E, cT:cT + E].set(eye)
    we = we.at[rV:rV + E, cT:cT + E].set(wvt_t)
    we = we.at[rOne, cT:cT + E].set(params["bvt"])
    # v passthrough
    we = we.at[rV:rV + E, cV:cV + E].set(eye)

    # TODO(synk): nn.GRU inter-layer dropout (p=0.2) only applies in train mode; eval semantics used.
    kernel = functools.partial(climate_encoder_kernel, H=H, HF=HF)
    out = pl.pallas_call(
        kernel,
        out_shape=jax.ShapeDtypeStruct((B_pad, OUTW), f32),
        grid=(B_pad // B_blk,),
        in_specs=[
            pl.BlockSpec((T, I_pad, B_blk), lambda b: (0, 0, b)),
            pl.BlockSpec((B_blk, AUXW), lambda b: (b, 0)),
            pl.BlockSpec((12 * H, KIN), lambda b: (0, 0)),
            pl.BlockSpec((AUXW, OUTW), lambda b: (0, 0)),
        ],
        out_specs=pl.BlockSpec((B_blk, OUTW), lambda b: (b, 0)),
        compiler_params=pltpu.CompilerParams(
            dimension_semantics=("parallel",),
            vmem_limit_bytes=32 * 1024 * 1024),
    )(x_fm, aux, wbig, we)

    return out[:B, :out_dim]


# --------------------------------------------------------------------------
# Pure-JAX f32 reference (correctness sanity check)
# --------------------------------------------------------------------------
def reference_forward(params, features, encoded_features, climate_data):
    H = params["whh0"].shape[1]
    B, T, _ = climate_data.shape

    def cell(x_t, h, wih, whh, bih, bhh):
        gi = x_t @ wih.T + bih
        gh = h @ whh.T + bhh
        r = jax.nn.sigmoid(gi[:, :H] + gh[:, :H])
        z = jax.nn.sigmoid(gi[:, H:2 * H] + gh[:, H:2 * H])
        n = jnp.tanh(gi[:, 2 * H:] + r * gh[:, 2 * H:])
        return (1.0 - z) * n + z * h

    h1 = jnp.zeros((B, H), jnp.float32)
    h2 = jnp.zeros((B, H), jnp.float32)
    for t in range(T):
        x_t = climate_data[:, t, :]
        h1 = cell(x_t, h1, params["wih0"], params["whh0"], params["bih0"], params["bhh0"])
        h2 = cell(h1, h2, params["wih1"], params["whh1"], params["bih1"], params["bhh1"])
    climate_out = h2

    h_feat = jnp.maximum(features @ params["wf"].T + params["bf"], 0.0)
    ranch_id, parcel_id, class_id, type_id, variety_id = [
        encoded_features[:, i] for i in range(5)]
    r_emb = params["ranch_emb"][ranch_id]
    p_emb = params["parcel_emb"][parcel_id]
    c_emb = params["class_emb"][class_id]
    t_emb = params["type_emb"][type_id]
    v_emb = params["variety_emb"][variety_id]
    r_emb = r_emb + (p_emb @ params["wpr"].T + params["bpr"])
    t_emb = t_emb + (v_emb @ params["wvt"].T + params["bvt"])
    c_emb = c_emb + (t_emb @ params["wtc"].T + params["btc"])
    return jnp.concatenate([h_feat, climate_out, r_emb, p_emb, c_emb, t_emb, v_emb], axis=-1)


# --------------------------------------------------------------------------
if __name__ == "__main__":
    key = jax.random.PRNGKey(0)
    k_param, k_feat, k_clim, k_ids = jax.random.split(key, 4)

    B, T = 4, 8
    params = make_params(k_param)

    features = jax.random.normal(k_feat, (B, 5), jnp.float32)
    climate_data = jax.random.normal(k_clim, (B, T, 9), jnp.float32)
    ki = jax.random.split(k_ids, 5)
    encoded_features = jnp.stack([
        jax.random.randint(ki[0], (B,), 0, 13),
        jax.random.randint(ki[1], (B,), 0, 44),
        jax.random.randint(ki[2], (B,), 0, 2),
        jax.random.randint(ki[3], (B,), 0, 14),
        jax.random.randint(ki[4], (B,), 0, 59),
    ], axis=1).astype(jnp.int32)

    out = climate_encoder_forward(params, features, encoded_features, climate_data)
    out = jax.block_until_ready(out)

    ref = reference_forward(params, features, encoded_features, climate_data)
    assert out.shape == (B, 124), out.shape
    # pure-f32 kernel: tight parity with the pure-JAX reference
    assert jnp.allclose(out, ref, atol=5e-4, rtol=5e-4), "mismatch vs pure-JAX reference"

    print("KERNEL_OK")
</pallas_src>

<mosaic_0001>
module attributes {stable_mosaic.version = 11 : i64} {
  func.func @climate_encoder_kernel(%arg0: i32, %arg1: memref<8x16x128xf32, #tpu.memory_space<vmem>>, %arg2: memref<128x72xf32, #tpu.memory_space<vmem>>, %arg3: memref<384x80xf32, #tpu.memory_space<vmem>>, %arg4: memref<72x128xf32, #tpu.memory_space<vmem>>, %arg5: memref<128x128xf32, #tpu.memory_space<vmem>>) attributes {dimension_semantics = [#tpu.dimension_semantics<parallel>], iteration_bounds = array<i64: 1>, scalar_prefetch = 0 : i64, scratch_operands = 0 : i64, tpu.core_type = #tpu.core_type<tc>, window_params = [{transform_indices = @transform_0, window_bounds = array<i64: 8, 16, 128>}, {transform_indices = @transform_1, window_bounds = array<i64: 128, 72>}, {pipeline_mode = #tpu.pipeline_mode<synchronous>, transform_indices = @transform_2, window_bounds = array<i64: 384, 80>}, {pipeline_mode = #tpu.pipeline_mode<synchronous>, transform_indices = @transform_3, window_bounds = array<i64: 72, 128>}, {transform_indices = @transform_4, window_bounds = array<i64: 128, 128>}]} {
    %c0 = arith.constant 0 : index
    %c0_0 = arith.constant 0 : index
    %0 = vector.load %arg3[%c0, %c0_0] : memref<384x80xf32, #tpu.memory_space<vmem>>, vector<384x80xf32>
    %cst = arith.constant 0.000000e+00 : f32
    %1 = vector.broadcast %cst : f32 to vector<32x128xf32>
    %cst_1 = arith.constant 0.000000e+00 : f32
    %2 = vector.broadcast %cst_1 : f32 to vector<32x128xf32>
    %c0_2 = arith.constant 0 : index
    %c0_3 = arith.constant 0 : index
    %c0_4 = arith.constant 0 : index
    %3 = vector.load %arg1[%c0_2, %c0_3, %c0_4] : memref<8x16x128xf32, #tpu.memory_space<vmem>>, vector<1x16x128xf32>
    %4 = vector.shape_cast %3 : vector<1x16x128xf32> to vector<16x128xf32>
    %5 = tpu.concatenate %1, %2, %4 in 0 : vector<32x128xf32>, vector<32x128xf32>, vector<16x128xf32> -> vector<80x128xf32>
    %cst_5 = arith.constant dense<0.000000e+00> : vector<384x128xf32>
    %6 = tpu.matmul %0, %5, %cst_5 {dimension_numbers = #tpu.dot_dimension_numbers<[1], [0], [0], [1], [0, 0, 1, 1], [], []>} : vector<384x80xf32>, vector<80x128xf32>, vector<384x128xf32> -> vector<384x128xf32>
    %7 = vector.extract_strided_slice %6 {offsets = [0, 0], sizes = [96, 128], strides = [1, 1]} : vector<384x128xf32> to vector<96x128xf32>
    %8 = vector.extract_strided_slice %6 {offsets = [96, 0], sizes = [96, 128], strides = [1, 1]} : vector<384x128xf32> to vector<96x128xf32>
    %9 = vector.extract_strided_slice %8 {offsets = [0, 0], sizes = [32, 128], strides = [1, 1]} : vector<96x128xf32> to vector<32x128xf32>
    %10 = vector.extract_strided_slice %7 {offsets = [0, 0], sizes = [32, 128], strides = [1, 1]} : vector<96x128xf32> to vector<32x128xf32>
    %11 = arith.addf %9, %10 : vector<32x128xf32>
    %12 = arith.negf %11 : vector<32x128xf32>
    %13 = math.exp %12 : vector<32x128xf32>
    %cst_6 = arith.constant 1.000000e+00 : f32
    %14 = vector.broadcast %cst_6 : f32 to vector<32x128xf32>
    %15 = arith.addf %14, %13 : vector<32x128xf32>
    %16 = arith.divf %14, %15 : vector<32x128xf32>
    %17 = vector.extract_strided_slice %8 {offsets = [32, 0], sizes = [32, 128], strides = [1, 1]} : vector<96x128xf32> to vector<32x128xf32>
    %18 = vector.extract_strided_slice %7 {offsets = [32, 0], sizes = [32, 128], strides = [1, 1]} : vector<96x128xf32> to vector<32x128xf32>
    %19 = arith.addf %17, %18 : vector<32x128xf32>
    %20 = arith.negf %19 : vector<32x128xf32>
    %21 = math.exp %20 : vector<32x128xf32>
    %cst_7 = arith.constant 1.000000e+00 : f32
    %22 = vector.broadcast %cst_7 : f32 to vector<32x128xf32>
    %23 = arith.addf %22, %21 : vector<32x128xf32>
    %24 = arith.divf %22, %23 : vector<32x128xf32>
    %25 = vector.extract_strided_slice %8 {offsets = [64, 0], sizes = [32, 128], strides = [1, 1]} : vector<96x128xf32> to vector<32x128xf32>
    %26 = vector.extract_strided_slice %7 {offsets = [64, 0], sizes = [32, 128], strides = [1, 1]} : vector<96x128xf32> to vector<32x128xf32>
    %27 = arith.mulf %16, %26 : vector<32x128xf32>
    %28 = arith.addf %25, %27 : vector<32x128xf32>
    %29 = math.tanh %28 : vector<32x128xf32>
    %cst_8 = arith.constant 1.000000e+00 : f32
    %30 = vector.broadcast %cst_8 : f32 to vector<32x128xf32>
    %31 = arith.subf %30, %24 : vector<32x128xf32>
    %32 = arith.mulf %31, %29 : vector<32x128xf32>
    %33 = arith.mulf %24, %1 : vector<32x128xf32>
    %34 = arith.addf %32, %33 : vector<32x128xf32>
    %c1 = arith.constant 1 : index
    %c0_9 = arith.constant 0 : index
    %c0_10 = arith.constant 0 : index
    %35 = vector.load %arg1[%c1, %c0_9, %c0_10] : memref<8x16x128xf32, #tpu.memory_space<vmem>>, vector<1x16x128xf32>
    %36 = vector.shape_cast %35 : vector<1x16x128xf32> to vector<16x128xf32>
    %37 = tpu.concatenate %34, %2, %36 in 0 : vector<32x128xf32>, vector<32x128xf32>, vector<16x128xf32> -> vector<80x128xf32>
    %cst_11 = arith.constant dense<0.000000e+00> : vector<384x128xf32>
    %38 = tpu.matmul %0, %37, %cst_11 {dimension_numbers = #tpu.dot_dimension_numbers<[1], [0], [0], [1], [0, 0, 1, 1], [], []>} : vector<384x80xf32>, vector<80x128xf32>, vector<384x128xf32> -> vector<384x128xf32>
    %39 = vector.extract_strided_slice %38 {offsets = [0, 0], sizes = [96, 128], strides = [1, 1]} : vector<384x128xf32> to vector<96x128xf32>
    %40 = vector.extract_strided_slice %38 {offsets = [96, 0], sizes = [96, 128], strides = [1, 1]} : vector<384x128xf32> to vector<96x128xf32>
    %41 = vector.extract_strided_slice %38 {offsets = [192, 0], sizes = [96, 128], strides = [1, 1]} : vector<384x128xf32> to vector<96x128xf32>
    %42 = vector.extract_strided_slice %38 {offsets = [288, 0], sizes = [96, 128], strides = [1, 1]} : vector<384x128xf32> to vector<96x128xf32>
    %43 = vector.extract_strided_slice %40 {offsets = [0, 0], sizes = [32, 128], strides = [1, 1]} : vector<96x128xf32> to vector<32x128xf32>
    %44 = vector.extract_strided_slice %39 {offsets = [0, 0], sizes = [32, 128], strides = [1, 1]} : vector<96x128xf32> to vector<32x128xf32>
    %45 = arith.addf %43, %44 : vector<32x128xf32>
    %46 = arith.negf %45 : vector<32x128xf32>
    %47 = math.exp %46 : vector<32x128xf32>
    %cst_12 = arith.constant 1.000000e+00 : f32
    %48 = vector.broadcast %cst_12 : f32 to vector<32x128xf32>
    %49 = arith.addf %48, %47 : vector<32x128xf32>
    %50 = arith.divf %48, %49 : vector<32x128xf32>
    %51 = vector.extract_strided_slice %40 {offsets = [32, 0], sizes = [32, 128], strides = [1, 1]} : vector<96x128xf32> to vector<32x128xf32>
    %52 = vector.extract_strided_slice %39 {offsets = [32, 0], sizes = [32, 128], strides = [1, 1]} : vector<96x128xf32> to vector<32x128xf32>
    %53 = arith.addf %51, %52 : vector<32x128xf32>
    %54 = arith.negf %53 : vector<32x128xf32>
    %55 = math.exp %54 : vector<32x128xf32>
    %cst_13 = arith.constant 1.000000e+00 : f32
    %56 = vector.broadcast %cst_13 : f32 to vector<32x128xf32>
    %57 = arith.addf %56, %55 : vector<32x128xf32>
    %58 = arith.divf %56, %57 : vector<32x128xf32>
    %59 = vector.extract_strided_slice %40 {offsets = [64, 0], sizes = [32, 128], strides = [1, 1]} : vector<96x128xf32> to vector<32x128xf32>
    %60 = vector.extract_strided_slice %39 {offsets = [64, 0], sizes = [32, 128], strides = [1, 1]} : vector<96x128xf32> to vector<32x128xf32>
    %61 = arith.mulf %50, %60 : vector<32x128xf32>
    %62 = arith.addf %59, %61 : vector<32x128xf32>
    %63 = math.tanh %62 : vector<32x128xf32>
    %cst_14 = arith.constant 1.000000e+00 : f32
    %64 = vector.broadcast %cst_14 : f32 to vector<32x128xf32>
    %65 = arith.subf %64, %58 : vector<32x128xf32>
    %66 = arith.mulf %65, %63 : vector<32x128xf32>
    %67 = arith.mulf %58, %34 : vector<32x128xf32>
    %68 = arith.addf %66, %67 : vector<32x128xf32>
    %69 = vector.extract_strided_slice %42 {offsets = [0, 0], sizes = [32, 128], strides = [1, 1]} : vector<96x128xf32> to vector<32x128xf32>
    %70 = vector.extract_strided_slice %41 {offsets = [0, 0], sizes = [32, 128], strides = [1, 1]} : vector<96x128xf32> to vector<32x128xf32>
    %71 = arith.addf %69, %70 : vector<32x128xf32>
    %72 = arith.negf %71 : vector<32x128xf32>
    %73 = math.exp %72 : vector<32x128xf32>
    %cst_15 = arith.constant 1.000000e+00 : f32
    %74 = vector.broadcast %cst_15 : f32 to vector<32x128xf32>
    %75 = arith.addf %74, %73 : vector<32x128xf32>
    %76 = arith.divf %74, %75 : vector<32x128xf32>
    %77 = vector.extract_strided_slice %42 {offsets = [32, 0], sizes = [32, 128], strides = [1, 1]} : vector<96x128xf32> to vector<32x128xf32>
    %78 = vector.extract_strided_slice %41 {offsets = [32, 0], sizes = [32, 128], strides = [1, 1]} : vector<96x128xf32> to vector<32x128xf32>
    %79 = arith.addf %77, %78 : vector<32x128xf32>
    %80 = arith.negf %79 : vector<32x128xf32>
    %81 = math.exp %80 : vector<32x128xf32>
    %cst_16 = arith.constant 1.000000e+00 : f32
    %82 = vector.broadcast %cst_16 : f32 to vector<32x128xf32>
    %83 = arith.addf %82, %81 : vector<32x128xf32>
    %84 = arith.divf %82, %83 : vector<32x128xf32>
    %85 = vector.extract_strided_slice %42 {offsets = [64, 0], sizes = [32, 128], strides = [1, 1]} : vector<96x128xf32> to vector<32x128xf32>
    %86 = vector.extract_strided_slice %41 {offsets = [64, 0], sizes = [32, 128], strides = [1, 1]} : vector<96x128xf32> to vector<32x128xf32>
    %87 = arith.mulf %76, %86 : vector<32x128xf32>
    %88 = arith.addf %85, %87 : vector<32x128xf32>
    %89 = math.tanh %88 : vector<32x128xf32>
    %cst_17 = arith.constant 1.000000e+00 : f32
    %90 = vector.broadcast %cst_17 : f32 to vector<32x128xf32>
    %91 = arith.subf %90, %84 : vector<32x128xf32>
    %92 = arith.mulf %91, %89 : vector<32x128xf32>
    %93 = arith.mulf %84, %2 : vector<32x128xf32>
    %94 = arith.addf %92, %93 : vector<32x128xf32>
    %c2 = arith.constant 2 : index
    %c0_18 = arith.constant 0 : index
    %c0_19 = arith.constant 0 : index
    %95 = vector.load %arg1[%c2, %c0_18, %c0_19] : memref<8x16x128xf32, #tpu.memory_space<vmem>>, vector<1x16x128xf32>
    %96 = vector.shape_cast %95 : vector<1x16x128xf32> to vector<16x128xf32>
    %97 = tpu.concatenate %68, %94, %96 in 0 : vector<32x128xf32>, vector<32x128xf32>, vector<16x128xf32> -> vector<80x128xf32>
    %cst_20 = arith.constant dense<0.000000e+00> : vector<384x128xf32>
    %98 = tpu.matmul %0, %97, %cst_20 {dimension_numbers = #tpu.dot_dimension_numbers<[1], [0], [0], [1], [0, 0, 1, 1], [], []>} : vector<384x80xf32>, vector<80x128xf32>, vector<384x128xf32> -> vector<384x128xf32>
    %99 = vector.extract_strided_slice %98 {offsets = [0, 0], sizes = [96, 128], strides = [1, 1]} : vector<384x128xf32> to vector<96x128xf32>
    %100 = vector.extract_strided_slice %98 {offsets = [96, 0], sizes = [96, 128], strides = [1, 1]} : vector<384x128xf32> to vector<96x128xf32>
    %101 = vector.extract_strided_slice %98 {offsets = [192, 0], sizes = [96, 128], strides = [1, 1]} : vector<384x128xf32> to vector<96x128xf32>
    %102 = vector.extract_strided_slice %98 {offsets = [288, 0], sizes = [96, 128], strides = [1, 1]} : vector<384x128xf32> to vector<96x128xf32>
    %103 = vector.extract_strided_slice %100 {offsets = [0, 0], sizes = [32, 128], strides = [1, 1]} : vector<96x128xf32> to vector<32x128xf32>
    %104 = vector.extract_strided_slice %99 {offsets = [0, 0], sizes = [32, 128], strides = [1, 1]} : vector<96x128xf32> to vector<32x128xf32>
    %105 = arith.addf %103, %104 : vector<32x128xf32>
    %106 = arith.negf %105 : vector<32x128xf32>
    %107 = math.exp %106 : vector<32x128xf32>
    %cst_21 = arith.constant 1.000000e+00 : f32
    %108 = vector.broadcast %cst_21 : f32 to vector<32x128xf32>
    %109 = arith.addf %108, %107 : vector<32x128xf32>
    %110 = arith.divf %108, %109 : vector<32x128xf32>
    %111 = vector.extract_strided_slice %100 {offsets = [32, 0], sizes = [32, 128], strides = [1, 1]} : vector<96x128xf32> to vector<32x128xf32>
    %112 = vector.extract_strided_slice %99 {offsets = [32, 0], sizes = [32, 128], strides = [1, 1]} : vector<96x128xf32> to vector<32x128xf32>
    %113 = arith.addf %111, %112 : vector<32x128xf32>
    %114 = arith.negf %113 : vector<32x128xf32>
    %115 = math.exp %114 : vector<32x128xf32>
    %cst_22 = arith.constant 1.000000e+00 : f32
    %116 = vector.broadcast %cst_22 : f32 to vector<32x128xf32>
    %117 = arith.addf %116, %115 : vector<32x128xf32>
    %118 = arith.divf %116, %117 : vector<32x128xf32>
    %119 = vector.extract_strided_slice %100 {offsets = [64, 0], sizes = [32, 128], strides = [1, 1]} : vector<96x128xf32> to vector<32x128xf32>
    %120 = vector.extract_strided_slice %99 {offsets = [64, 0], sizes = [32, 128], strides = [1, 1]} : vector<96x128xf32> to vector<32x128xf32>
    %121 = arith.mulf %110, %120 : vector<32x128xf32>
    %122 = arith.addf %119, %121 : vector<32x128xf32>
    %123 = math.tanh %122 : vector<32x128xf32>
    %cst_23 = arith.constant 1.000000e+00 : f32
    %124 = vector.broadcast %cst_23 : f32 to vector<32x128xf32>
    %125 = arith.subf %124, %118 : vector<32x128xf32>
    %126 = arith.mulf %125, %123 : vector<32x128xf32>
    %127 = arith.mulf %118, %68 : vector<32x128xf32>
    %128 = arith.addf %126, %127 : vector<32x128xf32>
    %129 = vector.extract_strided_slice %102 {offsets = [0, 0], sizes = [32, 128], strides = [1, 1]} : vector<96x128xf32> to vector<32x128xf32>
    %130 = vector.extract_strided_slice %101 {offsets = [0, 0], sizes = [32, 128], strides = [1, 1]} : vector<96x128xf32> to vector<32x128xf32>
    %131 = arith.addf %129, %130 : vector<32x128xf32>
    %132 = arith.negf %131 : vector<32x128xf32>
    %133 = math.exp %132 : vector<32x128xf32>
    %cst_24 = arith.constant 1.000000e+00 : f32
    %134 = vector.broadcast %cst_24 : f32 to vector<32x128xf32>
    %135 = arith.addf %134, %133 : vector<32x128xf32>
    %136 = arith.divf %134, %135 : vector<32x128xf32>
    %137 = vector.extract_strided_slice %102 {offsets = [32, 0], sizes = [32, 128], strides = [1, 1]} : vector<96x128xf32> to vector<32x128xf32>
    %138 = vector.extract_strided_slice %101 {offsets = [32, 0], sizes = [32, 128], strides = [1, 1]} : vector<96x128xf32> to vector<32x128xf32>
    %139 = arith.addf %137, %138 : vector<32x128xf32>
    %140 = arith.negf %139 : vector<32x128xf32>
    %141 = math.exp %140 : vector<32x128xf32>
    %cst_25 = arith.constant 1.000000e+00 : f32
    %142 = vector.broadcast %cst_25 : f32 to vector<32x128xf32>
    %143 = arith.addf %142, %141 : vector<32x128xf32>
    %144 = arith.divf %142, %143 : vector<32x128xf32>
    %145 = vector.extract_strided_slice %102 {offsets = [64, 0], sizes = [32, 128], strides = [1, 1]} : vector<96x128xf32> to vector<32x128xf32>
    %146 = vector.extract_strided_slice %101 {offsets = [64, 0], sizes = [32, 128], strides = [1, 1]} : vector<96x128xf32> to vector<32x128xf32>
    %147 = arith.mulf %136, %146 : vector<32x128xf32>
    %148 = arith.addf %145, %147 : vector<32x128xf32>
    %149 = math.tanh %148 : vector<32x128xf32>
    %cst_26 = arith.constant 1.000000e+00 : f32
    %150 = vector.broadcast %cst_26 : f32 to vector<32x128xf32>
    %151 = arith.subf %150, %144 : vector<32x128xf32>
    %152 = arith.mulf %151, %149 : vector<32x128xf32>
    %153 = arith.mulf %144, %94 : vector<32x128xf32>
    %154 = arith.addf %152, %153 : vector<32x128xf32>
    %c3 = arith.constant 3 : index
    %c0_27 = arith.constant 0 : index
    %c0_28 = arith.constant 0 : index
    %155 = vector.load %arg1[%c3, %c0_27, %c0_28] : memref<8x16x128xf32, #tpu.memory_space<vmem>>, vector<1x16x128xf32>
    %156 = vector.shape_cast %155 : vector<1x16x128xf32> to vector<16x128xf32>
    %157 = tpu.concatenate %128, %154, %156 in 0 : vector<32x128xf32>, vector<32x128xf32>, vector<16x128xf32> -> vector<80x128xf32>
    %cst_29 = arith.constant dense<0.000000e+00> : vector<384x128xf32>
    %158 = tpu.matmul %0, %157, %cst_29 {dimension_numbers = #tpu.dot_dimension_numbers<[1], [0], [0], [1], [0, 0, 1, 1], [], []>} : vector<384x80xf32>, vector<80x128xf32>, vector<384x128xf32> -> vector<384x128xf32>
    %159 = vector.extract_strided_slice %158 {offsets = [0, 0], sizes = [96, 128], strides = [1, 1]} : vector<384x128xf32> to vector<96x128xf32>
    %160 = vector.extract_strided_slice %158 {offsets = [96, 0], sizes = [96, 128], strides = [1, 1]} : vector<384x128xf32> to vector<96x128xf32>
    %161 = vector.extract_strided_slice %158 {offsets = [192, 0], sizes = [96, 128], strides = [1, 1]} : vector<384x128xf32> to vector<96x128xf32>
    %162 = vector.extract_strided_slice %158 {offsets = [288, 0], sizes = [96, 128], strides = [1, 1]} : vector<384x128xf32> to vector<96x128xf32>
    %163 = vector.extract_strided_slice %160 {offsets = [0, 0], sizes = [32, 128], strides = [1, 1]} : vector<96x128xf32> to vector<32x128xf32>
    %164 = vector.extract_strided_slice %159 {offsets = [0, 0], sizes = [32, 128], strides = [1, 1]} : vector<96x128xf32> to vector<32x128xf32>
    %165 = arith.addf %163, %164 : vector<32x128xf32>
    %166 = arith.negf %165 : vector<32x128xf32>
    %167 = math.exp %166 : vector<32x128xf32>
    %cst_30 = arith.constant 1.000000e+00 : f32
    %168 = vector.broadcast %cst_30 : f32 to vector<32x128xf32>
    %169 = arith.addf %168, %167 : vector<32x128xf32>
    %170 = arith.divf %168, %169 : vector<32x128xf32>
    %171 = vector.extract_strided_slice %160 {offsets = [32, 0], sizes = [32, 128], strides = [1, 1]} : vector<96x128xf32> to vector<32x128xf32>
    %172 = vector.extract_strided_slice %159 {offsets = [32, 0], sizes = [32, 128], strides = [1, 1]} : vector<96x128xf32> to vector<32x128xf32>
    %173 = arith.addf %171, %172 : vector<32x128xf32>
    %174 = arith.negf %173 : vector<32x128xf32>
    %175 = math.exp %174 : vector<32x128xf32>
    %cst_31 = arith.constant 1.000000e+00 : f32
    %176 = vector.broadcast %cst_31 : f32 to vector<32x128xf32>
    %177 = arith.addf %176, %175 : vector<32x128xf32>
    %178 = arith.divf %176, %177 : vector<32x128xf32>
    %179 = vector.extract_strided_slice %160 {offsets = [64, 0], sizes = [32, 128], strides = [1, 1]} : vector<96x128xf32> to vector<32x128xf32>
    %180 = vector.extract_strided_slice %159 {offsets = [64, 0], sizes = [32, 128], strides = [1, 1]} : vector<96x128xf32> to vector<32x128xf32>
    %181 = arith.mulf %170, %180 : vector<32x128xf32>
    %182 = arith.addf %179, %181 : vector<32x128xf32>
    %183 = math.tanh %182 : vector<32x128xf32>
    %cst_32 = arith.constant 1.000000e+00 : f32
    %184 = vector.broadcast %cst_32 : f32 to vector<32x128xf32>
    %185 = arith.subf %184, %178 : vector<32x128xf32>
    %186 = arith.mulf %185, %183 : vector<32x128xf32>
    %187 = arith.mulf %178, %128 : vector<32x128xf32>
    %188 = arith.addf %186, %187 : vector<32x128xf32>
    %189 = vector.extract_strided_slice %162 {offsets = [0, 0], sizes = [32, 128], strides = [1, 1]} : vector<96x128xf32> to vector<32x128xf32>
    %190 = vector.extract_strided_slice %161 {offsets = [0, 0], sizes = [32, 128], strides = [1, 1]} : vector<96x128xf32> to vector<32x128xf32>
    %191 = arith.addf %189, %190 : vector<32x128xf32>
    %192 = arith.negf %191 : vector<32x128xf32>
    %193 = math.exp %192 : vector<32x128xf32>
    %cst_33 = arith.constant 1.000000e+00 : f32
    %194 = vector.broadcast %cst_33 : f32 to vector<32x128xf32>
    %195 = arith.addf %194, %193 : vector<32x128xf32>
    %196 = arith.divf %194, %195 : vector<32x128xf32>
    %197 = vector.extract_strided_slice %162 {offsets = [32, 0], sizes = [32, 128], strides = [1, 1]} : vector<96x128xf32> to vector<32x128xf32>
    %198 = vector.extract_strided_slice %161 {offsets = [32, 0], sizes = [32, 128], strides = [1, 1]} : vector<96x128xf32> to vector<32x128xf32>
    %199 = arith.addf %197, %198 : vector<32x128xf32>
    %200 = arith.negf %199 : vector<32x128xf32>
    %201 = math.exp %200 : vector<32x128xf32>
    %cst_34 = arith.constant 1.000000e+00 : f32
    %202 = vector.broadcast %cst_34 : f32 to vector<32x128xf32>
    %203 = arith.addf %202, %201 : vector<32x128xf32>
    %204 = arith.divf %202, %203 : vector<32x128xf32>
    %205 = vector.extract_strided_slice %162 {offsets = [64, 0], sizes = [32, 128], strides = [1, 1]} : vector<96x128xf32> to vector<32x128xf32>
    %206 = vector.extract_strided_slice %161 {offsets = [64, 0], sizes = [32, 128], strides = [1, 1]} : vector<96x128xf32> to vector<32x128xf32>
    %207 = arith.mulf %196, %206 : vector<32x128xf32>
    %208 = arith.addf %205, %207 : vector<32x128xf32>
    %209 = math.tanh %208 : vector<32x128xf32>
    %cst_35 = arith.constant 1.000000e+00 : f32
    %210 = vector.broadcast %cst_35 : f32 to vector<32x128xf32>
    %211 = arith.subf %210, %204 : vector<32x128xf32>
    %212 = arith.mulf %211, %209 : vector<32x128xf32>
    %213 = arith.mulf %204, %154 : vector<32x128xf32>
    %214 = arith.addf %212, %213 : vector<32x128xf32>
    %c4 = arith.constant 4 : index
    %c0_36 = arith.constant 0 : index
    %c0_37 = arith.constant 0 : index
    %215 = vector.load %arg1[%c4, %c0_36, %c0_37] : memref<8x16x128xf32, #tpu.memory_space<vmem>>, vector<1x16x128xf32>
    %216 = vector.shape_cast %215 : vector<1x16x128xf32> to vector<16x128xf32>
    %217 = tpu.concatenate %188, %214, %216 in 0 : vector<32x128xf32>, vector<32x128xf32>, vector<16x128xf32> -> vector<80x128xf32>
    %cst_38 = arith.constant dense<0.000000e+00> : vector<384x128xf32>
    %218 = tpu.matmul %0, %217, %cst_38 {dimension_numbers = #tpu.dot_dimension_numbers<[1], [0], [0], [1], [0, 0, 1, 1], [], []>} : vector<384x80xf32>, vector<80x128xf32>, vector<384x128xf32> -> vector<384x128xf32>
    %219 = vector.extract_strided_slice %218 {offsets = [0, 0], sizes = [96, 128], strides = [1, 1]} : vector<384x128xf32> to vector<96x128xf32>
    %220 = vector.extract_strided_slice %218 {offsets = [96, 0], sizes = [96, 128], strides = [1, 1]} : vector<384x128xf32> to vector<96x128xf32>
    %221 = vector.extract_strided_slice %218 {offsets = [192, 0], sizes = [96, 128], strides = [1, 1]} : vector<384x128xf32> to vector<96x128xf32>
    %222 = vector.extract_strided_slice %218 {offsets = [288, 0], sizes = [96, 128], strides = [1, 1]} : vector<384x128xf32> to vector<96x128xf32>
    %223 = vector.extract_strided_slice %220 {offsets = [0, 0], sizes = [32, 128], strides = [1, 1]} : vector<96x128xf32> to vector<32x128xf32>
    %224 = vector.extract_strided_slice %219 {offsets = [0, 0], sizes = [32, 128], strides = [1, 1]} : vector<96x128xf32> to vector<32x128xf32>
    %225 = arith.addf %223, %224 : vector<32x128xf32>
    %226 = arith.negf %225 : vector<32x128xf32>
    %227 = math.exp %226 : vector<32x128xf32>
    %cst_39 = arith.constant 1.000000e+00 : f32
    %228 = vector.broadcast %cst_39 : f32 to vector<32x128xf32>
    %229 = arith.addf %228, %227 : vector<32x128xf32>
    %230 = arith.divf %228, %229 : vector<32x128xf32>
    %231 = vector.extract_strided_slice %220 {offsets = [32, 0], sizes = [32, 128], strides = [1, 1]} : vector<96x128xf32> to vector<32x128xf32>
    %232 = vector.extract_strided_slice %219 {offsets = [32, 0], sizes = [32, 128], strides = [1, 1]} : vector<96x128xf32> to vector<32x128xf32>
    %233 = arith.addf %231, %232 : vector<32x128xf32>
    %234 = arith.negf %233 : vector<32x128xf32>
    %235 = math.exp %234 : vector<32x128xf32>
    %cst_40 = arith.constant 1.000000e+00 : f32
    %236 = vector.broadcast %cst_40 : f32 to vector<32x128xf32>
    %237 = arith.addf %236, %235 : vector<32x128xf32>
    %238 = arith.divf %236, %237 : vector<32x128xf32>
    %239 = vector.extract_strided_slice %220 {offsets = [64, 0], sizes = [32, 128], strides = [1, 1]} : vector<96x128xf32> to vector<32x128xf32>
    %240 = vector.extract_strided_slice %219 {offsets = [64, 0], sizes = [32, 128], strides = [1, 1]} : vector<96x128xf32> to vector<32x128xf32>
    %241 = arith.mulf %230, %240 : vector<32x128xf32>
    %242 = arith.addf %239, %241 : vector<32x128xf32>
    %243 = math.tanh %242 : vector<32x128xf32>
    %cst_41 = arith.constant 1.000000e+00 : f32
    %244 = vector.broadcast %cst_41 : f32 to vector<32x128xf32>
    %245 = arith.subf %244, %238 : vector<32x128xf32>
    %246 = arith.mulf %245, %243 : vector<32x128xf32>
    %247 = arith.mulf %238, %188 : vector<32x128xf32>
    %248 = arith.addf %246, %247 : vector<32x128xf32>
    %249 = vector.extract_strided_slice %222 {offsets = [0, 0], sizes = [32, 128], strides = [1, 1]} : vector<96x128xf32> to vector<32x128xf32>
    %250 = vector.extract_strided_slice %221 {offsets = [0, 0], sizes = [32, 128], strides = [1, 1]} : vector<96x128xf32> to vector<32x128xf32>
    %251 = arith.addf %249, %250 : vector<32x128xf32>
    %252 = arith.negf %251 : vector<32x128xf32>
    %253 = math.exp %252 : vector<32x128xf32>
    %cst_42 = arith.constant 1.000000e+00 : f32
    %254 = vector.broadcast %cst_42 : f32 to vector<32x128xf32>
    %255 = arith.addf %254, %253 : vector<32x128xf32>
    %256 = arith.divf %254, %255 : vector<32x128xf32>
    %257 = vector.extract_strided_slice %222 {offsets = [32, 0], sizes = [32, 128], strides = [1, 1]} : vector<96x128xf32> to vector<32x128xf32>
    %258 = vector.extract_strided_slice %221 {offsets = [32, 0], sizes = [32, 128], strides = [1, 1]} : vector<96x128xf32> to vector<32x128xf32>
    %259 = arith.addf %257, %258 : vector<32x128xf32>
    %260 = arith.negf %259 : vector<32x128xf32>
    %261 = math.exp %260 : vector<32x128xf32>
    %cst_43 = arith.constant 1.000000e+00 : f32
    %262 = vector.broadcast %cst_43 : f32 to vector<32x128xf32>
    %263 = arith.addf %262, %261 : vector<32x128xf32>
    %264 = arith.divf %262, %263 : vector<32x128xf32>
    %265 = vector.extract_strided_slice %222 {offsets = [64, 0], sizes = [32, 128], strides = [1, 1]} : vector<96x128xf32> to vector<32x128xf32>
    %266 = vector.extract_strided_slice %221 {offsets = [64, 0], sizes = [32, 128], strides = [1, 1]} : vector<96x128xf32> to vector<32x128xf32>
    %267 = arith.mulf %256, %266 : vector<32x128xf32>
    %268 = arith.addf %265, %267 : vector<32x128xf32>
    %269 = math.tanh %268 : vector<32x128xf32>
    %cst_44 = arith.constant 1.000000e+00 : f32
    %270 = vector.broadcast %cst_44 : f32 to vector<32x128xf32>
    %271 = arith.subf %270, %264 : vector<32x128xf32>
    %272 = arith.mulf %271, %269 : vector<32x128xf32>
    %273 = arith.mulf %264, %214 : vector<32x128xf32>
    %274 = arith.addf %272, %273 : vector<32x128xf32>
    %c5 = arith.constant 5 : index
    %c0_45 = arith.constant 0 : index
    %c0_46 = arith.constant 0 : index
    %275 = vector.load %arg1[%c5, %c0_45, %c0_46] : memref<8x16x128xf32, #tpu.memory_space<vmem>>, vector<1x16x128xf32>
    %276 = vector.shape_cast %275 : vector<1x16x128xf32> to vector<16x128xf32>
    %277 = tpu.concatenate %248, %274, %276 in 0 : vector<32x128xf32>, vector<32x128xf32>, vector<16x128xf32> -> vector<80x128xf32>
    %cst_47 = arith.constant dense<0.000000e+00> : vector<384x128xf32>
    %278 = tpu.matmul %0, %277, %cst_47 {dimension_numbers = #tpu.dot_dimension_numbers<[1], [0], [0], [1], [0, 0, 1, 1], [], []>} : vector<384x80xf32>, vector<80x128xf32>, vector<384x128xf32> -> vector<384x128xf32>
    %279 = vector.extract_strided_slice %278 {offsets = [0, 0], sizes = [96, 128], strides = [1, 1]} : vector<384x128xf32> to vector<96x128xf32>
    %280 = vector.extract_strided_slice %278 {offsets = [96, 0], sizes = [96, 128], strides = [1, 1]} : vector<384x128xf32> to vector<96x128xf32>
    %281 = vector.extract_strided_slice %278 {offsets = [192, 0], sizes = [96, 128], strides = [1, 1]} : vector<384x128xf32> to vector<96x128xf32>
    %282 = vector.extract_strided_slice %278 {offsets = [288, 0], sizes = [96, 128], strides = [1, 1]} : vector<384x128xf32> to vector<96x128xf32>
    %283 = vector.extract_strided_slice %280 {offsets = [0, 0], sizes = [32, 128], strides = [1, 1]} : vector<96x128xf32> to vector<32x128xf32>
    %284 = vector.extract_strided_slice %279 {offsets = [0, 0], sizes = [32, 128], strides = [1, 1]} : vector<96x128xf32> to vector<32x128xf32>
    %285 = arith.addf %283, %284 : vector<32x128xf32>
    %286 = arith.negf %285 : vector<32x128xf32>
    %287 = math.exp %286 : vector<32x128xf32>
    %cst_48 = arith.constant 1.000000e+00 : f32
    %288 = vector.broadcast %cst_48 : f32 to vector<32x128xf32>
    %289 = arith.addf %288, %287 : vector<32x128xf32>
    %290 = arith.divf %288, %289 : vector<32x128xf32>
    %291 = vector.extract_strided_slice %280 {offsets = [32, 0], sizes = [32, 128], strides = [1, 1]} : vector<96x128xf32> to vector<32x128xf32>
    %292 = vector.extract_strided_slice %279 {offsets = [32, 0], sizes = [32, 128], strides = [1, 1]} : vector<96x128xf32> to vector<32x128xf32>
    %293 = arith.addf %291, %292 : vector<32x128xf32>
    %294 = arith.negf %293 : vector<32x128xf32>
    %295 = math.exp %294 : vector<32x128xf32>
    %cst_49 = arith.constant 1.000000e+00 : f32
    %296 = vector.broadcast %cst_49 : f32 to vector<32x128xf32>
    %297 = arith.addf %296, %295 : vector<32x128xf32>
    %298 = arith.divf %296, %297 : vector<32x128xf32>
    %299 = vector.extract_strided_slice %280 {offsets = [64, 0], sizes = [32, 128], strides = [1, 1]} : vector<96x128xf32> to vector<32x128xf32>
    %300 = vector.extract_strided_slice %279 {offsets = [64, 0], sizes = [32, 128], strides = [1, 1]} : vector<96x128xf32> to vector<32x128xf32>
    %301 = arith.mulf %290, %300 : vector<32x128xf32>
    %302 = arith.addf %299, %301 : vector<32x128xf32>
    %303 = math.tanh %302 : vector<32x128xf32>
    %cst_50 = arith.constant 1.000000e+00 : f32
    %304 = vector.broadcast %cst_50 : f32 to vector<32x128xf32>
    %305 = arith.subf %304, %298 : vector<32x128xf32>
    %306 = arith.mulf %305, %303 : vector<32x128xf32>
    %307 = arith.mulf %298, %248 : vector<32x128xf32>
    %308 = arith.addf %306, %307 : vector<32x128xf32>
    %309 = vector.extract_strided_slice %282 {offsets = [0, 0], sizes = [32, 128], strides = [1, 1]} : vector<96x128xf32> to vector<32x128xf32>
    %310 = vector.extract_strided_slice %281 {offsets = [0, 0], sizes = [32, 128], strides = [1, 1]} : vector<96x128xf32> to vector<32x128xf32>
    %311 = arith.addf %309, %310 : vector<32x128xf32>
    %312 = arith.negf %311 : vector<32x128xf32>
    %313 = math.exp %312 : vector<32x128xf32>
    %cst_51 = arith.constant 1.000000e+00 : f32
    %314 = vector.broadcast %cst_51 : f32 to vector<32x128xf32>
    %315 = arith.addf %314, %313 : vector<32x128xf32>
    %316 = arith.divf %314, %315 : vector<32x128xf32>
    %317 = vector.extract_strided_slice %282 {offsets = [32, 0], sizes = [32, 128], strides = [1, 1]} : vector<96x128xf32> to vector<32x128xf32>
    %318 = vector.extract_strided_slice %281 {offsets = [32, 0], sizes = [32, 128], strides = [1, 1]} : vector<96x128xf32> to vector<32x128xf32>
    %319 = arith.addf %317, %318 : vector<32x128xf32>
    %320 = arith.negf %319 : vector<32x128xf32>
    %321 = math.exp %320 : vector<32x128xf32>
    %cst_52 = arith.constant 1.000000e+00 : f32
    %322 = vector.broadcast %cst_52 : f32 to vector<32x128xf32>
    %323 = arith.addf %322, %321 : vector<32x128xf32>
    %324 = arith.divf %322, %323 : vector<32x128xf32>
    %325 = vector.extract_strided_slice %282 {offsets = [64, 0], sizes = [32, 128], strides = [1, 1]} : vector<96x128xf32> to vector<32x128xf32>
    %326 = vector.extract_strided_slice %281 {offsets = [64, 0], sizes = [32, 128], strides = [1, 1]} : vector<96x128xf32> to vector<32x128xf32>
    %327 = arith.mulf %316, %326 : vector<32x128xf32>
    %328 = arith.addf %325, %327 : vector<32x128xf32>
    %329 = math.tanh %328 : vector<32x128xf32>
    %cst_53 = arith.constant 1.000000e+00 : f32
    %330 = vector.broadcast %cst_53 : f32 to vector<32x128xf32>
    %331 = arith.subf %330, %324 : vector<32x128xf32>
    %332 = arith.mulf %331, %329 : vector<32x128xf32>
    %333 = arith.mulf %324, %274 : vector<32x128xf32>
    %334 = arith.addf %332, %333 : vector<32x128xf32>
    %c6 = arith.constant 6 : index
    %c0_54 = arith.constant 0 : index
    %c0_55 = arith.constant 0 : index
    %335 = vector.load %arg1[%c6, %c0_54, %c0_55] : memref<8x16x128xf32, #tpu.memory_space<vmem>>, vector<1x16x128xf32>
    %336 = vector.shape_cast %335 : vector<1x16x128xf32> to vector<16x128xf32>
    %337 = tpu.concatenate %308, %334, %336 in 0 : vector<32x128xf32>, vector<32x128xf32>, vector<16x128xf32> -> vector<80x128xf32>
    %cst_56 = arith.constant dense<0.000000e+00> : vector<384x128xf32>
    %338 = tpu.matmul %0, %337, %cst_56 {dimension_numbers = #tpu.dot_dimension_numbers<[1], [0], [0], [1], [0, 0, 1, 1], [], []>} : vector<384x80xf32>, vector<80x128xf32>, vector<384x128xf32> -> vector<384x128xf32>
    %339 = vector.extract_strided_slice %338 {offsets = [0, 0], sizes = [96, 128], strides = [1, 1]} : vector<384x128xf32> to vector<96x128xf32>
    %340 = vector.extract_strided_slice %338 {offsets = [96, 0], sizes = [96, 128], strides = [1, 1]} : vector<384x128xf32> to vector<96x128xf32>
    %341 = vector.extract_strided_slice %338 {offsets = [192, 0], sizes = [96, 128], strides = [1, 1]} : vector<384x128xf32> to vector<96x128xf32>
    %342 = vector.extract_strided_slice %338 {offsets = [288, 0], sizes = [96, 128], strides = [1, 1]} : vector<384x128xf32> to vector<96x128xf32>
    %343 = vector.extract_strided_slice %340 {offsets = [0, 0], sizes = [32, 128], strides = [1, 1]} : vector<96x128xf32> to vector<32x128xf32>
    %344 = vector.extract_strided_slice %339 {offsets = [0, 0], sizes = [32, 128], strides = [1, 1]} : vector<96x128xf32> to vector<32x128xf32>
    %345 = arith.addf %343, %344 : vector<32x128xf32>
    %346 = arith.negf %345 : vector<32x128xf32>
    %347 = math.exp %346 : vector<32x128xf32>
    %cst_57 = arith.constant 1.000000e+00 : f32
    %348 = vector.broadcast %cst_57 : f32 to vector<32x128xf32>
    %349 = arith.addf %348, %347 : vector<32x128xf32>
    %350 = arith.divf %348, %349 : vector<32x128xf32>
    %351 = vector.extract_strided_slice %340 {offsets = [32, 0], sizes = [32, 128], strides = [1, 1]} : vector<96x128xf32> to vector<32x128xf32>
    %352 = vector.extract_strided_slice %339 {offsets = [32, 0], sizes = [32, 128], strides = [1, 1]} : vector<96x128xf32> to vector<32x128xf32>
    %353 = arith.addf %351, %352 : vector<32x128xf32>
    %354 = arith.negf %353 : vector<32x128xf32>
    %355 = math.exp %354 : vector<32x128xf32>
    %cst_58 = arith.constant 1.000000e+00 : f32
    %356 = vector.broadcast %cst_58 : f32 to vector<32x128xf32>
    %357 = arith.addf %356, %355 : vector<32x128xf32>
    %358 = arith.divf %356, %357 : vector<32x128xf32>
    %359 = vector.extract_strided_slice %340 {offsets = [64, 0], sizes = [32, 128], strides = [1, 1]} : vector<96x128xf32> to vector<32x128xf32>
    %360 = vector.extract_strided_slice %339 {offsets = [64, 0], sizes = [32, 128], strides = [1, 1]} : vector<96x128xf32> to vector<32x128xf32>
    %361 = arith.mulf %350, %360 : vector<32x128xf32>
    %362 = arith.addf %359, %361 : vector<32x128xf32>
    %363 = math.tanh %362 : vector<32x128xf32>
    %cst_59 = arith.constant 1.000000e+00 : f32
    %364 = vector.broadcast %cst_59 : f32 to vector<32x128xf32>
    %365 = arith.subf %364, %358 : vector<32x128xf32>
    %366 = arith.mulf %365, %363 : vector<32x128xf32>
    %367 = arith.mulf %358, %308 : vector<32x128xf32>
    %368 = arith.addf %366, %367 : vector<32x128xf32>
    %369 = vector.extract_strided_slice %342 {offsets = [0, 0], sizes = [32, 128], strides = [1, 1]} : vector<96x128xf32> to vector<32x128xf32>
    %370 = vector.extract_strided_slice %341 {offsets = [0, 0], sizes = [32, 128], strides = [1, 1]} : vector<96x128xf32> to vector<32x128xf32>
    %371 = arith.addf %369, %370 : vector<32x128xf32>
    %372 = arith.negf %371 : vector<32x128xf32>
    %373 = math.exp %372 : vector<32x128xf32>
    %cst_60 = arith.constant 1.000000e+00 : f32
    %374 = vector.broadcast %cst_60 : f32 to vector<32x128xf32>
    %375 = arith.addf %374, %373 : vector<32x128xf32>
    %376 = arith.divf %374, %375 : vector<32x128xf32>
    %377 = vector.extract_strided_slice %342 {offsets = [32, 0], sizes = [32, 128], strides = [1, 1]} : vector<96x128xf32> to vector<32x128xf32>
    %378 = vector.extract_strided_slice %341 {offsets = [32, 0], sizes = [32, 128], strides = [1, 1]} : vector<96x128xf32> to vector<32x128xf32>
    %379 = arith.addf %377, %378 : vector<32x128xf32>
    %380 = arith.negf %379 : vector<32x128xf32>
    %381 = math.exp %380 : vector<32x128xf32>
    %cst_61 = arith.constant 1.000000e+00 : f32
    %382 = vector.broadcast %cst_61 : f32 to vector<32x128xf32>
    %383 = arith.addf %382, %381 : vector<32x128xf32>
    %384 = arith.divf %382, %383 : vector<32x128xf32>
    %385 = vector.extract_strided_slice %342 {offsets = [64, 0], sizes = [32, 128], strides = [1, 1]} : vector<96x128xf32> to vector<32x128xf32>
    %386 = vector.extract_strided_slice %341 {offsets = [64, 0], sizes = [32, 128], strides = [1, 1]} : vector<96x128xf32> to vector<32x128xf32>
    %387 = arith.mulf %376, %386 : vector<32x128xf32>
    %388 = arith.addf %385, %387 : vector<32x128xf32>
    %389 = math.tanh %388 : vector<32x128xf32>
    %cst_62 = arith.constant 1.000000e+00 : f32
    %390 = vector.broadcast %cst_62 : f32 to vector<32x128xf32>
    %391 = arith.subf %390, %384 : vector<32x128xf32>
    %392 = arith.mulf %391, %389 : vector<32x128xf32>
    %393 = arith.mulf %384, %334 : vector<32x128xf32>
    %394 = arith.addf %392, %393 : vector<32x128xf32>
    %c7 = arith.constant 7 : index
    %c0_63 = arith.constant 0 : index
    %c0_64 = arith.constant 0 : index
    %395 = vector.load %arg1[%c7, %c0_63, %c0_64] : memref<8x16x128xf32, #tpu.memory_space<vmem>>, vector<1x16x128xf32>
    %396 = vector.shape_cast %395 : vector<1x16x128xf32> to vector<16x128xf32>
    %397 = tpu.concatenate %368, %394, %396 in 0 : vector<32x128xf32>, vector<32x128xf32>, vector<16x128xf32> -> vector<80x128xf32>
    %cst_65 = arith.constant dense<0.000000e+00> : vector<384x128xf32>
    %398 = tpu.matmul %0, %397, %cst_65 {dimension_numbers = #tpu.dot_dimension_numbers<[1], [0], [0], [1], [0, 0, 1, 1], [], []>} : vector<384x80xf32>, vector<80x128xf32>, vector<384x128xf32> -> vector<384x128xf32>
    %399 = vector.extract_strided_slice %398 {offsets = [0, 0], sizes = [96, 128], strides = [1, 1]} : vector<384x128xf32> to vector<96x128xf32>
    %400 = vector.extract_strided_slice %398 {offsets = [96, 0], sizes = [96, 128], strides = [1, 1]} : vector<384x128xf32> to vector<96x128xf32>
    %401 = vector.extract_strided_slice %398 {offsets = [192, 0], sizes = [96, 128], strides = [1, 1]} : vector<384x128xf32> to vector<96x128xf32>
    %402 = vector.extract_strided_slice %398 {offsets = [288, 0], sizes = [96, 128], strides = [1, 1]} : vector<384x128xf32> to vector<96x128xf32>
    %403 = vector.extract_strided_slice %400 {offsets = [0, 0], sizes = [32, 128], strides = [1, 1]} : vector<96x128xf32> to vector<32x128xf32>
    %404 = vector.extract_strided_slice %399 {offsets = [0, 0], sizes = [32, 128], strides = [1, 1]} : vector<96x128xf32> to vector<32x128xf32>
    %405 = arith.addf %403, %404 : vector<32x128xf32>
    %406 = arith.negf %405 : vector<32x128xf32>
    %407 = math.exp %406 : vector<32x128xf32>
    %cst_66 = arith.constant 1.000000e+00 : f32
    %408 = vector.broadcast %cst_66 : f32 to vector<32x128xf32>
    %409 = arith.addf %408, %407 : vector<32x128xf32>
    %410 = arith.divf %408, %409 : vector<32x128xf32>
    %411 = vector.extract_strided_slice %400 {offsets = [32, 0], sizes = [32, 128], strides = [1, 1]} : vector<96x128xf32> to vector<32x128xf32>
    %412 = vector.extract_strided_slice %399 {offsets = [32, 0], sizes = [32, 128], strides = [1, 1]} : vector<96x128xf32> to vector<32x128xf32>
    %413 = arith.addf %411, %412 : vector<32x128xf32>
    %414 = arith.negf %413 : vector<32x128xf32>
    %415 = math.exp %414 : vector<32x128xf32>
    %cst_67 = arith.constant 1.000000e+00 : f32
    %416 = vector.broadcast %cst_67 : f32 to vector<32x128xf32>
    %417 = arith.addf %416, %415 : vector<32x128xf32>
    %418 = arith.divf %416, %417 : vector<32x128xf32>
    %419 = vector.extract_strided_slice %400 {offsets = [64, 0], sizes = [32, 128], strides = [1, 1]} : vector<96x128xf32> to vector<32x128xf32>
    %420 = vector.extract_strided_slice %399 {offsets = [64, 0], sizes = [32, 128], strides = [1, 1]} : vector<96x128xf32> to vector<32x128xf32>
    %421 = arith.mulf %410, %420 : vector<32x128xf32>
    %422 = arith.addf %419, %421 : vector<32x128xf32>
    %423 = math.tanh %422 : vector<32x128xf32>
    %cst_68 = arith.constant 1.000000e+00 : f32
    %424 = vector.broadcast %cst_68 : f32 to vector<32x128xf32>
    %425 = arith.subf %424, %418 : vector<32x128xf32>
    %426 = arith.mulf %425, %423 : vector<32x128xf32>
    %427 = arith.mulf %418, %368 : vector<32x128xf32>
    %428 = arith.addf %426, %427 : vector<32x128xf32>
    %429 = vector.extract_strided_slice %402 {offsets = [0, 0], sizes = [32, 128], strides = [1, 1]} : vector<96x128xf32> to vector<32x128xf32>
    %430 = vector.extract_strided_slice %401 {offsets = [0, 0], sizes = [32, 128], strides = [1, 1]} : vector<96x128xf32> to vector<32x128xf32>
    %431 = arith.addf %429, %430 : vector<32x128xf32>
    %432 = arith.negf %431 : vector<32x128xf32>
    %433 = math.exp %432 : vector<32x128xf32>
    %cst_69 = arith.constant 1.000000e+00 : f32
    %434 = vector.broadcast %cst_69 : f32 to vector<32x128xf32>
    %435 = arith.addf %434, %433 : vector<32x128xf32>
    %436 = arith.divf %434, %435 : vector<32x128xf32>
    %437 = vector.extract_strided_slice %402 {offsets = [32, 0], sizes = [32, 128], strides = [1, 1]} : vector<96x128xf32> to vector<32x128xf32>
    %438 = vector.extract_strided_slice %401 {offsets = [32, 0], sizes = [32, 128], strides = [1, 1]} : vector<96x128xf32> to vector<32x128xf32>
    %439 = arith.addf %437, %438 : vector<32x128xf32>
    %440 = arith.negf %439 : vector<32x128xf32>
    %441 = math.exp %440 : vector<32x128xf32>
    %cst_70 = arith.constant 1.000000e+00 : f32
    %442 = vector.broadcast %cst_70 : f32 to vector<32x128xf32>
    %443 = arith.addf %442, %441 : vector<32x128xf32>
    %444 = arith.divf %442, %443 : vector<32x128xf32>
    %445 = vector.extract_strided_slice %402 {offsets = [64, 0], sizes = [32, 128], strides = [1, 1]} : vector<96x128xf32> to vector<32x128xf32>
    %446 = vector.extract_strided_slice %401 {offsets = [64, 0], sizes = [32, 128], strides = [1, 1]} : vector<96x128xf32> to vector<32x128xf32>
    %447 = arith.mulf %436, %446 : vector<32x128xf32>
    %448 = arith.addf %445, %447 : vector<32x128xf32>
    %449 = math.tanh %448 : vector<32x128xf32>
    %cst_71 = arith.constant 1.000000e+00 : f32
    %450 = vector.broadcast %cst_71 : f32 to vector<32x128xf32>
    %451 = arith.subf %450, %444 : vector<32x128xf32>
    %452 = arith.mulf %451, %449 : vector<32x128xf32>
    %453 = arith.mulf %444, %394 : vector<32x128xf32>
    %454 = arith.addf %452, %453 : vector<32x128xf32>
    %c7_72 = arith.constant 7 : index
    %c0_73 = arith.constant 0 : index
    %c0_74 = arith.constant 0 : index
    %455 = vector.load %arg1[%c7_72, %c0_73, %c0_74] : memref<8x16x128xf32, #tpu.memory_space<vmem>>, vector<1x16x128xf32>
    %456 = vector.shape_cast %455 : vector<1x16x128xf32> to vector<16x128xf32>
    %457 = tpu.concatenate %428, %454, %456 in 0 : vector<32x128xf32>, vector<32x128xf32>, vector<16x128xf32> -> vector<80x128xf32>
    %cst_75 = arith.constant dense<0.000000e+00> : vector<384x128xf32>
    %458 = tpu.matmul %0, %457, %cst_75 {dimension_numbers = #tpu.dot_dimension_numbers<[1], [0], [0], [1], [0, 0, 1, 1], [], []>} : vector<384x80xf32>, vector<80x128xf32>, vector<384x128xf32> -> vector<384x128xf32>
    %459 = vector.extract_strided_slice %458 {offsets = [192, 0], sizes = [96, 128], strides = [1, 1]} : vector<384x128xf32> to vector<96x128xf32>
    %460 = vector.extract_strided_slice %458 {offsets = [288, 0], sizes = [96, 128], strides = [1, 1]} : vector<384x128xf32> to vector<96x128xf32>
    %461 = vector.extract_strided_slice %460 {offsets = [0, 0], sizes = [32, 128], strides = [1, 1]} : vector<96x128xf32> to vector<32x128xf32>
    %462 = vector.extract_strided_slice %459 {offsets = [0, 0], sizes = [32, 128], strides = [1, 1]} : vector<96x128xf32> to vector<32x128xf32>
    %463 = arith.addf %461, %462 : vector<32x128xf32>
    %464 = arith.negf %463 : vector<32x128xf32>
    %465 = math.exp %464 : vector<32x128xf32>
    %cst_76 = arith.constant 1.000000e+00 : f32
    %466 = vector.broadcast %cst_76 : f32 to vector<32x128xf32>
    %467 = arith.addf %466, %465 : vector<32x128xf32>
    %468 = arith.divf %466, %467 : vector<32x128xf32>
    %469 = vector.extract_strided_slice %460 {offsets = [32, 0], sizes = [32, 128], strides = [1, 1]} : vector<96x128xf32> to vector<32x128xf32>
    %470 = vector.extract_strided_slice %459 {offsets = [32, 0], sizes = [32, 128], strides = [1, 1]} : vector<96x128xf32> to vector<32x128xf32>
    %471 = arith.addf %469, %470 : vector<32x128xf32>
    %472 = arith.negf %471 : vector<32x128xf32>
    %473 = math.exp %472 : vector<32x128xf32>
    %cst_77 = arith.constant 1.000000e+00 : f32
    %474 = vector.broadcast %cst_77 : f32 to vector<32x128xf32>
    %475 = arith.addf %474, %473 : vector<32x128xf32>
    %476 = arith.divf %474, %475 : vector<32x128xf32>
    %477 = vector.extract_strided_slice %460 {offsets = [64, 0], sizes = [32, 128], strides = [1, 1]} : vector<96x128xf32> to vector<32x128xf32>
    %478 = vector.extract_strided_slice %459 {offsets = [64, 0], sizes = [32, 128], strides = [1, 1]} : vector<96x128xf32> to vector<32x128xf32>
    %479 = arith.mulf %468, %478 : vector<32x128xf32>
    %480 = arith.addf %477, %479 : vector<32x128xf32>
    %481 = math.tanh %480 : vector<32x128xf32>
    %cst_78 = arith.constant 1.000000e+00 : f32
    %482 = vector.broadcast %cst_78 : f32 to vector<32x128xf32>
    %483 = arith.subf %482, %476 : vector<32x128xf32>
    %484 = arith.mulf %483, %481 : vector<32x128xf32>
    %485 = arith.mulf %476, %454 : vector<32x128xf32>
    %486 = arith.addf %484, %485 : vector<32x128xf32>
    %487 = tpu.transpose %486, [1, 0] : vector<32x128xf32> -> vector<128x32xf32>
    %c0_79 = arith.constant 0 : index
    %c0_80 = arith.constant 0 : index
    %488 = vector.load %arg2[%c0_79, %c0_80] : memref<128x72xf32, #tpu.memory_space<vmem>>, vector<128x72xf32>
    %c0_81 = arith.constant 0 : index
    %c0_82 = arith.constant 0 : index
    %489 = vector.load %arg4[%c0_81, %c0_82] : memref<72x128xf32, #tpu.memory_space<vmem>>, vector<72x128xf32>
    %cst_83 = arith.constant dense<0.000000e+00> : vector<128x128xf32>
    %490 = tpu.matmul %488, %489, %cst_83 {dimension_numbers = #tpu.dot_dimension_numbers<[1], [0], [0], [1], [0, 0, 1, 1], [], []>} : vector<128x72xf32>, vector<72x128xf32>, vector<128x128xf32> -> vector<128x128xf32>
    %491 = vector.extract_strided_slice %490 {offsets = [0, 0], sizes = [128, 32], strides = [1, 1]} : vector<128x128xf32> to vector<128x32xf32>
    %cst_84 = arith.constant 0.000000e+00 : f32
    %492 = vector.broadcast %cst_84 : f32 to vector<128x32xf32>
    %493 = arith.maximumf %491, %492 : vector<128x32xf32>
    %494 = vector.extract_strided_slice %490 {offsets = [0, 64], sizes = [128, 64], strides = [1, 1]} : vector<128x128xf32> to vector<128x64xf32>
    %495 = tpu.concatenate %493, %487, %494 in 1 : vector<128x32xf32>, vector<128x32xf32>, vector<128x64xf32> -> vector<128x128xf32>
    %c0_85 = arith.constant 0 : index
    %c0_86 = arith.constant 0 : index
    %496 = vector.load %arg5[%c0_85, %c0_86] : memref<128x128xf32, #tpu.memory_space<vmem>>, vector<128x128xf32>
    tpu.vector_store %arg5[%c0_85, %c0_86], %495 {strides = array<i32>} : memref<128x128xf32, #tpu.memory_space<vmem>>, vector<128x128xf32>,
    return
  }
  func.func @transform_0(%arg0: i32) -> (i32, i32, i32) {
    %c0_i32 = arith.constant 0 : i32
    %c0_i32_0 = arith.constant 0 : i32
    %c0_i32_1 = arith.constant 0 : i32
    return %c0_i32, %c0_i32_0, %arg0 : i32, i32, i32
  }
  func.func @transform_1(%arg0: i32) -> (i32, i32) {
    %c0_i32 = arith.constant 0 : i32
    %c0_i32_0 = arith.constant 0 : i32
    return %arg0, %c0_i32 : i32, i32
  }
  func.func @transform_2(%arg0: i32) -> (i32, i32) {
    %c0_i32 = arith.constant 0 : i32
    %c0_i32_0 = arith.constant 0 : i32
    %c0_i32_1 = arith.constant 0 : i32
    return %c0_i32, %c0_i32_0 : i32, i32
  }
  func.func @transform_3(%arg0: i32) -> (i32, i32) {
    %c0_i32 = arith.constant 0 : i32
    %c0_i32_0 = arith.constant 0 : i32
    %c0_i32_1 = arith.constant 0 : i32
    return %c0_i32, %c0_i32_0 : i32, i32
  }
  func.func @transform_4(%arg0: i32) -> (i32, i32) {
    %c0_i32 = arith.constant 0 : i32
    %c0_i32_0 = arith.constant 0 : i32
    return %arg0, %c0_i32 : i32, i32
  }
}

</mosaic_0001>

<llo_original>
// kernel: tpu_custom_call.1
$region0: #{tpu_custom_call.1}
  #allocation0 [shape = 'u32[]', space=smem, size = 0x4, offset = 0x4, fixed_abs, tag = 'smem constant byte address 0x4 - core index']
  #allocation1 [shape = 'u32[144,128]{1,0:T(1,128)}', space=vmem, size = 0x12000, scoped, tag = 'internal scratch']
  %s0 = inlined_call_operand.vmem [shape: f32[8,16,128], index: 0, kind: input, shape index: {}]
  %s1 = inlined_call_operand.vmem [shape: f32[128,72], index: 1, kind: input, shape index: {}]
  %s2 = inlined_call_operand.vmem [shape: f32[384,80], index: 2, kind: input, shape index: {}]
  %s3 = inlined_call_operand.vmem [shape: f32[72,128], index: 3, kind: input, shape index: {}]
  %s4 = inlined_call_operand.hbm [shape: f32[128,128], index: 4, kind: output, shape index: {}]
  %s5 = sld [smem:[#allocation0]]
  $region26: #{tpu_custom_call.1} parent=0
    _
  %s7 = ssub.s32 1, %s5
  %s8 = scalar_select 0, %s7, %s5
  $region1: #{tpu_custom_call.1} parent=0
    #allocation2 [shape = 'u8[65536]{0}', space=vmem, size = 0x10000, scoped, tag = 'output window, operand 0, single buffered']
    #allocation3 [shape = 's32[1]{0}', space=sflag, size = 0x4, scoped, tag = 'scoped memory for tpu_custom_call.1']
    %9 = vsyncpa [#allocation3], 0
    // Predicated region
    $region2: #{tpu_custom_call.1} parent=1 // pred_check
      _
    $region3: #{tpu_custom_call.1} parent=1 // pred_check_branch
      %11 = sbr.rel (0) target = $region5
    $region4: #{tpu_custom_call.1} parent=1 // pred_region
      _
    $region5: #{tpu_custom_call.1} parent=1 // pred_fallthru
      _
    // Predicated region
    $region6: #{tpu_custom_call.1} parent=1 // pred_check
      _
    $region7: #{tpu_custom_call.1} parent=1 // pred_check_branch
      %13 = sbr.rel (0) target = $region9
    $region8: #{tpu_custom_call.1} parent=1 // pred_region
      _
    $region9: #{tpu_custom_call.1} parent=1 // pred_fallthru
      _
    // Predicated region
    $region10: #{tpu_custom_call.1} parent=1 // pred_check
      _
    $region11: #{tpu_custom_call.1} parent=1 // pred_check_branch
      %15 = sbr.rel (0) target = $region13
    $region12: #{tpu_custom_call.1} parent=1 // pred_region
      _
    $region13: #{tpu_custom_call.1} parent=1 // pred_fallthru
      _
    // Predicated region
    $region14: #{tpu_custom_call.1} parent=1 // pred_check
      _
    $region15: #{tpu_custom_call.1} parent=1 // pred_check_branch
      %17 = sbr.rel (0) target = $region17
    $region16: #{tpu_custom_call.1} parent=1 // pred_region
      _
    $region17: #{tpu_custom_call.1} parent=1 // pred_fallthru
      _
    %v18 = vld [vmem:[%s2] sm:$0xff]
    %v19 = vld [vmem:[%s2 + $0x8] sm:$0xff]
    %v20 = vld [vmem:[%s2 + $0x10] sm:$0xff]
    %v21 = vld [vmem:[%s2 + $0x18] sm:$0xff]
    %v22 = vld [vmem:[%s2 + $0x20] sm:$0xff]
    %v23 = vld [vmem:[%s2 + $0x28] sm:$0xff]
    %v24 = vld [vmem:[%s2 + $0x30] sm:$0xff]
    %v25 = vld [vmem:[%s2 + $0x38] sm:$0xff]
    %v26 = vld [vmem:[%s2 + $0x40] sm:$0xff]
    %v27 = vld [vmem:[%s2 + $0x48] sm:$0xff]
    %v28 = vld [vmem:[%s2 + $0x50] sm:$0xff]
    %v29 = vld [vmem:[%s2 + $0x58] sm:$0xff]
    %v30 = vld [vmem:[%s2 + $0x60] sm:$0xff]
    %v31 = vld [vmem:[%s2 + $0x68] sm:$0xff]
    %v32 = vld [vmem:[%s2 + $0x70] sm:$0xff]
    %v33 = vld [vmem:[%s2 + $0x78] sm:$0xff]
    %v34 = vld [vmem:[%s2 + $0x80] sm:$0xff]
    %v35 = vld [vmem:[%s2 + $0x88] sm:$0xff]
    %v36 = vld [vmem:[%s2 + $0x90] sm:$0xff]
    %v37 = vld [vmem:[%s2 + $0x98] sm:$0xff]
    %v38 = vld [vmem:[%s2 + $0xa0] sm:$0xff]
    %v39 = vld [vmem:[%s2 + $0xa8] sm:$0xff]
    %v40 = vld [vmem:[%s2 + $0xb0] sm:$0xff]
    %v41 = vld [vmem:[%s2 + $0xb8] sm:$0xff]
    %v42 = vld [vmem:[%s2 + $0xc0] sm:$0xff]
    %v43 = vld [vmem:[%s2 + $0xc8] sm:$0xff]
    %v44 = vld [vmem:[%s2 + $0xd0] sm:$0xff]
    %v45 = vld [vmem:[%s2 + $0xd8] sm:$0xff]
    %v46 = vld [vmem:[%s2 + $0xe0] sm:$0xff]
    %v47 = vld [vmem:[%s2 + $0xe8] sm:$0xff]
    %v48 = vld [vmem:[%s2 + $0xf0] sm:$0xff]
    %v49 = vld [vmem:[%s2 + $0xf8] sm:$0xff]
    %v50 = vld [vmem:[%s2 + $0x100] sm:$0xff]
    %v51 = vld [vmem:[%s2 + $0x108] sm:$0xff]
    %v52 = vld [vmem:[%s2 + $0x110] sm:$0xff]
    %v53 = vld [vmem:[%s2 + $0x118] sm:$0xff]
    %v54 = vld [vmem:[%s2 + $0x120] sm:$0xff]
    %v55 = vld [vmem:[%s2 + $0x128] sm:$0xff]
    %v56 = vld [vmem:[%s2 + $0x130] sm:$0xff]
    %v57 = vld [vmem:[%s2 + $0x138] sm:$0xff]
    %v58 = vld [vmem:[%s2 + $0x140] sm:$0xff]
    %v59 = vld [vmem:[%s2 + $0x148] sm:$0xff]
    %v60 = vld [vmem:[%s2 + $0x150] sm:$0xff]
    %v61 = vld [vmem:[%s2 + $0x158] sm:$0xff]
    %v62 = vld [vmem:[%s2 + $0x160] sm:$0xff]
    %v63 = vld [vmem:[%s2 + $0x168] sm:$0xff]
    %v64 = vld [vmem:[%s2 + $0x170] sm:$0xff]
    %v65 = vld [vmem:[%s2 + $0x178] sm:$0xff]
    %v66 = vld [vmem:[%s0] sm:$0xff]
    %v67 = vld [vmem:[%s0 + $0x8] sm:$0xff]
    %vm68 = vcmask 654336
    %v70 = vsel %vm68, %v18, 0
    %v73 = vsel %vm68, %v19, 0
    %v76 = vsel %vm68, %v20, 0
    %v79 = vsel %vm68, %v21, 0
    %v82 = vsel %vm68, %v22, 0
    %v85 = vsel %vm68, %v23, 0
    %v88 = vsel %vm68, %v24, 0
    %v91 = vsel %vm68, %v25, 0
    %v94 = vsel %vm68, %v26, 0
    %v97 = vsel %vm68, %v27, 0
    %v100 = vsel %vm68, %v28, 0
    %v103 = vsel %vm68, %v29, 0
    %v106 = vsel %vm68, %v30, 0
    %v109 = vsel %vm68, %v31, 0
    %v112 = vsel %vm68, %v32, 0
    %v115 = vsel %vm68, %v33, 0
    %v118 = vsel %vm68, %v34, 0
    %v121 = vsel %vm68, %v35, 0
    %v124 = vsel %vm68, %v36, 0
    %v127 = vsel %vm68, %v37, 0
    %v130 = vsel %vm68, %v38, 0
    %v133 = vsel %vm68, %v39, 0
    %v136 = vsel %vm68, %v40, 0
    %v139 = vsel %vm68, %v41, 0
    %v142 = vsel %vm68, %v42, 0
    %v145 = vsel %vm68, %v43, 0
    %v148 = vsel %vm68, %v44, 0
    %v151 = vsel %vm68, %v45, 0
    %v154 = vsel %vm68, %v46, 0
    %v157 = vsel %vm68, %v47, 0
    %v160 = vsel %vm68, %v48, 0
    %v163 = vsel %vm68, %v49, 0
    %v166 = vsel %vm68, %v50, 0
    %v169 = vsel %vm68, %v51, 0
    %v172 = vsel %vm68, %v52, 0
    %v175 = vsel %vm68, %v53, 0
    %v178 = vsel %vm68, %v54, 0
    %v181 = vsel %vm68, %v55, 0
    %v184 = vsel %vm68, %v56, 0
    %v187 = vsel %vm68, %v57, 0
    %v190 = vsel %vm68, %v58, 0
    %v193 = vsel %vm68, %v59, 0
    %v196 = vsel %vm68, %v60, 0
    %v199 = vsel %vm68, %v61, 0
    %v202 = vsel %vm68, %v62, 0
    %v205 = vsel %vm68, %v63, 0
    %v208 = vsel %vm68, %v64, 0
    %v211 = vsel %vm68, %v65, 0
    %213 = vmatprep.subr.mxu0 0.0
    %214 = vmatpush1.msra.mxu0 0.0
    %215 = vmatprep.subr.mxu0 0.0
    %216 = vmatpush1.msra.mxu0 0.0
    %217 = vmatprep.subr.mxu0 0.0
    %218 = vmatpush1.msra.mxu0 0.0
    %219 = vmatprep.subr.mxu0 0.0
    %220 = vmatpush1.msra.mxu0 0.0
    %221 = vmatprep.subr.mxu0 0.0
    %222 = vmatpush1.msra.mxu0 0.0
    %223 = vmatprep.subr.mxu0 0.0
    %224 = vmatpush1.msra.mxu0 0.0
    %225 = vmatprep.subr.mxu0 0.0
    %226 = vmatpush1.msra.mxu0 0.0
    %227 = vmatprep.subr.mxu0 0.0
    %228 = vmatpush1.msra.mxu0 0.0
    %229 = vmatprep.subr.mxu0 0.0
    %230 = vmatpush1.msra.mxu0 %v66
    %231 = vmatprep.subr.mxu0 0.0
    %232 = vmatpush1.msra.mxu0 %v67
    %233 = vmatprep.subr.mxu0 0.0
    %234 = vmatpush1.msra.mxu0 0.0
    %235 = vmatprep.subr.mxu0 0.0
    %236 = vmatpush1.msra.mxu0 0.0
    %237 = vmatprep.subr.mxu0 0.0
    %238 = vmatpush1.msra.mxu0 0.0
    %239 = vmatprep.subr.mxu0 0.0
    %240 = vmatpush1.msra.mxu0 0.0
    %241 = vmatprep.subr.mxu0 0.0
    %242 = vmatpush1.msra.mxu0 0.0
    %243 = vmatprep.subr.mxu0 0.0
    %244 = vmatpush1.msra.mxu0 0.0
    %245 = vmatprep.subr.mxu0 0.0
    %246 = vmatpush1.msra.mxu0 0.0
    %247 = vmatprep.subr.mxu0 0.0
    %248 = vmatpush1.msra.mxu0 0.0
    %249 = vmatprep.subr.mxu0 0.0
    %250 = vmatpush1.msra.mxu0 0.0
    %251 = vmatprep.subr.mxu0 0.0
    %252 = vmatpush1.msra.mxu0 0.0
    %253 = vmatprep.subr.mxu0 0.0
    %254 = vmatpush1.msra.mxu0 0.0
    %255 = vmatprep.subr.mxu0 0.0
    %256 = vmatpush1.msra.mxu0 0.0
    %257 = vmatprep.subr.mxu0 0.0
    %258 = vmatpush1.msra.mxu0 0.0
    %259 = vmatprep.subr.mxu0 0.0
    %260 = vmatpush1.msra.mxu0 0.0
    %261 = vmatprep.subr.mxu0 0.0
    %262 = vmatpush1.msra.mxu0 0.0
    %263 = vmatprep.subr.mxu0 0.0
    %264 = vmatpush1.msra.mxu0 0.0
    %265 = vmatprep.subr.mxu0 0.0
    %266 = vmatpush1.msra.mxu0 0.0
    %267 = vmatprep.subr.mxu0 0.0
    %268 = vmatpush1.msra.mxu0 0.0
    %269 = vmatprep.subr.mxu0 0.0
    %270 = vmatpush1.msra.mxu0 0.0
    %271 = vmatprep.subr.mxu0 0.0
    %272 = vmatpush1.msra.mxu0 0.0
    %273 = vmatprep.subr.mxu0 0.0
    %274 = vmatpush1.msra.mxu0 0.0
    %275 = vmatprep.subr.mxu0 0.0
    %276 = vmatpush1.msra.mxu0 0.0
    %277 = vmatprep.mubr.f32.mxu0 0.0
    %278 = vmatmul.mubr.f32.gmra.mrb[0].mxu0 %v70
    %v279 = vpop.f32.mrb[0].mxu0
    %v280 = vadd.f32 0.0, %v279
    %v281 = vpop.f32.mrb[0].mxu0
    %282 = vmatprep.mubr.f32.mxu0 0.0
    %283 = vmatmul.mubr.f32.gmra.mrb[0].mxu0 %v73
    %v284 = vpop.f32.mrb[0].mxu0
    %v285 = vadd.f32 0.0, %v284
    %v286 = vpop.f32.mrb[0].mxu0
    %287 = vmatprep.mubr.f32.mxu0 0.0
    %288 = vmatmul.mubr.f32.gmra.mrb[0].mxu0 %v76
    %v289 = vpop.f32.mrb[0].mxu0
    %v290 = vadd.f32 0.0, %v289
    %v291 = vpop.f32.mrb[0].mxu0
    %292 = vmatprep.mubr.f32.mxu0 0.0
    %293 = vmatmul.mubr.f32.gmra.mrb[0].mxu0 %v79
    %v294 = vpop.f32.mrb[0].mxu0
    %v295 = vadd.f32 0.0, %v294
    %v296 = vpop.f32.mrb[0].mxu0
    %297 = vmatprep.mubr.f32.mxu0 0.0
    %298 = vmatmul.mubr.f32.gmra.mrb[0].mxu0 %v82
    %v299 = vpop.f32.mrb[0].mxu0
    %v300 = vadd.f32 0.0, %v299
    %v301 = vpop.f32.mrb[0].mxu0
    %302 = vmatprep.mubr.f32.mxu0 0.0
    %303 = vmatmul.mubr.f32.gmra.mrb[0].mxu0 %v85
    %v304 = vpop.f32.mrb[0].mxu0
    %v305 = vadd.f32 0.0, %v304
    %v306 = vpop.f32.mrb[0].mxu0
    %307 = vmatprep.mubr.f32.mxu0 0.0
    %308 = vmatmul.mubr.f32.gmra.mrb[0].mxu0 %v88
    %v309 = vpop.f32.mrb[0].mxu0
    %v310 = vadd.f32 0.0, %v309
    %v311 = vpop.f32.mrb[0].mxu0
    %312 = vmatprep.mubr.f32.mxu0 0.0
    %313 = vmatmul.mubr.f32.gmra.mrb[0].mxu0 %v91
    %v314 = vpop.f32.mrb[0].mxu0
    %v315 = vadd.f32 0.0, %v314
    %v316 = vpop.f32.mrb[0].mxu0
    %317 = vmatprep.mubr.f32.mxu0 0.0
    %318 = vmatmul.mubr.f32.gmra.mrb[0].mxu0 %v94
    %v319 = vpop.f32.mrb[0].mxu0
    %v320 = vadd.f32 0.0, %v319
    %v321 = vpop.f32.mrb[0].mxu0
    %322 = vmatprep.mubr.f32.mxu0 0.0
    %323 = vmatmul.mubr.f32.gmra.mrb[0].mxu0 %v97
    %v324 = vpop.f32.mrb[0].mxu0
    %v325 = vadd.f32 0.0, %v324
    %v326 = vpop.f32.mrb[0].mxu0
    %327 = vmatprep.mubr.f32.mxu0 0.0
    %328 = vmatmul.mubr.f32.gmra.mrb[0].mxu0 %v100
    %v329 = vpop.f32.mrb[0].mxu0
    %v330 = vadd.f32 0.0, %v329
    %v331 = vpop.f32.mrb[0].mxu0
    %332 = vmatprep.mubr.f32.mxu0 0.0
    %333 = vmatmul.mubr.f32.gmra.mrb[0].mxu0 %v103
    %v334 = vpop.f32.mrb[0].mxu0
    %v335 = vadd.f32 0.0, %v334
    %v336 = vpop.f32.mrb[0].mxu0
    %337 = vmatprep.mubr.f32.mxu0 0.0
    %338 = vmatmul.mubr.f32.gmra.mrb[0].mxu0 %v106
    %v339 = vpop.f32.mrb[0].mxu0
    %v340 = vadd.f32 0.0, %v339
    %v341 = vpop.f32.mrb[0].mxu0
    %342 = vmatprep.mubr.f32.mxu0 0.0
    %343 = vmatmul.mubr.f32.gmra.mrb[0].mxu0 %v109
    %v344 = vpop.f32.mrb[0].mxu0
    %v345 = vadd.f32 0.0, %v344
    %v346 = vpop.f32.mrb[0].mxu0
    %347 = vmatprep.mubr.f32.mxu0 0.0
    %348 = vmatmul.mubr.f32.gmra.mrb[0].mxu0 %v112
    %v349 = vpop.f32.mrb[0].mxu0
    %v350 = vadd.f32 0.0, %v349
    %v351 = vpop.f32.mrb[0].mxu0
    %352 = vmatprep.mubr.f32.mxu0 0.0
    %353 = vmatmul.mubr.f32.gmra.mrb[0].mxu0 %v115
    %v354 = vpop.f32.mrb[0].mxu0
    %v355 = vadd.f32 0.0, %v354
    %v356 = vpop.f32.mrb[0].mxu0
    %357 = vmatprep.mubr.f32.mxu0 0.0
    %358 = vmatmul.mubr.f32.gmra.mrb[0].mxu0 %v118
    %v359 = vpop.f32.mrb[0].mxu0
    %v360 = vadd.f32 0.0, %v359
    %v361 = vpop.f32.mrb[0].mxu0
    %362 = vmatprep.mubr.f32.mxu0 0.0
    %363 = vmatmul.mubr.f32.gmra.mrb[0].mxu0 %v121
    %v364 = vpop.f32.mrb[0].mxu0
    %v365 = vadd.f32 0.0, %v364
    %v366 = vpop.f32.mrb[0].mxu0
    %367 = vmatprep.mubr.f32.mxu0 0.0
    %368 = vmatmul.mubr.f32.gmra.mrb[0].mxu0 %v124
    %v369 = vpop.f32.mrb[0].mxu0
    %v370 = vadd.f32 0.0, %v369
    %v371 = vpop.f32.mrb[0].mxu0
    %372 = vmatprep.mubr.f32.mxu0 0.0
    %373 = vmatmul.mubr.f32.gmra.mrb[0].mxu0 %v127
    %v374 = vpop.f32.mrb[0].mxu0
    %v375 = vadd.f32 0.0, %v374
    %v376 = vpop.f32.mrb[0].mxu0
    %377 = vmatprep.mubr.f32.mxu0 0.0
    %378 = vmatmul.mubr.f32.gmra.mrb[0].mxu0 %v130
    %v379 = vpop.f32.mrb[0].mxu0
    %v380 = vadd.f32 0.0, %v379
    %v381 = vpop.f32.mrb[0].mxu0
    %382 = vmatprep.mubr.f32.mxu0 0.0
    %383 = vmatmul.mubr.f32.gmra.mrb[0].mxu0 %v133
    %v384 = vpop.f32.mrb[0].mxu0
    %v385 = vadd.f32 0.0, %v384
    %v386 = vpop.f32.mrb[0].mxu0
    %387 = vmatprep.mubr.f32.mxu0 0.0
    %388 = vmatmul.mubr.f32.gmra.mrb[0].mxu0 %v136
    %v389 = vpop.f32.mrb[0].mxu0
    %v390 = vadd.f32 0.0, %v389
    %v391 = vpop.f32.mrb[0].mxu0
    %392 = vmatprep.mubr.f32.mxu0 0.0
    %393 = vmatmul.mubr.f32.gmra.mrb[0].mxu0 %v139
    %v394 = vpop.f32.mrb[0].mxu0
    %v395 = vadd.f32 0.0, %v394
    %v396 = vpop.f32.mrb[0].mxu0
    %397 = vmatprep.mubr.f32.mxu0 0.0
    %398 = vmatmul.mubr.f32.gmra.mrb[0].mxu0 %v142
    %v399 = vpop.f32.mrb[0].mxu0
    %v400 = vpop.f32.mrb[0].mxu0
    %401 = vmatprep.mubr.f32.mxu0 0.0
    %402 = vmatmul.mubr.f32.gmra.mrb[0].mxu0 %v145
    %v403 = vpop.f32.mrb[0].mxu0
    %v404 = vpop.f32.mrb[0].mxu0
    %405 = vmatprep.mubr.f32.mxu0 0.0
    %406 = vmatmul.mubr.f32.gmra.mrb[0].mxu0 %v148
    %v407 = vpop.f32.mrb[0].mxu0
    %v408 = vpop.f32.mrb[0].mxu0
    %409 = vmatprep.mubr.f32.mxu0 0.0
    %410 = vmatmul.mubr.f32.gmra.mrb[0].mxu0 %v151
    %v411 = vpop.f32.mrb[0].mxu0
    %v412 = vpop.f32.mrb[0].mxu0
    %413 = vmatprep.mubr.f32.mxu0 0.0
    %414 = vmatmul.mubr.f32.gmra.mrb[0].mxu0 %v154
    %v415 = vpop.f32.mrb[0].mxu0
    %v416 = vpop.f32.mrb[0].mxu0
    %417 = vmatprep.mubr.f32.mxu0 0.0
    %418 = vmatmul.mubr.f32.gmra.mrb[0].mxu0 %v157
    %v419 = vpop.f32.mrb[0].mxu0
    %v420 = vpop.f32.mrb[0].mxu0
    %421 = vmatprep.mubr.f32.mxu0 0.0
    %422 = vmatmul.mubr.f32.gmra.mrb[0].mxu0 %v160
    %v423 = vpop.f32.mrb[0].mxu0
    %v424 = vpop.f32.mrb[0].mxu0
    %425 = vmatprep.mubr.f32.mxu0 0.0
    %426 = vmatmul.mubr.f32.gmra.mrb[0].mxu0 %v163
    %v427 = vpop.f32.mrb[0].mxu0
    %v428 = vpop.f32.mrb[0].mxu0
    %429 = vmatprep.mubr.f32.mxu0 0.0
    %430 = vmatmul.mubr.f32.gmra.mrb[0].mxu0 %v166
    %v431 = vpop.f32.mrb[0].mxu0
    %v432 = vpop.f32.mrb[0].mxu0
    %433 = vmatprep.mubr.f32.mxu0 0.0
    %434 = vmatmul.mubr.f32.gmra.mrb[0].mxu0 %v169
    %v435 = vpop.f32.mrb[0].mxu0
    %v436 = vpop.f32.mrb[0].mxu0
    %437 = vmatprep.mubr.f32.mxu0 0.0
    %438 = vmatmul.mubr.f32.gmra.mrb[0].mxu0 %v172
    %v439 = vpop.f32.mrb[0].mxu0
    %v440 = vpop.f32.mrb[0].mxu0
    %441 = vmatprep.mubr.f32.mxu0 0.0
    %442 = vmatmul.mubr.f32.gmra.mrb[0].mxu0 %v175
    %v443 = vpop.f32.mrb[0].mxu0
    %v444 = vpop.f32.mrb[0].mxu0
    %445 = vmatprep.mubr.f32.mxu0 0.0
    %446 = vmatmul.mubr.f32.gmra.mrb[0].mxu0 %v178
    %v447 = vpop.f32.mrb[0].mxu0
    %v448 = vpop.f32.mrb[0].mxu0
    %449 = vmatprep.mubr.f32.mxu0 0.0
    %450 = vmatmul.mubr.f32.gmra.mrb[0].mxu0 %v181
    %v451 = vpop.f32.mrb[0].mxu0
    %v452 = vpop.f32.mrb[0].mxu0
    %453 = vmatprep.mubr.f32.mxu0 0.0
    %454 = vmatmul.mubr.f32.gmra.mrb[0].mxu0 %v184
    %v455 = vpop.f32.mrb[0].mxu0
    %v456 = vpop.f32.mrb[0].mxu0
    %457 = vmatprep.mubr.f32.mxu0 0.0
    %458 = vmatmul.mubr.f32.gmra.mrb[0].mxu0 %v187
    %v459 = vpop.f32.mrb[0].mxu0
    %v460 = vpop.f32.mrb[0].mxu0
    %461 = vmatprep.mubr.f32.mxu0 0.0
    %462 = vmatmul.mubr.f32.gmra.mrb[0].mxu0 %v190
    %v463 = vpop.f32.mrb[0].mxu0
    %v464 = vpop.f32.mrb[0].mxu0
    %465 = vmatprep.mubr.f32.mxu0 0.0
    %466 = vmatmul.mubr.f32.gmra.mrb[0].mxu0 %v193
    %v467 = vpop.f32.mrb[0].mxu0
    %v468 = vpop.f32.mrb[0].mxu0
    %469 = vmatprep.mubr.f32.mxu0 0.0
    %470 = vmatmul.mubr.f32.gmra.mrb[0].mxu0 %v196
    %v471 = vpop.f32.mrb[0].mxu0
    %v472 = vpop.f32.mrb[0].mxu0
    %473 = vmatprep.mubr.f32.mxu0 0.0
    %474 = vmatmul.mubr.f32.gmra.mrb[0].mxu0 %v199
    %v475 = vpop.f32.mrb[0].mxu0
    %v476 = vpop.f32.mrb[0].mxu0
    %477 = vmatprep.mubr.f32.mxu0 0.0
    %478 = vmatmul.mubr.f32.gmra.mrb[0].mxu0 %v202
    %v479 = vpop.f32.mrb[0].mxu0
    %v480 = vpop.f32.mrb[0].mxu0
    %481 = vmatprep.mubr.f32.mxu0 0.0
    %482 = vmatmul.mubr.f32.gmra.mrb[0].mxu0 %v205
    %v483 = vpop.f32.mrb[0].mxu0
    %v484 = vpop.f32.mrb[0].mxu0
    %485 = vmatprep.mubr.f32.mxu0 0.0
    %486 = vmatmul.mubr.f32.gmra.mrb[0].mxu0 %v208
    %v487 = vpop.f32.mrb[0].mxu0
    %v488 = vpop.f32.mrb[0].mxu0
    %489 = vmatprep.mubr.f32.mxu0 0.0
    %490 = vmatmul.mubr.f32.gmra.mrb[0].mxu0 %v211
    %v491 = vpop.f32.mrb[0].mxu0
    %v492 = vpop.f32.mrb[0].mxu0
    %493 = vdwg.mxu0
    %v494 = vadd.f32 %v340, %v280
    %v495 = vadd.f32 %v345, %v285
    %v496 = vadd.f32 %v350, %v290
    %v497 = vadd.f32 %v355, %v295
    %v498 = vxor.u32 %v494, 2147483648
    %v499 = vxor.u32 %v495, 2147483648
    %v500 = vxor.u32 %v496, 2147483648
    %v501 = vxor.u32 %v497, 2147483648
    %v502 = vmul.f32 %v498, 1.442695
    %v503 = vpow.pop %v502
    %v504 = vmul.f32 %v499, 1.442695
    %v505 = vpow.pop %v504
    %v506 = vmul.f32 %v500, 1.442695
    %v507 = vpow.pop %v506
    %v508 = vmul.f32 %v501, 1.442695
    %v509 = vpow.pop %v508
    %v510 = vadd.f32 %v503, 1.0
    %v511 = vadd.f32 %v505, 1.0
    %v512 = vadd.f32 %v507, 1.0
    %v513 = vadd.f32 %v509, 1.0
    %v514 = vrcp.pop %v510
    %v515 = vmul.f32 1.0, %v514
    %v516 = vrcp.pop %v511
    %v517 = vmul.f32 1.0, %v516
    %v518 = vrcp.pop %v512
    %v519 = vmul.f32 1.0, %v518
    %v520 = vrcp.pop %v513
    %v521 = vmul.f32 1.0, %v520
    %v522 = vadd.f32 %v360, %v300
    %v523 = vadd.f32 %v365, %v305
    %v524 = vadd.f32 %v370, %v310
    %v525 = vadd.f32 %v375, %v315
    %v526 = vxor.u32 %v522, 2147483648
    %v527 = vxor.u32 %v523, 2147483648
    %v528 = vxor.u32 %v524, 2147483648
    %v529 = vxor.u32 %v525, 2147483648
    %v530 = vmul.f32 %v526, 1.442695
    %v531 = vpow.pop %v530
    %v532 = vmul.f32 %v527, 1.442695
    %v533 = vpow.pop %v532
    %v534 = vmul.f32 %v528, 1.442695
    %v535 = vpow.pop %v534
    %v536 = vmul.f32 %v529, 1.442695
    %v537 = vpow.pop %v536
    %v538 = vadd.f32 %v531, 1.0
    %v539 = vadd.f32 %v533, 1.0
    %v540 = vadd.f32 %v535, 1.0
    %v541 = vadd.f32 %v537, 1.0
    %v542 = vrcp.pop %v538
    %v543 = vmul.f32 1.0, %v542
    %v544 = vrcp.pop %v539
    %v545 = vmul.f32 1.0, %v544
    %v546 = vrcp.pop %v540
    %v547 = vmul.f32 1.0, %v546
    %v548 = vrcp.pop %v541
    %v549 = vmul.f32 1.0, %v548
    %v550 = vmul.f32 %v515, %v320
    %v551 = vmul.f32 %v517, %v325
    %v552 = vmul.f32 %v519, %v330
    %v553 = vmul.f32 %v521, %v335
    %v554 = vadd.f32 %v380, %v550
    %v555 = vadd.f32 %v385, %v551
    %v556 = vadd.f32 %v390, %v552
    %v557 = vadd.f32 %v395, %v553
    %v558 = vtanh.pop %v554
    %v559 = vtanh.pop %v555
    %v560 = vtanh.pop %v556
    %v561 = vtanh.pop %v557
    %v562 = vsub.f32 1.0, %v543
    %v563 = vsub.f32 1.0, %v545
    %v564 = vsub.f32 1.0, %v547
    %v565 = vsub.f32 1.0, %v549
    %v566 = vmul.f32 %v562, %v558
    %v567 = vmul.f32 %v563, %v559
    %v568 = vmul.f32 %v564, %v560
    %v569 = vmul.f32 %v565, %v561
    %v570 = vmul.f32 %v543, 0.0
    %v571 = vmul.f32 %v545, 0.0
    %v572 = vmul.f32 %v547, 0.0
    %v573 = vmul.f32 %v549, 0.0
    %v574 = vadd.f32 %v566, %v570
    %v575 = vadd.f32 %v567, %v571
    %v576 = vadd.f32 %v568, %v572
    %v577 = vadd.f32 %v569, %v573
    %s578 = scalar_lea.vmem %s0, 16
    %v579 = vld [vmem:[%s578] sm:$0xff]
    %v580 = vld [vmem:[%s578 + $0x8] sm:$0xff]
    %581 = vmatprep.subr.mxu0 0.0
    %582 = vmatpush1.msra.mxu0 %v574
    %583 = vmatprep.subr.mxu0 0.0
    %584 = vmatpush1.msra.mxu0 %v575
    %585 = vmatprep.subr.mxu0 0.0
    %586 = vmatpush1.msra.mxu0 %v576
    %587 = vmatprep.subr.mxu0 0.0
    %588 = vmatpush1.msra.mxu0 %v577
    %589 = vmatprep.subr.mxu0 0.0
    %590 = vmatpush1.msra.mxu0 0.0
    %591 = vmatprep.subr.mxu0 0.0
    %592 = vmatpush1.msra.mxu0 0.0
    %593 = vmatprep.subr.mxu0 0.0
    %594 = vmatpush1.msra.mxu0 0.0
    %595 = vmatprep.subr.mxu0 0.0
    %596 = vmatpush1.msra.mxu0 0.0
    %597 = vmatprep.subr.mxu0 0.0
    %598 = vmatpush1.msra.mxu0 %v579
    %599 = vmatprep.subr.mxu0 0.0
    %600 = vmatpush1.msra.mxu0 %v580
    %601 = vmatprep.subr.mxu0 0.0
    %602 = vmatpush1.msra.mxu0 0.0
    %603 = vmatprep.subr.mxu0 0.0
    %604 = vmatpush1.msra.mxu0 0.0
    %605 = vmatprep.subr.mxu0 0.0
    %606 = vmatpush1.msra.mxu0 0.0
    %607 = vmatprep.subr.mxu0 0.0
    %608 = vmatpush1.msra.mxu0 0.0
    %609 = vmatprep.subr.mxu0 0.0
    %610 = vmatpush1.msra.mxu0 0.0
    %611 = vmatprep.subr.mxu0 0.0
    %612 = vmatpush1.msra.mxu0 0.0
    %613 = vmatprep.subr.mxu0 0.0
    %614 = vmatpush1.msra.mxu0 0.0
    %615 = vmatprep.subr.mxu0 0.0
    %616 = vmatpush1.msra.mxu0 0.0
    %617 = vmatprep.subr.mxu0 0.0
    %618 = vmatpush1.msra.mxu0 0.0
    %619 = vmatprep.subr.mxu0 0.0
    %620 = vmatpush1.msra.mxu0 0.0
    %621 = vmatprep.subr.mxu0 0.0
    %622 = vmatpush1.msra.mxu0 0.0
    %623 = vmatprep.subr.mxu0 0.0
    %624 = vmatpush1.msra.mxu0 0.0
    %625 = vmatprep.subr.mxu0 0.0
    %626 = vmatpush1.msra.mxu0 0.0
    %627 = vmatprep.subr.mxu0 0.0
    %628 = vmatpush1.msra.mxu0 0.0
    %629 = vmatprep.subr.mxu0 0.0
    %630 = vmatpush1.msra.mxu0 0.0
    %631 = vmatprep.subr.mxu0 0.0
    %632 = vmatpush1.msra.mxu0 0.0
    %633 = vmatprep.subr.mxu0 0.0
    %634 = vmatpush1.msra.mxu0 0.0
    %635 = vmatprep.subr.mxu0 0.0
    %636 = vmatpush1.msra.mxu0 0.0
    %637 = vmatprep.subr.mxu0 0.0
    %638 = vmatpush1.msra.mxu0 0.0
    %639 = vmatprep.subr.mxu0 0.0
    %640 = vmatpush1.msra.mxu0 0.0
    %641 = vmatprep.subr.mxu0 0.0
    %642 = vmatpush1.msra.mxu0 0.0
    %643 = vmatprep.subr.mxu0 0.0
    %644 = vmatpush1.msra.mxu0 0.0
    %645 = vmatprep.mubr.f32.mxu0 0.0
    %646 = vmatmul.mubr.f32.gmra.mrb[0].mxu0 %v70
    %v647 = vpop.f32.mrb[0].mxu0
    %v648 = vadd.f32 0.0, %v647
    %v649 = vpop.f32.mrb[0].mxu0
    %650 = vmatprep.mubr.f32.mxu0 0.0
    %651 = vmatmul.mubr.f32.gmra.mrb[0].mxu0 %v73
    %v652 = vpop.f32.mrb[0].mxu0
    %v653 = vadd.f32 0.0, %v652
    %v654 = vpop.f32.mrb[0].mxu0
    %655 = vmatprep.mubr.f32.mxu0 0.0
    %656 = vmatmul.mubr.f32.gmra.mrb[0].mxu0 %v76
    %v657 = vpop.f32.mrb[0].mxu0
    %v658 = vadd.f32 0.0, %v657
    %v659 = vpop.f32.mrb[0].mxu0
    %660 = vmatprep.mubr.f32.mxu0 0.0
    %661 = vmatmul.mubr.f32.gmra.mrb[0].mxu0 %v79
    %v662 = vpop.f32.mrb[0].mxu0
    %v663 = vadd.f32 0.0, %v662
    %v664 = vpop.f32.mrb[0].mxu0
    %665 = vmatprep.mubr.f32.mxu0 0.0
    %666 = vmatmul.mubr.f32.gmra.mrb[0].mxu0 %v82
    %v667 = vpop.f32.mrb[0].mxu0
    %v668 = vadd.f32 0.0, %v667
    %v669 = vpop.f32.mrb[0].mxu0
    %670 = vmatprep.mubr.f32.mxu0 0.0
    %671 = vmatmul.mubr.f32.gmra.mrb[0].mxu0 %v85
    %v672 = vpop.f32.mrb[0].mxu0
    %v673 = vadd.f32 0.0, %v672
    %v674 = vpop.f32.mrb[0].mxu0
    %675 = vmatprep.mubr.f32.mxu0 0.0
    %676 = vmatmul.mubr.f32.gmra.mrb[0].mxu0 %v88
    %v677 = vpop.f32.mrb[0].mxu0
    %v678 = vadd.f32 0.0, %v677
    %v679 = vpop.f32.mrb[0].mxu0
    %680 = vmatprep.mubr.f32.mxu0 0.0
    %681 = vmatmul.mubr.f32.gmra.mrb[0].mxu0 %v91
    %v682 = vpop.f32.mrb[0].mxu0
    %v683 = vadd.f32 0.0, %v682
    %v684 = vpop.f32.mrb[0].mxu0
    %685 = vmatprep.mubr.f32.mxu0 0.0
    %686 = vmatmul.mubr.f32.gmra.mrb[0].mxu0 %v94
    %v687 = vpop.f32.mrb[0].mxu0
    %v688 = vadd.f32 0.0, %v687
    %v689 = vpop.f32.mrb[0].mxu0
    %690 = vmatprep.mubr.f32.mxu0 0.0
    %691 = vmatmul.mubr.f32.gmra.mrb[0].mxu0 %v97
    %v692 = vpop.f32.mrb[0].mxu0
    %v693 = vadd.f32 0.0, %v692
    %v694 = vpop.f32.mrb[0].mxu0
    %695 = vmatprep.mubr.f32.mxu0 0.0
    %696 = vmatmul.mubr.f32.gmra.mrb[0].mxu0 %v100
    %v697 = vpop.f32.mrb[0].mxu0
    %v698 = vadd.f32 0.0, %v697
    %v699 = vpop.f32.mrb[0].mxu0
    %700 = vmatprep.mubr.f32.mxu0 0.0
    %701 = vmatmul.mubr.f32.gmra.mrb[0].mxu0 %v103
    %v702 = vpop.f32.mrb[0].mxu0
    %v703 = vadd.f32 0.0, %v702
    %v704 = vpop.f32.mrb[0].mxu0
    %705 = vmatprep.mubr.f32.mxu0 0.0
    %706 = vmatmul.mubr.f32.gmra.mrb[0].mxu0 %v106
    %v707 = vpop.f32.mrb[0].mxu0
    %v708 = vadd.f32 0.0, %v707
    %v709 = vpop.f32.mrb[0].mxu0
    %710 = vmatprep.mubr.f32.mxu0 0.0
    %711 = vmatmul.mubr.f32.gmra.mrb[0].mxu0 %v109
    %v712 = vpop.f32.mrb[0].mxu0
    %v713 = vadd.f32 0.0, %v712
    %v714 = vpop.f32.mrb[0].mxu0
    %715 = vmatprep.mubr.f32.mxu0 0.0
    %716 = vmatmul.mubr.f32.gmra.mrb[0].mxu0 %v112
    %v717 = vpop.f32.mrb[0].mxu0
    %v718 = vadd.f32 0.0, %v717
    %v719 = vpop.f32.mrb[0].mxu0
    %720 = vmatprep.mubr.f32.mxu0 0.0
    %721 = vmatmul.mubr.f32.gmra.mrb[0].mxu0 %v115
    %v722 = vpop.f32.mrb[0].mxu0
    %v723 = vadd.f32 0.0, %v722
    %v724 = vpop.f32.mrb[0].mxu0
    %725 = vmatprep.mubr.f32.mxu0 0.0
    %726 = vmatmul.mubr.f32.gmra.mrb[0].mxu0 %v118
    %v727 = vpop.f32.mrb[0].mxu0
    %v728 = vadd.f32 0.0, %v727
    %v729 = vpop.f32.mrb[0].mxu0
    %730 = vmatprep.mubr.f32.mxu0 0.0
    %731 = vmatmul.mubr.f32.gmra.mrb[0].mxu0 %v121
    %v732 = vpop.f32.mrb[0].mxu0
    %v733 = vadd.f32 0.0, %v732
    %v734 = vpop.f32.mrb[0].mxu0
    %735 = vmatprep.mubr.f32.mxu0 0.0
    %736 = vmatmul.mubr.f32.gmra.mrb[0].mxu0 %v124
    %v737 = vpop.f32.mrb[0].mxu0
    %v738 = vadd.f32 0.0, %v737
    %v739 = vpop.f32.mrb[0].mxu0
    %740 = vmatprep.mubr.f32.mxu0 0.0
    %741 = vmatmul.mubr.f32.gmra.mrb[0].mxu0 %v127
    %v742 = vpop.f32.mrb[0].mxu0
    %v743 = vadd.f32 0.0, %v742
    %v744 = vpop.f32.mrb[0].mxu0
    %745 = vmatprep.mubr.f32.mxu0 0.0
    %746 = vmatmul.mubr.f32.gmra.mrb[0].mxu0 %v130
    %v747 = vpop.f32.mrb[0].mxu0
    %v748 = vadd.f32 0.0, %v747
    %v749 = vpop.f32.mrb[0].mxu0
    %750 = vmatprep.mubr.f32.mxu0 0.0
    %751 = vmatmul.mubr.f32.gmra.mrb[0].mxu0 %v133
    %v752 = vpop.f32.mrb[0].mxu0
    %v753 = vadd.f32 0.0, %v752
    %v754 = vpop.f32.mrb[0].mxu0
    %755 = vmatprep.mubr.f32.mxu0 0.0
    %756 = vmatmul.mubr.f32.gmra.mrb[0].mxu0 %v136
    %v757 = vpop.f32.mrb[0].mxu0
    %v758 = vadd.f32 0.0, %v757
    %v759 = vpop.f32.mrb[0].mxu0
    %760 = vmatprep.mubr.f32.mxu0 0.0
    %761 = vmatmul.mubr.f32.gmra.mrb[0].mxu0 %v139
    %v762 = vpop.f32.mrb[0].mxu0
    %v763 = vadd.f32 0.0, %v762
    %v764 = vpop.f32.mrb[0].mxu0
    %765 = vmatprep.mubr.f32.mxu0 0.0
    %766 = vmatmul.mubr.f32.gmra.mrb[0].mxu0 %v142
    %v767 = vpop.f32.mrb[0].mxu0
    %v768 = vadd.f32 0.0, %v767
    %v769 = vpop.f32.mrb[0].mxu0
    %770 = vmatprep.mubr.f32.mxu0 0.0
    %771 = vmatmul.mubr.f32.gmra.mrb[0].mxu0 %v145
    %v772 = vpop.f32.mrb[0].mxu0
    %v773 = vadd.f32 0.0, %v772
    %v774 = vpop.f32.mrb[0].mxu0
    %775 = vmatprep.mubr.f32.mxu0 0.0
    %776 = vmatmul.mubr.f32.gmra.mrb[0].mxu0 %v148
    %v777 = vpop.f32.mrb[0].mxu0
    %v778 = vadd.f32 0.0, %v777
    %v779 = vpop.f32.mrb[0].mxu0
    %780 = vmatprep.mubr.f32.mxu0 0.0
    %781 = vmatmul.mubr.f32.gmra.mrb[0].mxu0 %v151
    %v782 = vpop.f32.mrb[0].mxu0
    %v783 = vadd.f32 0.0, %v782
    %v784 = vpop.f32.mrb[0].mxu0
    %785 = vmatprep.mubr.f32.mxu0 0.0
    %786 = vmatmul.mubr.f32.gmra.mrb[0].mxu0 %v154
    %v787 = vpop.f32.mrb[0].mxu0
    %v788 = vadd.f32 0.0, %v787
    %v789 = vpop.f32.mrb[0].mxu0
    %790 = vmatprep.mubr.f32.mxu0 0.0
    %791 = vmatmul.mubr.f32.gmra.mrb[0].mxu0 %v157
    %v792 = vpop.f32.mrb[0].mxu0
    %v793 = vadd.f32 0.0, %v792
    %v794 = vpop.f32.mrb[0].mxu0
    %795 = vmatprep.mubr.f32.mxu0 0.0
    %796 = vmatmul.mubr.f32.gmra.mrb[0].mxu0 %v160
    %v797 = vpop.f32.mrb[0].mxu0
    %v798 = vadd.f32 0.0, %v797
    %v799 = vpop.f32.mrb[0].mxu0
    %800 = vmatprep.mubr.f32.mxu0 0.0
    %801 = vmatmul.mubr.f32.gmra.mrb[0].mxu0 %v163
    %v802 = vpop.f32.mrb[0].mxu0
    %v803 = vadd.f32 0.0, %v802
    %v804 = vpop.f32.mrb[0].mxu0
    %805 = vmatprep.mubr.f32.mxu0 0.0
    %806 = vmatmul.mubr.f32.gmra.mrb[0].mxu0 %v166
    %v807 = vpop.f32.mrb[0].mxu0
    %v808 = vadd.f32 0.0, %v807
    %v809 = vpop.f32.mrb[0].mxu0
    %810 = vmatprep.mubr.f32.mxu0 0.0
    %811 = vmatmul.mubr.f32.gmra.mrb[0].mxu0 %v169
    %v812 = vpop.f32.mrb[0].mxu0
    %v813 = vadd.f32 0.0, %v812
    %v814 = vpop.f32.mrb[0].mxu0
    %815 = vmatprep.mubr.f32.mxu0 0.0
    %816 = vmatmul.mubr.f32.gmra.mrb[0].mxu0 %v172
    %v817 = vpop.f32.mrb[0].mxu0
    %v818 = vadd.f32 0.0, %v817
    %v819 = vpop.f32.mrb[0].mxu0
    %820 = vmatprep.mubr.f32.mxu0 0.0
    %821 = vmatmul.mubr.f32.gmra.mrb[0].mxu0 %v175
    %v822 = vpop.f32.mrb[0].mxu0
    %v823 = vadd.f32 0.0, %v822
    %v824 = vpop.f32.mrb[0].mxu0
    %825 = vmatprep.mubr.f32.mxu0 0.0
    %826 = vmatmul.mubr.f32.gmra.mrb[0].mxu0 %v178
    %v827 = vpop.f32.mrb[0].mxu0
    %v828 = vadd.f32 0.0, %v827
    %v829 = vpop.f32.mrb[0].mxu0
    %830 = vmatprep.mubr.f32.mxu0 0.0
    %831 = vmatmul.mubr.f32.gmra.mrb[0].mxu0 %v181
    %v832 = vpop.f32.mrb[0].mxu0
    %v833 = vadd.f32 0.0, %v832
    %v834 = vpop.f32.mrb[0].mxu0
    %835 = vmatprep.mubr.f32.mxu0 0.0
    %836 = vmatmul.mubr.f32.gmra.mrb[0].mxu0 %v184
    %v837 = vpop.f32.mrb[0].mxu0
    %v838 = vadd.f32 0.0, %v837
    %v839 = vpop.f32.mrb[0].mxu0
    %840 = vmatprep.mubr.f32.mxu0 0.0
    %841 = vmatmul.mubr.f32.gmra.mrb[0].mxu0 %v187
    %v842 = vpop.f32.mrb[0].mxu0
    %v843 = vadd.f32 0.0, %v842
    %v844 = vpop.f32.mrb[0].mxu0
    %845 = vmatprep.mubr.f32.mxu0 0.0
    %846 = vmatmul.mubr.f32.gmra.mrb[0].mxu0 %v190
    %v847 = vpop.f32.mrb[0].mxu0
    %v848 = vadd.f32 0.0, %v847
    %v849 = vpop.f32.mrb[0].mxu0
    %850 = vmatprep.mubr.f32.mxu0 0.0
    %851 = vmatmul.mubr.f32.gmra.mrb[0].mxu0 %v193
    %v852 = vpop.f32.mrb[0].mxu0
    %v853 = vadd.f32 0.0, %v852
    %v854 = vpop.f32.mrb[0].mxu0
    %855 = vmatprep.mubr.f32.mxu0 0.0
    %856 = vmatmul.mubr.f32.gmra.mrb[0].mxu0 %v196
    %v857 = vpop.f32.mrb[0].mxu0
    %v858 = vadd.f32 0.0, %v857
    %v859 = vpop.f32.mrb[0].mxu0
    %860 = vmatprep.mubr.f32.mxu0 0.0
    %861 = vmatmul.mubr.f32.gmra.mrb[0].mxu0 %v199
    %v862 = vpop.f32.mrb[0].mxu0
    %v863 = vadd.f32 0.0, %v862
    %v864 = vpop.f32.mrb[0].mxu0
    %865 = vmatprep.mubr.f32.mxu0 0.0
    %866 = vmatmul.mubr.f32.gmra.mrb[0].mxu0 %v202
    %v867 = vpop.f32.mrb[0].mxu0
    %v868 = vadd.f32 0.0, %v867
    %v869 = vpop.f32.mrb[0].mxu0
    %870 = vmatprep.mubr.f32.mxu0 0.0
    %871 = vmatmul.mubr.f32.gmra.mrb[0].mxu0 %v205
    %v872 = vpop.f32.mrb[0].mxu0
    %v873 = vadd.f32 0.0, %v872
    %v874 = vpop.f32.mrb[0].mxu0
    %875 = vmatprep.mubr.f32.mxu0 0.0
    %876 = vmatmul.mubr.f32.gmra.mrb[0].mxu0 %v208
    %v877 = vpop.f32.mrb[0].mxu0
    %v878 = vadd.f32 0.0, %v877
    %v879 = vpop.f32.mrb[0].mxu0
    %880 = vmatprep.mubr.f32.mxu0 0.0
    %881 = vmatmul.mubr.f32.gmra.mrb[0].mxu0 %v211
    %v882 = vpop.f32.mrb[0].mxu0
    %v883 = vadd.f32 0.0, %v882
    %v884 = vpop.f32.mrb[0].mxu0
    %885 = vdwg.mxu0
    %v886 = vadd.f32 %v708, %v648
    %v887 = vadd.f32 %v713, %v653
    %v888 = vadd.f32 %v718, %v658
    %v889 = vadd.f32 %v723, %v663
    %v890 = vxor.u32 %v886, 2147483648
    %v891 = vxor.u32 %v887, 2147483648
    %v892 = vxor.u32 %v888, 2147483648
    %v893 = vxor.u32 %v889, 2147483648
    %v894 = vmul.f32 %v890, 1.442695
    %v895 = vpow.pop %v894
    %v896 = vmul.f32 %v891, 1.442695
    %v897 = vpow.pop %v896
    %v898 = vmul.f32 %v892, 1.442695
    %v899 = vpow.pop %v898
    %v900 = vmul.f32 %v893, 1.442695
    %v901 = vpow.pop %v900
    %v902 = vadd.f32 %v895, 1.0
    %v903 = vadd.f32 %v897, 1.0
    %v904 = vadd.f32 %v899, 1.0
    %v905 = vadd.f32 %v901, 1.0
    %v906 = vrcp.pop %v902
    %v907 = vmul.f32 1.0, %v906
    %v908 = vrcp.pop %v903
    %v909 = vmul.f32 1.0, %v908
    %v910 = vrcp.pop %v904
    %v911 = vmul.f32 1.0, %v910
    %v912 = vrcp.pop %v905
    %v913 = vmul.f32 1.0, %v912
    %v914 = vadd.f32 %v728, %v668
    %v915 = vadd.f32 %v733, %v673
    %v916 = vadd.f32 %v738, %v678
    %v917 = vadd.f32 %v743, %v683
    %v918 = vxor.u32 %v914, 2147483648
    %v919 = vxor.u32 %v915, 2147483648
    %v920 = vxor.u32 %v916, 2147483648
    %v921 = vxor.u32 %v917, 2147483648
    %v922 = vmul.f32 %v918, 1.442695
    %v923 = vpow.pop %v922
    %v924 = vmul.f32 %v919, 1.442695
    %v925 = vpow.pop %v924
    %v926 = vmul.f32 %v920, 1.442695
    %v927 = vpow.pop %v926
    %v928 = vmul.f32 %v921, 1.442695
    %v929 = vpow.pop %v928
    %v930 = vadd.f32 %v923, 1.0
    %v931 = vadd.f32 %v925, 1.0
    %v932 = vadd.f32 %v927, 1.0
    %v933 = vadd.f32 %v929, 1.0
    %v934 = vrcp.pop %v930
    %v935 = vmul.f32 1.0, %v934
    %v936 = vrcp.pop %v931
    %v937 = vmul.f32 1.0, %v936
    %v938 = vrcp.pop %v932
    %v939 = vmul.f32 1.0, %v938
    %v940 = vrcp.pop %v933
    %v941 = vmul.f32 1.0, %v940
    %v942 = vmul.f32 %v907, %v688
    %v943 = vmul.f32 %v909, %v693
    %v944 = vmul.f32 %v911, %v698
    %v945 = vmul.f32 %v913, %v703
    %v946 = vadd.f32 %v748, %v942
    %v947 = vadd.f32 %v753, %v943
    %v948 = vadd.f32 %v758, %v944
    %v949 = vadd.f32 %v763, %v945
    %v950 = vtanh.pop %v946
    %v951 = vtanh.pop %v947
    %v952 = vtanh.pop %v948
    %v953 = vtanh.pop %v949
    %v954 = vsub.f32 1.0, %v935
    %v955 = vsub.f32 1.0, %v937
    %v956 = vsub.f32 1.0, %v939
    %v957 = vsub.f32 1.0, %v941
    %v958 = vmul.f32 %v954, %v950
    %v959 = vmul.f32 %v955, %v951
    %v960 = vmul.f32 %v956, %v952
    %v961 = vmul.f32 %v957, %v953
    %v962 = vmul.f32 %v935, %v574
    %v963 = vmul.f32 %v937, %v575
    %v964 = vmul.f32 %v939, %v576
    %v965 = vmul.f32 %v941, %v577
    %v966 = vadd.f32 %v958, %v962
    %v967 = vadd.f32 %v959, %v963
    %v968 = vadd.f32 %v960, %v964
    %v969 = vadd.f32 %v961, %v965
    %v970 = vadd.f32 %v828, %v768
    %v971 = vadd.f32 %v833, %v773
    %v972 = vadd.f32 %v838, %v778
    %v973 = vadd.f32 %v843, %v783
    %v974 = vxor.u32 %v970, 2147483648
    %v975 = vxor.u32 %v971, 2147483648
    %v976 = vxor.u32 %v972, 2147483648
    %v977 = vxor.u32 %v973, 2147483648
    %v978 = vmul.f32 %v974, 1.442695
    %v979 = vpow.pop %v978
    %v980 = vmul.f32 %v975, 1.442695
    %v981 = vpow.pop %v980
    %v982 = vmul.f32 %v976, 1.442695
    %v983 = vpow.pop %v982
    %v984 = vmul.f32 %v977, 1.442695
    %v985 = vpow.pop %v984
    %v986 = vadd.f32 %v979, 1.0
    %v987 = vadd.f32 %v981, 1.0
    %v988 = vadd.f32 %v983, 1.0
    %v989 = vadd.f32 %v985, 1.0
    %v990 = vrcp.pop %v986
    %v991 = vmul.f32 1.0, %v990
    %v992 = vrcp.pop %v987
    %v993 = vmul.f32 1.0, %v992
    %v994 = vrcp.pop %v988
    %v995 = vmul.f32 1.0, %v994
    %v996 = vrcp.pop %v989
    %v997 = vmul.f32 1.0, %v996
    %v998 = vadd.f32 %v848, %v788
    %v999 = vadd.f32 %v853, %v793
    %v1000 = vadd.f32 %v858, %v798
    %v1001 = vadd.f32 %v863, %v803
    %v1002 = vxor.u32 %v998, 2147483648
    %v1003 = vxor.u32 %v999, 2147483648
    %v1004 = vxor.u32 %v1000, 2147483648
    %v1005 = vxor.u32 %v1001, 2147483648
    %v1006 = vmul.f32 %v1002, 1.442695
    %v1007 = vpow.pop %v1006
    %v1008 = vmul.f32 %v1003, 1.442695
    %v1009 = vpow.pop %v1008
    %v1010 = vmul.f32 %v1004, 1.442695
    %v1011 = vpow.pop %v1010
    %v1012 = vmul.f32 %v1005, 1.442695
    %v1013 = vpow.pop %v1012
    %v1014 = vadd.f32 %v1007, 1.0
    %v1015 = vadd.f32 %v1009, 1.0
    %v1016 = vadd.f32 %v1011, 1.0
    %v1017 = vadd.f32 %v1013, 1.0
    %v1018 = vrcp.pop %v1014
    %v1019 = vmul.f32 1.0, %v1018
    %v1020 = vrcp.pop %v1015
    %v1021 = vmul.f32 1.0, %v1020
    %v1022 = vrcp.pop %v1016
    %v1023 = vmul.f32 1.0, %v1022
    %v1024 = vrcp.pop %v1017
    %v1025 = vmul.f32 1.0, %v1024
    %v1026 = vmul.f32 %v991, %v808
    %v1027 = vmul.f32 %v993, %v813
    %v1028 = vmul.f32 %v995, %v818
    %v1029 = vmul.f32 %v997, %v823
    %v1030 = vadd.f32 %v868, %v1026
    %v1031 = vadd.f32 %v873, %v1027
    %v1032 = vadd.f32 %v878, %v1028
    %v1033 = vadd.f32 %v883, %v1029
    %v1034 = vtanh.pop %v1030
    %v1035 = vtanh.pop %v1031
    %v1036 = vtanh.pop %v1032
    %v1037 = vtanh.pop %v1033
    %v1038 = vsub.f32 1.0, %v1019
    %v1039 = vsub.f32 1.0, %v1021
    %v1040 = vsub.f32 1.0, %v1023
    %v1041 = vsub.f32 1.0, %v1025
    %v1042 = vmul.f32 %v1038, %v1034
    %v1043 = vmul.f32 %v1039, %v1035
    %v1044 = vmul.f32 %v1040, %v1036
    %v1045 = vmul.f32 %v1041, %v1037
    %v1046 = vmul.f32 %v1019, 0.0
    %v1047 = vmul.f32 %v1021, 0.0
    %v1048 = vmul.f32 %v1023, 0.0
    %v1049 = vmul.f32 %v1025, 0.0
    %v1050 = vadd.f32 %v1042, %v1046
    %v1051 = vadd.f32 %v1043, %v1047
    %v1052 = vadd.f32 %v1044, %v1048
    %v1053 = vadd.f32 %v1045, %v1049
    %s1054 = scalar_lea.vmem %s0, 32
    %v1055 = vld [vmem:[%s1054] sm:$0xff]
    %v1056 = vld [vmem:[%s1054 + $0x8] sm:$0xff]
    %1057 = vmatprep.subr.mxu0 0.0
    %1058 = vmatpush1.msra.mxu0 %v966
    %1059 = vmatprep.subr.mxu0 0.0
    %1060 = vmatpush1.msra.mxu0 %v967
    %1061 = vmatprep.subr.mxu0 0.0
    %1062 = vmatpush1.msra.mxu0 %v968
    %1063 = vmatprep.subr.mxu0 0.0
    %1064 = vmatpush1.msra.mxu0 %v969
    %1065 = vmatprep.subr.mxu0 0.0
    %1066 = vmatpush1.msra.mxu0 %v1050
    %1067 = vmatprep.subr.mxu0 0.0
    %1068 = vmatpush1.msra.mxu0 %v1051
    %1069 = vmatprep.subr.mxu0 0.0
    %1070 = vmatpush1.msra.mxu0 %v1052
    %1071 = vmatprep.subr.mxu0 0.0
    %1072 = vmatpush1.msra.mxu0 %v1053
    %1073 = vmatprep.subr.mxu0 0.0
    %1074 = vmatpush1.msra.mxu0 %v1055
    %1075 = vmatprep.subr.mxu0 0.0
    %1076 = vmatpush1.msra.mxu0 %v1056
    %1077 = vmatprep.subr.mxu0 0.0
    %1078 = vmatpush1.msra.mxu0 0.0
    %1079 = vmatprep.subr.mxu0 0.0
    %1080 = vmatpush1.msra.mxu0 0.0
    %1081 = vmatprep.subr.mxu0 0.0
    %1082 = vmatpush1.msra.mxu0 0.0
    %1083 = vmatprep.subr.mxu0 0.0
    %1084 = vmatpush1.msra.mxu0 0.0
    %1085 = vmatprep.subr.mxu0 0.0
    %1086 = vmatpush1.msra.mxu0 0.0
    %1087 = vmatprep.subr.mxu0 0.0
    %1088 = vmatpush1.msra.mxu0 0.0
    %1089 = vmatprep.subr.mxu0 0.0
    %1090 = vmatpush1.msra.mxu0 0.0
    %1091 = vmatprep.subr.mxu0 0.0
    %1092 = vmatpush1.msra.mxu0 0.0
    %1093 = vmatprep.subr.mxu0 0.0
    %1094 = vmatpush1.msra.mxu0 0.0
    %1095 = vmatprep.subr.mxu0 0.0
    %1096 = vmatpush1.msra.mxu0 0.0
    %1097 = vmatprep.subr.mxu0 0.0
    %1098 = vmatpush1.msra.mxu0 0.0
    %1099 = vmatprep.subr.mxu0 0.0
    %1100 = vmatpush1.msra.mxu0 0.0
    %1101 = vmatprep.subr.mxu0 0.0
    %1102 = vmatpush1.msra.mxu0 0.0
    %1103 = vmatprep.subr.mxu0 0.0
    %1104 = vmatpush1.msra.mxu0 0.0
    %1105 = vmatprep.subr.mxu0 0.0
    %1106 = vmatpush1.msra.mxu0 0.0
    %1107 = vmatprep.subr.mxu0 0.0
    %1108 = vmatpush1.msra.mxu0 0.0
    %1109 = vmatprep.subr.mxu0 0.0
    %1110 = vmatpush1.msra.mxu0 0.0
    %1111 = vmatprep.subr.mxu0 0.0
    %1112 = vmatpush1.msra.mxu0 0.0
    %1113 = vmatprep.subr.mxu0 0.0
    %1114 = vmatpush1.msra.mxu0 0.0
    %1115 = vmatprep.subr.mxu0 0.0
    %1116 = vmatpush1.msra.mxu0 0.0
    %1117 = vmatprep.subr.mxu0 0.0
    %1118 = vmatpush1.msra.mxu0 0.0
    %1119 = vmatprep.subr.mxu0 0.0
    %1120 = vmatpush1.msra.mxu0 0.0
    %1121 = vmatprep.mubr.f32.mxu0 0.0
    %1122 = vmatmul.mubr.f32.gmra.mrb[0].mxu0 %v70
    %v1123 = vpop.f32.mrb[0].mxu0
    %v1124 = vadd.f32 0.0, %v1123
    %v1125 = vpop.f32.mrb[0].mxu0
    %1126 = vmatprep.mubr.f32.mxu0 0.0
    %1127 = vmatmul.mubr.f32.gmra.mrb[0].mxu0 %v73
    %v1128 = vpop.f32.mrb[0].mxu0
    %v1129 = vadd.f32 0.0, %v1128
    %v1130 = vpop.f32.mrb[0].mxu0
    %1131 = vmatprep.mubr.f32.mxu0 0.0
    %1132 = vmatmul.mubr.f32.gmra.mrb[0].mxu0 %v76
    %v1133 = vpop.f32.mrb[0].mxu0
    %v1134 = vadd.f32 0.0, %v1133
    %v1135 = vpop.f32.mrb[0].mxu0
    %1136 = vmatprep.mubr.f32.mxu0 0.0
    %1137 = vmatmul.mubr.f32.gmra.mrb[0].mxu0 %v79
    %v1138 = vpop.f32.mrb[0].mxu0
    %v1139 = vadd.f32 0.0, %v1138
    %v1140 = vpop.f32.mrb[0].mxu0
    %1141 = vmatprep.mubr.f32.mxu0 0.0
    %1142 = vmatmul.mubr.f32.gmra.mrb[0].mxu0 %v82
    %v1143 = vpop.f32.mrb[0].mxu0
    %v1144 = vadd.f32 0.0, %v1143
    %v1145 = vpop.f32.mrb[0].mxu0
    %1146 = vmatprep.mubr.f32.mxu0 0.0
    %1147 = vmatmul.mubr.f32.gmra.mrb[0].mxu0 %v85
    %v1148 = vpop.f32.mrb[0].mxu0
    %v1149 = vadd.f32 0.0, %v1148
    %v1150 = vpop.f32.mrb[0].mxu0
    %1151 = vmatprep.mubr.f32.mxu0 0.0
    %1152 = vmatmul.mubr.f32.gmra.mrb[0].mxu0 %v88
    %v1153 = vpop.f32.mrb[0].mxu0
    %v1154 = vadd.f32 0.0, %v1153
    %v1155 = vpop.f32.mrb[0].mxu0
    %1156 = vmatprep.mubr.f32.mxu0 0.0
    %1157 = vmatmul.mubr.f32.gmra.mrb[0].mxu0 %v91
    %v1158 = vpop.f32.mrb[0].mxu0
    %v1159 = vadd.f32 0.0, %v1158
    %v1160 = vpop.f32.mrb[0].mxu0
    %1161 = vmatprep.mubr.f32.mxu0 0.0
    %1162 = vmatmul.mubr.f32.gmra.mrb[0].mxu0 %v94
    %v1163 = vpop.f32.mrb[0].mxu0
    %v1164 = vadd.f32 0.0, %v1163
    %v1165 = vpop.f32.mrb[0].mxu0
    %1166 = vmatprep.mubr.f32.mxu0 0.0
    %1167 = vmatmul.mubr.f32.gmra.mrb[0].mxu0 %v97
    %v1168 = vpop.f32.mrb[0].mxu0
    %v1169 = vadd.f32 0.0, %v1168
    %v1170 = vpop.f32.mrb[0].mxu0
    %1171 = vmatprep.mubr.f32.mxu0 0.0
    %1172 = vmatmul.mubr.f32.gmra.mrb[0].mxu0 %v100
    %v1173 = vpop.f32.mrb[0].mxu0
    %v1174 = vadd.f32 0.0, %v1173
    %v1175 = vpop.f32.mrb[0].mxu0
    %1176 = vmatprep.mubr.f32.mxu0 0.0
    %1177 = vmatmul.mubr.f32.gmra.mrb[0].mxu0 %v103
    %v1178 = vpop.f32.mrb[0].mxu0
    %v1179 = vadd.f32 0.0, %v1178
    %v1180 = vpop.f32.mrb[0].mxu0
    %1181 = vmatprep.mubr.f32.mxu0 0.0
    %1182 = vmatmul.mubr.f32.gmra.mrb[0].mxu0 %v106
    %v1183 = vpop.f32.mrb[0].mxu0
    %v1184 = vadd.f32 0.0, %v1183
    %v1185 = vpop.f32.mrb[0].mxu0
    %1186 = vmatprep.mubr.f32.mxu0 0.0
    %1187 = vmatmul.mubr.f32.gmra.mrb[0].mxu0 %v109
    %v1188 = vpop.f32.mrb[0].mxu0
    %v1189 = vadd.f32 0.0, %v1188
    %v1190 = vpop.f32.mrb[0].mxu0
    %1191 = vmatprep.mubr.f32.mxu0 0.0
    %1192 = vmatmul.mubr.f32.gmra.mrb[0].mxu0 %v112
    %v1193 = vpop.f32.mrb[0].mxu0
    %v1194 = vadd.f32 0.0, %v1193
    %v1195 = vpop.f32.mrb[0].mxu0
    %1196 = vmatprep.mubr.f32.mxu0 0.0
    %1197 = vmatmul.mubr.f32.gmra.mrb[0].mxu0 %v115
    %v1198 = vpop.f32.mrb[0].mxu0
    %v1199 = vadd.f32 0.0, %v1198
    %v1200 = vpop.f32.mrb[0].mxu0
    %1201 = vmatprep.mubr.f32.mxu0 0.0
    %1202 = vmatmul.mubr.f32.gmra.mrb[0].mxu0 %v118
    %v1203 = vpop.f32.mrb[0].mxu0
    %v1204 = vadd.f32 0.0, %v1203
    %v1205 = vpop.f32.mrb[0].mxu0
    %1206 = vmatprep.mubr.f32.mxu0 0.0
    %1207 = vmatmul.mubr.f32.gmra.mrb[0].mxu0 %v121
    %v1208 = vpop.f32.mrb[0].mxu0
    %v1209 = vadd.f32 0.0, %v1208
    %v1210 = vpop.f32.mrb[0].mxu0
    %1211 = vmatprep.mubr.f32.mxu0 0.0
    %1212 = vmatmul.mubr.f32.gmra.mrb[0].mxu0 %v124
    %v1213 = vpop.f32.mrb[0].mxu0
    %v1214 = vadd.f32 0.0, %v1213
    %v1215 = vpop.f32.mrb[0].mxu0
    %1216 = vmatprep.mubr.f32.mxu0 0.0
    %1217 = vmatmul.mubr.f32.gmra.mrb[0].mxu0 %v127
    %v1218 = vpop.f32.mrb[0].mxu0
    %v1219 = vadd.f32 0.0, %v1218
    %v1220 = vpop.f32.mrb[0].mxu0
    %1221 = vmatprep.mubr.f32.mxu0 0.0
    %1222 = vmatmul.mubr.f32.gmra.mrb[0].mxu0 %v130
    %v1223 = vpop.f32.mrb[0].mxu0
    %v1224 = vadd.f32 0.0, %v1223
    %v1225 = vpop.f32.mrb[0].mxu0
    %1226 = vmatprep.mubr.f32.mxu0 0.0
    %1227 = vmatmul.mubr.f32.gmra.mrb[0].mxu0 %v133
    %v1228 = vpop.f32.mrb[0].mxu0
    %v1229 = vadd.f32 0.0, %v1228
    %v1230 = vpop.f32.mrb[0].mxu0
    %1231 = vmatprep.mubr.f32.mxu0 0.0
    %1232 = vmatmul.mubr.f32.gmra.mrb[0].mxu0 %v136
    %v1233 = vpop.f32.mrb[0].mxu0
    %v1234 = vadd.f32 0.0, %v1233
    %v1235 = vpop.f32.mrb[0].mxu0
    %1236 = vmatprep.mubr.f32.mxu0 0.0
    %1237 = vmatmul.mubr.f32.gmra.mrb[0].mxu0 %v139
    %v1238 = vpop.f32.mrb[0].mxu0
    %v1239 = vadd.f32 0.0, %v1238
    %v1240 = vpop.f32.mrb[0].mxu0
    %1241 = vmatprep.mubr.f32.mxu0 0.0
    %1242 = vmatmul.mubr.f32.gmra.mrb[0].mxu0 %v142
    %v1243 = vpop.f32.mrb[0].mxu0
    %v1244 = vadd.f32 0.0, %v1243
    %v1245 = vpop.f32.mrb[0].mxu0
    %1246 = vmatprep.mubr.f32.mxu0 0.0
    %1247 = vmatmul.mubr.f32.gmra.mrb[0].mxu0 %v145
    %v1248 = vpop.f32.mrb[0].mxu0
    %v1249 = vadd.f32 0.0, %v1248
    %v1250 = vpop.f32.mrb[0].mxu0
    %1251 = vmatprep.mubr.f32.mxu0 0.0
    %1252 = vmatmul.mubr.f32.gmra.mrb[0].mxu0 %v148
    %v1253 = vpop.f32.mrb[0].mxu0
    %v1254 = vadd.f32 0.0, %v1253
    %v1255 = vpop.f32.mrb[0].mxu0
    %1256 = vmatprep.mubr.f32.mxu0 0.0
    %1257 = vmatmul.mubr.f32.gmra.mrb[0].mxu0 %v151
    %v1258 = vpop.f32.mrb[0].mxu0
    %v1259 = vadd.f32 0.0, %v1258
    %v1260 = vpop.f32.mrb[0].mxu0
    %1261 = vmatprep.mubr.f32.mxu0 0.0
    %1262 = vmatmul.mubr.f32.gmra.mrb[0].mxu0 %v154
    %v1263 = vpop.f32.mrb[0].mxu0
    %v1264 = vadd.f32 0.0, %v1263
    %v1265 = vpop.f32.mrb[0].mxu0
    %1266 = vmatprep.mubr.f32.mxu0 0.0
    %1267 = vmatmul.mubr.f32.gmra.mrb[0].mxu0 %v157
    %v1268 = vpop.f32.mrb[0].mxu0
    %v1269 = vadd.f32 0.0, %v1268
    %v1270 = vpop.f32.mrb[0].mxu0
    %1271 = vmatprep.mubr.f32.mxu0 0.0
    %1272 = vmatmul.mubr.f32.gmra.mrb[0].mxu0 %v160
    %v1273 = vpop.f32.mrb[0].mxu0
    %v1274 = vadd.f32 0.0, %v1273
    %v1275 = vpop.f32.mrb[0].mxu0
    %1276 = vmatprep.mubr.f32.mxu0 0.0
    %1277 = vmatmul.mubr.f32.gmra.mrb[0].mxu0 %v163
    %v1278 = vpop.f32.mrb[0].mxu0
    %v1279 = vadd.f32 0.0, %v1278
    %v1280 = vpop.f32.mrb[0].mxu0
    %1281 = vmatprep.mubr.f32.mxu0 0.0
    %1282 = vmatmul.mubr.f32.gmra.mrb[0].mxu0 %v166
    %v1283 = vpop.f32.mrb[0].mxu0
    %v1284 = vadd.f32 0.0, %v1283
    %v1285 = vpop.f32.mrb[0].mxu0
    %1286 = vmatprep.mubr.f32.mxu0 0.0
    %1287 = vmatmul.mubr.f32.gmra.mrb[0].mxu0 %v169
    %v1288 = vpop.f32.mrb[0].mxu0
    %v1289 = vadd.f32 0.0, %v1288
    %v1290 = vpop.f32.mrb[0].mxu0
    %1291 = vmatprep.mubr.f32.mxu0 0.0
    %1292 = vmatmul.mubr.f32.gmra.mrb[0].mxu0 %v172
    %v1293 = vpop.f32.mrb[0].mxu0
    %v1294 = vadd.f32 0.0, %v1293
    %v1295 = vpop.f32.mrb[0].mxu0
    %1296 = vmatprep.mubr.f32.mxu0 0.0
    %1297 = vmatmul.mubr.f32.gmra.mrb[0].mxu0 %v175
    %v1298 = vpop.f32.mrb[0].mxu0
    %v1299 = vadd.f32 0.0, %v1298
    %v1300 = vpop.f32.mrb[0].mxu0
    %1301 = vmatprep.mubr.f32.mxu0 0.0
    %1302 = vmatmul.mubr.f32.gmra.mrb[0].mxu0 %v178
    %v1303 = vpop.f32.mrb[0].mxu0
    %v1304 = vadd.f32 0.0, %v1303
    %v1305 = vpop.f32.mrb[0].mxu0
    %1306 = vmatprep.mubr.f32.mxu0 0.0
    %1307 = vmatmul.mubr.f32.gmra.mrb[0].mxu0 %v181
    %v1308 = vpop.f32.mrb[0].mxu0
    %v1309 = vadd.f32 0.0, %v1308
    %v1310 = vpop.f32.mrb[0].mxu0
    %1311 = vmatprep.mubr.f32.mxu0 0.0
    %1312 = vmatmul.mubr.f32.gmra.mrb[0].mxu0 %v184
    %v1313 = vpop.f32.mrb[0].mxu0
    %v1314 = vadd.f32 0.0, %v1313
    %v1315 = vpop.f32.mrb[0].mxu0
    %1316 = vmatprep.mubr.f32.mxu0 0.0
    %1317 = vmatmul.mubr.f32.gmra.mrb[0].mxu0 %v187
    %v1318 = vpop.f32.mrb[0].mxu0
    %v1319 = vadd.f32 0.0, %v1318
    %v1320 = vpop.f32.mrb[0].mxu0
    %1321 = vmatprep.mubr.f32.mxu0 0.0
    %1322 = vmatmul.mubr.f32.gmra.mrb[0].mxu0 %v190
    %v1323 = vpop.f32.mrb[0].mxu0
    %v1324 = vadd.f32 0.0, %v1323
    %v1325 = vpop.f32.mrb[0].mxu0
    %1326 = vmatprep.mubr.f32.mxu0 0.0
    %1327 = vmatmul.mubr.f32.gmra.mrb[0].mxu0 %v193
    %v1328 = vpop.f32.mrb[0].mxu0
    %v1329 = vadd.f32 0.0, %v1328
    %v1330 = vpop.f32.mrb[0].mxu0
    %1331 = vmatprep.mubr.f32.mxu0 0.0
    %1332 = vmatmul.mubr.f32.gmra.mrb[0].mxu0 %v196
    %v1333 = vpop.f32.mrb[0].mxu0
    %v1334 = vadd.f32 0.0, %v1333
    %v1335 = vpop.f32.mrb[0].mxu0
    %1336 = vmatprep.mubr.f32.mxu0 0.0
    %1337 = vmatmul.mubr.f32.gmra.mrb[0].mxu0 %v199
    %v1338 = vpop.f32.mrb[0].mxu0
    %v1339 = vadd.f32 0.0, %v1338
    %v1340 = vpop.f32.mrb[0].mxu0
    %1341 = vmatprep.mubr.f32.mxu0 0.0
    %1342 = vmatmul.mubr.f32.gmra.mrb[0].mxu0 %v202
    %v1343 = vpop.f32.mrb[0].mxu0
    %v1344 = vadd.f32 0.0, %v1343
    %v1345 = vpop.f32.mrb[0].mxu0
    %1346 = vmatprep.mubr.f32.mxu0 0.0
    %1347 = vmatmul.mubr.f32.gmra.mrb[0].mxu0 %v205
    %v1348 = vpop.f32.mrb[0].mxu0
    %v1349 = vadd.f32 0.0, %v1348
    %v1350 = vpop.f32.mrb[0].mxu0
    %1351 = vmatprep.mubr.f32.mxu0 0.0
    %1352 = vmatmul.mubr.f32.gmra.mrb[0].mxu0 %v208
    %v1353 = vpop.f32.mrb[0].mxu0
    %v1354 = vadd.f32 0.0, %v1353
    %v1355 = vpop.f32.mrb[0].mxu0
    %1356 = vmatprep.mubr.f32.mxu0 0.0
    %1357 = vmatmul.mubr.f32.gmra.mrb[0].mxu0 %v211
    %v1358 = vpop.f32.mrb[0].mxu0
    %v1359 = vadd.f32 0.0, %v1358
    %v1360 = vpop.f32.mrb[0].mxu0
    %1361 = vdwg.mxu0
    %v1362 = vadd.f32 %v1184, %v1124
    %v1363 = vadd.f32 %v1189, %v1129
    %v1364 = vadd.f32 %v1194, %v1134
    %v1365 = vadd.f32 %v1199, %v1139
    %v1366 = vxor.u32 %v1362, 2147483648
    %v1367 = vxor.u32 %v1363, 2147483648
    %v1368 = vxor.u32 %v1364, 2147483648
    %v1369 = vxor.u32 %v1365, 2147483648
    %v1370 = vmul.f32 %v1366, 1.442695
    %v1371 = vpow.pop %v1370
    %v1372 = vmul.f32 %v1367, 1.442695
    %v1373 = vpow.pop %v1372
    %v1374 = vmul.f32 %v1368, 1.442695
    %v1375 = vpow.pop %v1374
    %v1376 = vmul.f32 %v1369, 1.442695
    %v1377 = vpow.pop %v1376
    %v1378 = vadd.f32 %v1371, 1.0
    %v1379 = vadd.f32 %v1373, 1.0
    %v1380 = vadd.f32 %v1375, 1.0
    %v1381 = vadd.f32 %v1377, 1.0
    %v1382 = vrcp.pop %v1378
    %v1383 = vmul.f32 1.0, %v1382
    %v1384 = vrcp.pop %v1379
    %v1385 = vmul.f32 1.0, %v1384
    %v1386 = vrcp.pop %v1380
    %v1387 = vmul.f32 1.0, %v1386
    %v1388 = vrcp.pop %v1381
    %v1389 = vmul.f32 1.0, %v1388
    %v1390 = vadd.f32 %v1204, %v1144
    %v1391 = vadd.f32 %v1209, %v1149
    %v1392 = vadd.f32 %v1214, %v1154
    %v1393 = vadd.f32 %v1219, %v1159
    %v1394 = vxor.u32 %v1390, 2147483648
    %v1395 = vxor.u32 %v1391, 2147483648
    %v1396 = vxor.u32 %v1392, 2147483648
    %v1397 = vxor.u32 %v1393, 2147483648
    %v1398 = vmul.f32 %v1394, 1.442695
    %v1399 = vpow.pop %v1398
    %v1400 = vmul.f32 %v1395, 1.442695
    %v1401 = vpow.pop %v1400
    %v1402 = vmul.f32 %v1396, 1.442695
    %v1403 = vpow.pop %v1402
    %v1404 = vmul.f32 %v1397, 1.442695
    %v1405 = vpow.pop %v1404
    %v1406 = vadd.f32 %v1399, 1.0
    %v1407 = vadd.f32 %v1401, 1.0
    %v1408 = vadd.f32 %v1403, 1.0
    %v1409 = vadd.f32 %v1405, 1.0
    %v1410 = vrcp.pop %v1406
    %v1411 = vmul.f32 1.0, %v1410
    %v1412 = vrcp.pop %v1407
    %v1413 = vmul.f32 1.0, %v1412
    %v1414 = vrcp.pop %v1408
    %v1415 = vmul.f32 1.0, %v1414
    %v1416 = vrcp.pop %v1409
    %v1417 = vmul.f32 1.0, %v1416
    %v1418 = vmul.f32 %v1383, %v1164
    %v1419 = vmul.f32 %v1385, %v1169
    %v1420 = vmul.f32 %v1387, %v1174
    %v1421 = vmul.f32 %v1389, %v1179
    %v1422 = vadd.f32 %v1224, %v1418
    %v1423 = vadd.f32 %v1229, %v1419
    %v1424 = vadd.f32 %v1234, %v1420
    %v1425 = vadd.f32 %v1239, %v1421
    %v1426 = vtanh.pop %v1422
    %v1427 = vtanh.pop %v1423
    %v1428 = vtanh.pop %v1424
    %v1429 = vtanh.pop %v1425
    %v1430 = vsub.f32 1.0, %v1411
    %v1431 = vsub.f32 1.0, %v1413
    %v1432 = vsub.f32 1.0, %v1415
    %v1433 = vsub.f32 1.0, %v1417
    %v1434 = vmul.f32 %v1430, %v1426
    %v1435 = vmul.f32 %v1431, %v1427
    %v1436 = vmul.f32 %v1432, %v1428
    %v1437 = vmul.f32 %v1433, %v1429
    %v1438 = vmul.f32 %v1411, %v966
    %v1439 = vmul.f32 %v1413, %v967
    %v1440 = vmul.f32 %v1415, %v968
    %v1441 = vmul.f32 %v1417, %v969
    %v1442 = vadd.f32 %v1434, %v1438
    %v1443 = vadd.f32 %v1435, %v1439
    %v1444 = vadd.f32 %v1436, %v1440
    %v1445 = vadd.f32 %v1437, %v1441
    %v1446 = vadd.f32 %v1304, %v1244
    %v1447 = vadd.f32 %v1309, %v1249
    %v1448 = vadd.f32 %v1314, %v1254
    %v1449 = vadd.f32 %v1319, %v1259
    %v1450 = vxor.u32 %v1446, 2147483648
    %v1451 = vxor.u32 %v1447, 2147483648
    %v1452 = vxor.u32 %v1448, 2147483648
    %v1453 = vxor.u32 %v1449, 2147483648
    %v1454 = vmul.f32 %v1450, 1.442695
    %v1455 = vpow.pop %v1454
    %v1456 = vmul.f32 %v1451, 1.442695
    %v1457 = vpow.pop %v1456
    %v1458 = vmul.f32 %v1452, 1.442695
    %v1459 = vpow.pop %v1458
    %v1460 = vmul.f32 %v1453, 1.442695
    %v1461 = vpow.pop %v1460
    %v1462 = vadd.f32 %v1455, 1.0
    %v1463 = vadd.f32 %v1457, 1.0
    %v1464 = vadd.f32 %v1459, 1.0
    %v1465 = vadd.f32 %v1461, 1.0
    %v1466 = vrcp.pop %v1462
    %v1467 = vmul.f32 1.0, %v1466
    %v1468 = vrcp.pop %v1463
    %v1469 = vmul.f32 1.0, %v1468
    %v1470 = vrcp.pop %v1464
    %v1471 = vmul.f32 1.0, %v1470
    %v1472 = vrcp.pop %v1465
    %v1473 = vmul.f32 1.0, %v1472
    %v1474 = vadd.f32 %v1324, %v1264
    %v1475 = vadd.f32 %v1329, %v1269
    %v1476 = vadd.f32 %v1334, %v1274
    %v1477 = vadd.f32 %v1339, %v1279
    %v1478 = vxor.u32 %v1474, 2147483648
    %v1479 = vxor.u32 %v1475, 2147483648
    %v1480 = vxor.u32 %v1476, 2147483648
    %v1481 = vxor.u32 %v1477, 2147483648
    %v1482 = vmul.f32 %v1478, 1.442695
    %v1483 = vpow.pop %v1482
    %v1484 = vmul.f32 %v1479, 1.442695
    %v1485 = vpow.pop %v1484
    %v1486 = vmul.f32 %v1480, 1.442695
    %v1487 = vpow.pop %v1486
    %v1488 = vmul.f32 %v1481, 1.442695
    %v1489 = vpow.pop %v1488
    %v1490 = vadd.f32 %v1483, 1.0
    %v1491 = vadd.f32 %v1485, 1.0
    %v1492 = vadd.f32 %v1487, 1.0
    %v1493 = vadd.f32 %v1489, 1.0
    %v1494 = vrcp.pop %v1490
    %v1495 = vmul.f32 1.0, %v1494
    %v1496 = vrcp.pop %v1491
    %v1497 = vmul.f32 1.0, %v1496
    %v1498 = vrcp.pop %v1492
    %v1499 = vmul.f32 1.0, %v1498
    %v1500 = vrcp.pop %v1493
    %v1501 = vmul.f32 1.0, %v1500
    %v1502 = vmul.f32 %v1467, %v1284
    %v1503 = vmul.f32 %v1469, %v1289
    %v1504 = vmul.f32 %v1471, %v1294
    %v1505 = vmul.f32 %v1473, %v1299
    %v1506 = vadd.f32 %v1344, %v1502
    %v1507 = vadd.f32 %v1349, %v1503
    %v1508 = vadd.f32 %v1354, %v1504
    %v1509 = vadd.f32 %v1359, %v1505
    %v1510 = vtanh.pop %v1506
    %v1511 = vtanh.pop %v1507
    %v1512 = vtanh.pop %v1508
    %v1513 = vtanh.pop %v1509
    %v1514 = vsub.f32 1.0, %v1495
    %v1515 = vsub.f32 1.0, %v1497
    %v1516 = vsub.f32 1.0, %v1499
    %v1517 = vsub.f32 1.0, %v1501
    %v1518 = vmul.f32 %v1514, %v1510
    %v1519 = vmul.f32 %v1515, %v1511
    %v1520 = vmul.f32 %v1516, %v1512
    %v1521 = vmul.f32 %v1517, %v1513
    %v1522 = vmul.f32 %v1495, %v1050
    %v1523 = vmul.f32 %v1497, %v1051
    %v1524 = vmul.f32 %v1499, %v1052
    %v1525 = vmul.f32 %v1501, %v1053
    %v1526 = vadd.f32 %v1518, %v1522
    %v1527 = vadd.f32 %v1519, %v1523
    %v1528 = vadd.f32 %v1520, %v1524
    %v1529 = vadd.f32 %v1521, %v1525
    %s1530 = scalar_lea.vmem %s0, 48
    %v1531 = vld [vmem:[%s1530] sm:$0xff]
    %v1532 = vld [vmem:[%s1530 + $0x8] sm:$0xff]
    %1533 = vmatprep.subr.mxu0 0.0
    %1534 = vmatpush1.msra.mxu0 %v1442
    %1535 = vmatprep.subr.mxu0 0.0
    %1536 = vmatpush1.msra.mxu0 %v1443
    %1537 = vmatprep.subr.mxu0 0.0
    %1538 = vmatpush1.msra.mxu0 %v1444
    %1539 = vmatprep.subr.mxu0 0.0
    %1540 = vmatpush1.msra.mxu0 %v1445
    %1541 = vmatprep.subr.mxu0 0.0
    %1542 = vmatpush1.msra.mxu0 %v1526
    %1543 = vmatprep.subr.mxu0 0.0
    %1544 = vmatpush1.msra.mxu0 %v1527
    %1545 = vmatprep.subr.mxu0 0.0
    %1546 = vmatpush1.msra.mxu0 %v1528
    %1547 = vmatprep.subr.mxu0 0.0
    %1548 = vmatpush1.msra.mxu0 %v1529
    %1549 = vmatprep.subr.mxu0 0.0
    %1550 = vmatpush1.msra.mxu0 %v1531
    %1551 = vmatprep.subr.mxu0 0.0
    %1552 = vmatpush1.msra.mxu0 %v1532
    %1553 = vmatprep.subr.mxu0 0.0
    %1554 = vmatpush1.msra.mxu0 0.0
    %1555 = vmatprep.subr.mxu0 0.0
    %1556 = vmatpush1.msra.mxu0 0.0
    %1557 = vmatprep.subr.mxu0 0.0
    %1558 = vmatpush1.msra.mxu0 0.0
    %1559 = vmatprep.subr.mxu0 0.0
    %1560 = vmatpush1.msra.mxu0 0.0
    %1561 = vmatprep.subr.mxu0 0.0
    %1562 = vmatpush1.msra.mxu0 0.0
    %1563 = vmatprep.subr.mxu0 0.0
    %1564 = vmatpush1.msra.mxu0 0.0
    %1565 = vmatprep.subr.mxu0 0.0
    %1566 = vmatpush1.msra.mxu0 0.0
    %1567 = vmatprep.subr.mxu0 0.0
    %1568 = vmatpush1.msra.mxu0 0.0
    %1569 = vmatprep.subr.mxu0 0.0
    %1570 = vmatpush1.msra.mxu0 0.0
    %1571 = vmatprep.subr.mxu0 0.0
    %1572 = vmatpush1.msra.mxu0 0.0
    %1573 = vmatprep.subr.mxu0 0.0
    %1574 = vmatpush1.msra.mxu0 0.0
    %1575 = vmatprep.subr.mxu0 0.0
    %1576 = vmatpush1.msra.mxu0 0.0
    %1577 = vmatprep.subr.mxu0 0.0
    %1578 = vmatpush1.msra.mxu0 0.0
    %1579 = vmatprep.subr.mxu0 0.0
    %1580 = vmatpush1.msra.mxu0 0.0
    %1581 = vmatprep.subr.mxu0 0.0
    %1582 = vmatpush1.msra.mxu0 0.0
    %1583 = vmatprep.subr.mxu0 0.0
    %1584 = vmatpush1.msra.mxu0 0.0
    %1585 = vmatprep.subr.mxu0 0.0
    %1586 = vmatpush1.msra.mxu0 0.0
    %1587 = vmatprep.subr.mxu0 0.0
    %1588 = vmatpush1.msra.mxu0 0.0
    %1589 = vmatprep.subr.mxu0 0.0
    %1590 = vmatpush1.msra.mxu0 0.0
    %1591 = vmatprep.subr.mxu0 0.0
    %1592 = vmatpush1.msra.mxu0 0.0
    %1593 = vmatprep.subr.mxu0 0.0
    %1594 = vmatpush1.msra.mxu0 0.0
    %1595 = vmatprep.subr.mxu0 0.0
    %1596 = vmatpush1.msra.mxu0 0.0
    %1597 = vmatprep.mubr.f32.mxu0 0.0
    %1598 = vmatmul.mubr.f32.gmra.mrb[0].mxu0 %v70
    %v1599 = vpop.f32.mrb[0].mxu0
    %v1600 = vadd.f32 0.0, %v1599
    %v1601 = vpop.f32.mrb[0].mxu0
    %1602 = vmatprep.mubr.f32.mxu0 0.0
    %1603 = vmatmul.mubr.f32.gmra.mrb[0].mxu0 %v73
    %v1604 = vpop.f32.mrb[0].mxu0
    %v1605 = vadd.f32 0.0, %v1604
    %v1606 = vpop.f32.mrb[0].mxu0
    %1607 = vmatprep.mubr.f32.mxu0 0.0
    %1608 = vmatmul.mubr.f32.gmra.mrb[0].mxu0 %v76
    %v1609 = vpop.f32.mrb[0].mxu0
    %v1610 = vadd.f32 0.0, %v1609
    %v1611 = vpop.f32.mrb[0].mxu0
    %1612 = vmatprep.mubr.f32.mxu0 0.0
    %1613 = vmatmul.mubr.f32.gmra.mrb[0].mxu0 %v79
    %v1614 = vpop.f32.mrb[0].mxu0
    %v1615 = vadd.f32 0.0, %v1614
    %v1616 = vpop.f32.mrb[0].mxu0
    %1617 = vmatprep.mubr.f32.mxu0 0.0
    %1618 = vmatmul.mubr.f32.gmra.mrb[0].mxu0 %v82
    %v1619 = vpop.f32.mrb[0].mxu0
    %v1620 = vadd.f32 0.0, %v1619
    %v1621 = vpop.f32.mrb[0].mxu0
    %1622 = vmatprep.mubr.f32.mxu0 0.0
    %1623 = vmatmul.mubr.f32.gmra.mrb[0].mxu0 %v85
    %v1624 = vpop.f32.mrb[0].mxu0
    %v1625 = vadd.f32 0.0, %v1624
    %v1626 = vpop.f32.mrb[0].mxu0
    %1627 = vmatprep.mubr.f32.mxu0 0.0
    %1628 = vmatmul.mubr.f32.gmra.mrb[0].mxu0 %v88
    %v1629 = vpop.f32.mrb[0].mxu0
    %v1630 = vadd.f32 0.0, %v1629
    %v1631 = vpop.f32.mrb[0].mxu0
    %1632 = vmatprep.mubr.f32.mxu0 0.0
    %1633 = vmatmul.mubr.f32.gmra.mrb[0].mxu0 %v91
    %v1634 = vpop.f32.mrb[0].mxu0
    %v1635 = vadd.f32 0.0, %v1634
    %v1636 = vpop.f32.mrb[0].mxu0
    %1637 = vmatprep.mubr.f32.mxu0 0.0
    %1638 = vmatmul.mubr.f32.gmra.mrb[0].mxu0 %v94
    %v1639 = vpop.f32.mrb[0].mxu0
    %v1640 = vadd.f32 0.0, %v1639
    %v1641 = vpop.f32.mrb[0].mxu0
    %1642 = vmatprep.mubr.f32.mxu0 0.0
    %1643 = vmatmul.mubr.f32.gmra.mrb[0].mxu0 %v97
    %v1644 = vpop.f32.mrb[0].mxu0
    %v1645 = vadd.f32 0.0, %v1644
    %v1646 = vpop.f32.mrb[0].mxu0
    %1647 = vmatprep.mubr.f32.mxu0 0.0
    %1648 = vmatmul.mubr.f32.gmra.mrb[0].mxu0 %v100
    %v1649 = vpop.f32.mrb[0].mxu0
    %v1650 = vadd.f32 0.0, %v1649
    %v1651 = vpop.f32.mrb[0].mxu0
    %1652 = vmatprep.mubr.f32.mxu0 0.0
    %1653 = vmatmul.mubr.f32.gmra.mrb[0].mxu0 %v103
    %v1654 = vpop.f32.mrb[0].mxu0
    %v1655 = vadd.f32 0.0, %v1654
    %v1656 = vpop.f32.mrb[0].mxu0
    %1657 = vmatprep.mubr.f32.mxu0 0.0
    %1658 = vmatmul.mubr.f32.gmra.mrb[0].mxu0 %v106
    %v1659 = vpop.f32.mrb[0].mxu0
    %v1660 = vadd.f32 0.0, %v1659
    %v1661 = vpop.f32.mrb[0].mxu0
    %1662 = vmatprep.mubr.f32.mxu0 0.0
    %1663 = vmatmul.mubr.f32.gmra.mrb[0].mxu0 %v109
    %v1664 = vpop.f32.mrb[0].mxu0
    %v1665 = vadd.f32 0.0, %v1664
    %v1666 = vpop.f32.mrb[0].mxu0
    %1667 = vmatprep.mubr.f32.mxu0 0.0
    %1668 = vmatmul.mubr.f32.gmra.mrb[0].mxu0 %v112
    %v1669 = vpop.f32.mrb[0].mxu0
    %v1670 = vadd.f32 0.0, %v1669
    %v1671 = vpop.f32.mrb[0].mxu0
    %1672 = vmatprep.mubr.f32.mxu0 0.0
    %1673 = vmatmul.mubr.f32.gmra.mrb[0].mxu0 %v115
    %v1674 = vpop.f32.mrb[0].mxu0
    %v1675 = vadd.f32 0.0, %v1674
    %v1676 = vpop.f32.mrb[0].mxu0
    %1677 = vmatprep.mubr.f32.mxu0 0.0
    %1678 = vmatmul.mubr.f32.gmra.mrb[0].mxu0 %v118
    %v1679 = vpop.f32.mrb[0].mxu0
    %v1680 = vadd.f32 0.0, %v1679
    %v1681 = vpop.f32.mrb[0].mxu0
    %1682 = vmatprep.mubr.f32.mxu0 0.0
    %1683 = vmatmul.mubr.f32.gmra.mrb[0].mxu0 %v121
    %v1684 = vpop.f32.mrb[0].mxu0
    %v1685 = vadd.f32 0.0, %v1684
    %v1686 = vpop.f32.mrb[0].mxu0
    %1687 = vmatprep.mubr.f32.mxu0 0.0
    %1688 = vmatmul.mubr.f32.gmra.mrb[0].mxu0 %v124
    %v1689 = vpop.f32.mrb[0].mxu0
    %v1690 = vadd.f32 0.0, %v1689
    %v1691 = vpop.f32.mrb[0].mxu0
    %1692 = vmatprep.mubr.f32.mxu0 0.0
    %1693 = vmatmul.mubr.f32.gmra.mrb[0].mxu0 %v127
    %v1694 = vpop.f32.mrb[0].mxu0
    %v1695 = vadd.f32 0.0, %v1694
    %v1696 = vpop.f32.mrb[0].mxu0
    %1697 = vmatprep.mubr.f32.mxu0 0.0
    %1698 = vmatmul.mubr.f32.gmra.mrb[0].mxu0 %v130
    %v1699 = vpop.f32.mrb[0].mxu0
    %v1700 = vadd.f32 0.0, %v1699
    %v1701 = vpop.f32.mrb[0].mxu0
    %1702 = vmatprep.mubr.f32.mxu0 0.0
    %1703 = vmatmul.mubr.f32.gmra.mrb[0].mxu0 %v133
    %v1704 = vpop.f32.mrb[0].mxu0
    %v1705 = vadd.f32 0.0, %v1704
    %v1706 = vpop.f32.mrb[0].mxu0
    %1707 = vmatprep.mubr.f32.mxu0 0.0
    %1708 = vmatmul.mubr.f32.gmra.mrb[0].mxu0 %v136
    %v1709 = vpop.f32.mrb[0].mxu0
    %v1710 = vadd.f32 0.0, %v1709
    %v1711 = vpop.f32.mrb[0].mxu0
    %1712 = vmatprep.mubr.f32.mxu0 0.0
    %1713 = vmatmul.mubr.f32.gmra.mrb[0].mxu0 %v139
    %v1714 = vpop.f32.mrb[0].mxu0
    %v1715 = vadd.f32 0.0, %v1714
    %v1716 = vpop.f32.mrb[0].mxu0
    %1717 = vmatprep.mubr.f32.mxu0 0.0
    %1718 = vmatmul.mubr.f32.gmra.mrb[0].mxu0 %v142
    %v1719 = vpop.f32.mrb[0].mxu0
    %v1720 = vadd.f32 0.0, %v1719
    %v1721 = vpop.f32.mrb[0].mxu0
    %1722 = vmatprep.mubr.f32.mxu0 0.0
    %1723 = vmatmul.mubr.f32.gmra.mrb[0].mxu0 %v145
    %v1724 = vpop.f32.mrb[0].mxu0
    %v1725 = vadd.f32 0.0, %v1724
    %v1726 = vpop.f32.mrb[0].mxu0
    %1727 = vmatprep.mubr.f32.mxu0 0.0
    %1728 = vmatmul.mubr.f32.gmra.mrb[0].mxu0 %v148
    %v1729 = vpop.f32.mrb[0].mxu0
    %v1730 = vadd.f32 0.0, %v1729
    %v1731 = vpop.f32.mrb[0].mxu0
    %1732 = vmatprep.mubr.f32.mxu0 0.0
    %1733 = vmatmul.mubr.f32.gmra.mrb[0].mxu0 %v151
    %v1734 = vpop.f32.mrb[0].mxu0
    %v1735 = vadd.f32 0.0, %v1734
    %v1736 = vpop.f32.mrb[0].mxu0
    %1737 = vmatprep.mubr.f32.mxu0 0.0
    %1738 = vmatmul.mubr.f32.gmra.mrb[0].mxu0 %v154
    %v1739 = vpop.f32.mrb[0].mxu0
    %v1740 = vadd.f32 0.0, %v1739
    %v1741 = vpop.f32.mrb[0].mxu0
    %1742 = vmatprep.mubr.f32.mxu0 0.0
    %1743 = vmatmul.mubr.f32.gmra.mrb[0].mxu0 %v157
    %v1744 = vpop.f32.mrb[0].mxu0
    %v1745 = vadd.f32 0.0, %v1744
    %v1746 = vpop.f32.mrb[0].mxu0
    %1747 = vmatprep.mubr.f32.mxu0 0.0
    %1748 = vmatmul.mubr.f32.gmra.mrb[0].mxu0 %v160
    %v1749 = vpop.f32.mrb[0].mxu0
    %v1750 = vadd.f32 0.0, %v1749
    %v1751 = vpop.f32.mrb[0].mxu0
    %1752 = vmatprep.mubr.f32.mxu0 0.0
    %1753 = vmatmul.mubr.f32.gmra.mrb[0].mxu0 %v163
    %v1754 = vpop.f32.mrb[0].mxu0
    %v1755 = vadd.f32 0.0, %v1754
    %v1756 = vpop.f32.mrb[0].mxu0
    %1757 = vmatprep.mubr.f32.mxu0 0.0
    %1758 = vmatmul.mubr.f32.gmra.mrb[0].mxu0 %v166
    %v1759 = vpop.f32.mrb[0].mxu0
    %v1760 = vadd.f32 0.0, %v1759
    %v1761 = vpop.f32.mrb[0].mxu0
    %1762 = vmatprep.mubr.f32.mxu0 0.0
    %1763 = vmatmul.mubr.f32.gmra.mrb[0].mxu0 %v169
    %v1764 = vpop.f32.mrb[0].mxu0
    %v1765 = vadd.f32 0.0, %v1764
    %v1766 = vpop.f32.mrb[0].mxu0
    %1767 = vmatprep.mubr.f32.mxu0 0.0
    %1768 = vmatmul.mubr.f32.gmra.mrb[0].mxu0 %v172
    %v1769 = vpop.f32.mrb[0].mxu0
    %v1770 = vadd.f32 0.0, %v1769
    %v1771 = vpop.f32.mrb[0].mxu0
    %1772 = vmatprep.mubr.f32.mxu0 0.0
    %1773 = vmatmul.mubr.f32.gmra.mrb[0].mxu0 %v175
    %v1774 = vpop.f32.mrb[0].mxu0
    %v1775 = vadd.f32 0.0, %v1774
    %v1776 = vpop.f32.mrb[0].mxu0
    %1777 = vmatprep.mubr.f32.mxu0 0.0
    %1778 = vmatmul.mubr.f32.gmra.mrb[0].mxu0 %v178
    %v1779 = vpop.f32.mrb[0].mxu0
    %v1780 = vadd.f32 0.0, %v1779
    %v1781 = vpop.f32.mrb[0].mxu0
    %1782 = vmatprep.mubr.f32.mxu0 0.0
    %1783 = vmatmul.mubr.f32.gmra.mrb[0].mxu0 %v181
    %v1784 = vpop.f32.mrb[0].mxu0
    %v1785 = vadd.f32 0.0, %v1784
    %v1786 = vpop.f32.mrb[0].mxu0
    %1787 = vmatprep.mubr.f32.mxu0 0.0
    %1788 = vmatmul.mubr.f32.gmra.mrb[0].mxu0 %v184
    %v1789 = vpop.f32.mrb[0].mxu0
    %v1790 = vadd.f32 0.0, %v1789
    %v1791 = vpop.f32.mrb[0].mxu0
    %1792 = vmatprep.mubr.f32.mxu0 0.0
    %1793 = vmatmul.mubr.f32.gmra.mrb[0].mxu0 %v187
    %v1794 = vpop.f32.mrb[0].mxu0
    %v1795 = vadd.f32 0.0, %v1794
    %v1796 = vpop.f32.mrb[0].mxu0
    %1797 = vmatprep.mubr.f32.mxu0 0.0
    %1798 = vmatmul.mubr.f32.gmra.mrb[0].mxu0 %v190
    %v1799 = vpop.f32.mrb[0].mxu0
    %v1800 = vadd.f32 0.0, %v1799
    %v1801 = vpop.f32.mrb[0].mxu0
    %1802 = vmatprep.mubr.f32.mxu0 0.0
    %1803 = vmatmul.mubr.f32.gmra.mrb[0].mxu0 %v193
    %v1804 = vpop.f32.mrb[0].mxu0
    %v1805 = vadd.f32 0.0, %v1804
    %v1806 = vpop.f32.mrb[0].mxu0
    %1807 = vmatprep.mubr.f32.mxu0 0.0
    %1808 = vmatmul.mubr.f32.gmra.mrb[0].mxu0 %v196
    %v1809 = vpop.f32.mrb[0].mxu0
    %v1810 = vadd.f32 0.0, %v1809
    %v1811 = vpop.f32.mrb[0].mxu0
    %1812 = vmatprep.mubr.f32.mxu0 0.0
    %1813 = vmatmul.mubr.f32.gmra.mrb[0].mxu0 %v199
    %v1814 = vpop.f32.mrb[0].mxu0
    %v1815 = vadd.f32 0.0, %v1814
    %v1816 = vpop.f32.mrb[0].mxu0
    %1817 = vmatprep.mubr.f32.mxu0 0.0
    %1818 = vmatmul.mubr.f32.gmra.mrb[0].mxu0 %v202
    %v1819 = vpop.f32.mrb[0].mxu0
    %v1820 = vadd.f32 0.0, %v1819
    %v1821 = vpop.f32.mrb[0].mxu0
    %1822 = vmatprep.mubr.f32.mxu0 0.0
    %1823 = vmatmul.mubr.f32.gmra.mrb[0].mxu0 %v205
    %v1824 = vpop.f32.mrb[0].mxu0
    %v1825 = vadd.f32 0.0, %v1824
    %v1826 = vpop.f32.mrb[0].mxu0
    %1827 = vmatprep.mubr.f32.mxu0 0.0
    %1828 = vmatmul.mubr.f32.gmra.mrb[0].mxu0 %v208
    %v1829 = vpop.f32.mrb[0].mxu0
    %v1830 = vadd.f32 0.0, %v1829
    %v1831 = vpop.f32.mrb[0].mxu0
    %1832 = vmatprep.mubr.f32.mxu0 0.0
    %1833 = vmatmul.mubr.f32.gmra.mrb[0].mxu0 %v211
    %v1834 = vpop.f32.mrb[0].mxu0
    %v1835 = vadd.f32 0.0, %v1834
    %v1836 = vpop.f32.mrb[0].mxu0
    %1837 = vdwg.mxu0
    %v1838 = vadd.f32 %v1660, %v1600
    %v1839 = vadd.f32 %v1665, %v1605
    %v1840 = vadd.f32 %v1670, %v1610
    %v1841 = vadd.f32 %v1675, %v1615
    %v1842 = vxor.u32 %v1838, 2147483648
    %v1843 = vxor.u32 %v1839, 2147483648
    %v1844 = vxor.u32 %v1840, 2147483648
    %v1845 = vxor.u32 %v1841, 2147483648
    %v1846 = vmul.f32 %v1842, 1.442695
    %v1847 = vpow.pop %v1846
    %v1848 = vmul.f32 %v1843, 1.442695
    %v1849 = vpow.pop %v1848
    %v1850 = vmul.f32 %v1844, 1.442695
    %v1851 = vpow.pop %v1850
    %v1852 = vmul.f32 %v1845, 1.442695
    %v1853 = vpow.pop %v1852
    %v1854 = vadd.f32 %v1847, 1.0
    %v1855 = vadd.f32 %v1849, 1.0
    %v1856 = vadd.f32 %v1851, 1.0
    %v1857 = vadd.f32 %v1853, 1.0
    %v1858 = vrcp.pop %v1854
    %v1859 = vmul.f32 1.0, %v1858
    %v1860 = vrcp.pop %v1855
    %v1861 = vmul.f32 1.0, %v1860
    %v1862 = vrcp.pop %v1856
    %v1863 = vmul.f32 1.0, %v1862
    %v1864 = vrcp.pop %v1857
    %v1865 = vmul.f32 1.0, %v1864
    %v1866 = vadd.f32 %v1680, %v1620
    %v1867 = vadd.f32 %v1685, %v1625
    %v1868 = vadd.f32 %v1690, %v1630
    %v1869 = vadd.f32 %v1695, %v1635
    %v1870 = vxor.u32 %v1866, 2147483648
    %v1871 = vxor.u32 %v1867, 2147483648
    %v1872 = vxor.u32 %v1868, 2147483648
    %v1873 = vxor.u32 %v1869, 2147483648
    %v1874 = vmul.f32 %v1870, 1.442695
    %v1875 = vpow.pop %v1874
    %v1876 = vmul.f32 %v1871, 1.442695
    %v1877 = vpow.pop %v1876
    %v1878 = vmul.f32 %v1872, 1.442695
    %v1879 = vpow.pop %v1878
    %v1880 = vmul.f32 %v1873, 1.442695
    %v1881 = vpow.pop %v1880
    %v1882 = vadd.f32 %v1875, 1.0
    %v1883 = vadd.f32 %v1877, 1.0
    %v1884 = vadd.f32 %v1879, 1.0
    %v1885 = vadd.f32 %v1881, 1.0
    %v1886 = vrcp.pop %v1882
    %v1887 = vmul.f32 1.0, %v1886
    %v1888 = vrcp.pop %v1883
    %v1889 = vmul.f32 1.0, %v1888
    %v1890 = vrcp.pop %v1884
    %v1891 = vmul.f32 1.0, %v1890
    %v1892 = vrcp.pop %v1885
    %v1893 = vmul.f32 1.0, %v1892
    %v1894 = vmul.f32 %v1859, %v1640
    %v1895 = vmul.f32 %v1861, %v1645
    %v1896 = vmul.f32 %v1863, %v1650
    %v1897 = vmul.f32 %v1865, %v1655
    %v1898 = vadd.f32 %v1700, %v1894
    %v1899 = vadd.f32 %v1705, %v1895
    %v1900 = vadd.f32 %v1710, %v1896
    %v1901 = vadd.f32 %v1715, %v1897
    %v1902 = vtanh.pop %v1898
    %v1903 = vtanh.pop %v1899
    %v1904 = vtanh.pop %v1900
    %v1905 = vtanh.pop %v1901
    %v1906 = vsub.f32 1.0, %v1887
    %v1907 = vsub.f32 1.0, %v1889
    %v1908 = vsub.f32 1.0, %v1891
    %v1909 = vsub.f32 1.0, %v1893
    %v1910 = vmul.f32 %v1906, %v1902
    %v1911 = vmul.f32 %v1907, %v1903
    %v1912 = vmul.f32 %v1908, %v1904
    %v1913 = vmul.f32 %v1909, %v1905
    %v1914 = vmul.f32 %v1887, %v1442
    %v1915 = vmul.f32 %v1889, %v1443
    %v1916 = vmul.f32 %v1891, %v1444
    %v1917 = vmul.f32 %v1893, %v1445
    %v1918 = vadd.f32 %v1910, %v1914
    %v1919 = vadd.f32 %v1911, %v1915
    %v1920 = vadd.f32 %v1912, %v1916
    %v1921 = vadd.f32 %v1913, %v1917
    %v1922 = vadd.f32 %v1780, %v1720
    %v1923 = vadd.f32 %v1785, %v1725
    %v1924 = vadd.f32 %v1790, %v1730
    %v1925 = vadd.f32 %v1795, %v1735
    %v1926 = vxor.u32 %v1922, 2147483648
    %v1927 = vxor.u32 %v1923, 2147483648
    %v1928 = vxor.u32 %v1924, 2147483648
    %v1929 = vxor.u32 %v1925, 2147483648
    %v1930 = vmul.f32 %v1926, 1.442695
    %v1931 = vpow.pop %v1930
    %v1932 = vmul.f32 %v1927, 1.442695
    %v1933 = vpow.pop %v1932
    %v1934 = vmul.f32 %v1928, 1.442695
    %v1935 = vpow.pop %v1934
    %v1936 = vmul.f32 %v1929, 1.442695
    %v1937 = vpow.pop %v1936
    %v1938 = vadd.f32 %v1931, 1.0
    %v1939 = vadd.f32 %v1933, 1.0
    %v1940 = vadd.f32 %v1935, 1.0
    %v1941 = vadd.f32 %v1937, 1.0
    %v1942 = vrcp.pop %v1938
    %v1943 = vmul.f32 1.0, %v1942
    %v1944 = vrcp.pop %v1939
    %v1945 = vmul.f32 1.0, %v1944
    %v1946 = vrcp.pop %v1940
    %v1947 = vmul.f32 1.0, %v1946
    %v1948 = vrcp.pop %v1941
    %v1949 = vmul.f32 1.0, %v1948
    %v1950 = vadd.f32 %v1800, %v1740
    %v1951 = vadd.f32 %v1805, %v1745
    %v1952 = vadd.f32 %v1810, %v1750
    %v1953 = vadd.f32 %v1815, %v1755
    %v1954 = vxor.u32 %v1950, 2147483648
    %v1955 = vxor.u32 %v1951, 2147483648
    %v1956 = vxor.u32 %v1952, 2147483648
    %v1957 = vxor.u32 %v1953, 2147483648
    %v1958 = vmul.f32 %v1954, 1.442695
    %v1959 = vpow.pop %v1958
    %v1960 = vmul.f32 %v1955, 1.442695
    %v1961 = vpow.pop %v1960
    %v1962 = vmul.f32 %v1956, 1.442695
    %v1963 = vpow.pop %v1962
    %v1964 = vmul.f32 %v1957, 1.442695
    %v1965 = vpow.pop %v1964
    %v1966 = vadd.f32 %v1959, 1.0
    %v1967 = vadd.f32 %v1961, 1.0
    %v1968 = vadd.f32 %v1963, 1.0
    %v1969 = vadd.f32 %v1965, 1.0
    %v1970 = vrcp.pop %v1966
    %v1971 = vmul.f32 1.0, %v1970
    %v1972 = vrcp.pop %v1967
    %v1973 = vmul.f32 1.0, %v1972
    %v1974 = vrcp.pop %v1968
    %v1975 = vmul.f32 1.0, %v1974
    %v1976 = vrcp.pop %v1969
    %v1977 = vmul.f32 1.0, %v1976
    %v1978 = vmul.f32 %v1943, %v1760
    %v1979 = vmul.f32 %v1945, %v1765
    %v1980 = vmul.f32 %v1947, %v1770
    %v1981 = vmul.f32 %v1949, %v1775
    %v1982 = vadd.f32 %v1820, %v1978
    %v1983 = vadd.f32 %v1825, %v1979
    %v1984 = vadd.f32 %v1830, %v1980
    %v1985 = vadd.f32 %v1835, %v1981
    %v1986 = vtanh.pop %v1982
    %v1987 = vtanh.pop %v1983
    %v1988 = vtanh.pop %v1984
    %v1989 = vtanh.pop %v1985
    %v1990 = vsub.f32 1.0, %v1971
    %v1991 = vsub.f32 1.0, %v1973
    %v1992 = vsub.f32 1.0, %v1975
    %v1993 = vsub.f32 1.0, %v1977
    %v1994 = vmul.f32 %v1990, %v1986
    %v1995 = vmul.f32 %v1991, %v1987
    %v1996 = vmul.f32 %v1992, %v1988
    %v1997 = vmul.f32 %v1993, %v1989
    %v1998 = vmul.f32 %v1971, %v1526
    %v1999 = vmul.f32 %v1973, %v1527
    %v2000 = vmul.f32 %v1975, %v1528
    %v2001 = vmul.f32 %v1977, %v1529
    %v2002 = vadd.f32 %v1994, %v1998
    %v2003 = vadd.f32 %v1995, %v1999
    %v2004 = vadd.f32 %v1996, %v2000
    %v2005 = vadd.f32 %v1997, %v2001
    %s2006 = scalar_lea.vmem %s0, 64
    %v2007 = vld [vmem:[%s2006] sm:$0xff]
    %v2008 = vld [vmem:[%s2006 + $0x8] sm:$0xff]
    %2009 = vmatprep.subr.mxu0 0.0
    %2010 = vmatpush1.msra.mxu0 %v1918
    %2011 = vmatprep.subr.mxu0 0.0
    %2012 = vmatpush1.msra.mxu0 %v1919
    %2013 = vmatprep.subr.mxu0 0.0
    %2014 = vmatpush1.msra.mxu0 %v1920
    %2015 = vmatprep.subr.mxu0 0.0
    %2016 = vmatpush1.msra.mxu0 %v1921
    %2017 = vmatprep.subr.mxu0 0.0
    %2018 = vmatpush1.msra.mxu0 %v2002
    %2019 = vmatprep.subr.mxu0 0.0
    %2020 = vmatpush1.msra.mxu0 %v2003
    %2021 = vmatprep.subr.mxu0 0.0
    %2022 = vmatpush1.msra.mxu0 %v2004
    %2023 = vmatprep.subr.mxu0 0.0
    %2024 = vmatpush1.msra.mxu0 %v2005
    %2025 = vmatprep.subr.mxu0 0.0
    %2026 = vmatpush1.msra.mxu0 %v2007
    %2027 = vmatprep.subr.mxu0 0.0
    %2028 = vmatpush1.msra.mxu0 %v2008
    %2029 = vmatprep.subr.mxu0 0.0
    %2030 = vmatpush1.msra.mxu0 0.0
    %2031 = vmatprep.subr.mxu0 0.0
    %2032 = vmatpush1.msra.mxu0 0.0
    %2033 = vmatprep.subr.mxu0 0.0
    %2034 = vmatpush1.msra.mxu0 0.0
    %2035 = vmatprep.subr.mxu0 0.0
    %2036 = vmatpush1.msra.mxu0 0.0
    %2037 = vmatprep.subr.mxu0 0.0
    %2038 = vmatpush1.msra.mxu0 0.0
    %2039 = vmatprep.subr.mxu0 0.0
    %2040 = vmatpush1.msra.mxu0 0.0
    %2041 = vmatprep.subr.mxu0 0.0
    %2042 = vmatpush1.msra.mxu0 0.0
    %2043 = vmatprep.subr.mxu0 0.0
    %2044 = vmatpush1.msra.mxu0 0.0
    %2045 = vmatprep.subr.mxu0 0.0
    %2046 = vmatpush1.msra.mxu0 0.0
    %2047 = vmatprep.subr.mxu0 0.0
    %2048 = vmatpush1.msra.mxu0 0.0
    %2049 = vmatprep.subr.mxu0 0.0
    %2050 = vmatpush1.msra.mxu0 0.0
    %2051 = vmatprep.subr.mxu0 0.0
    %2052 = vmatpush1.msra.mxu0 0.0
    %2053 = vmatprep.subr.mxu0 0.0
    %2054 = vmatpush1.msra.mxu0 0.0
    %2055 = vmatprep.subr.mxu0 0.0
    %2056 = vmatpush1.msra.mxu0 0.0
    %2057 = vmatprep.subr.mxu0 0.0
    %2058 = vmatpush1.msra.mxu0 0.0
    %2059 = vmatprep.subr.mxu0 0.0
    %2060 = vmatpush1.msra.mxu0 0.0
    %2061 = vmatprep.subr.mxu0 0.0
    %2062 = vmatpush1.msra.mxu0 0.0
    %2063 = vmatprep.subr.mxu0 0.0
    %2064 = vmatpush1.msra.mxu0 0.0
    %2065 = vmatprep.subr.mxu0 0.0
    %2066 = vmatpush1.msra.mxu0 0.0
    %2067 = vmatprep.subr.mxu0 0.0
    %2068 = vmatpush1.msra.mxu0 0.0
    %2069 = vmatprep.subr.mxu0 0.0
    %2070 = vmatpush1.msra.mxu0 0.0
    %2071 = vmatprep.subr.mxu0 0.0
    %2072 = vmatpush1.msra.mxu0 0.0
    %2073 = vmatprep.mubr.f32.mxu0 0.0
    %2074 = vmatmul.mubr.f32.gmra.mrb[0].mxu0 %v70
    %v2075 = vpop.f32.mrb[0].mxu0
    %v2076 = vadd.f32 0.0, %v2075
    %v2077 = vpop.f32.mrb[0].mxu0
    %2078 = vmatprep.mubr.f32.mxu0 0.0
    %2079 = vmatmul.mubr.f32.gmra.mrb[0].mxu0 %v73
    %v2080 = vpop.f32.mrb[0].mxu0
    %v2081 = vadd.f32 0.0, %v2080
    %v2082 = vpop.f32.mrb[0].mxu0
    %2083 = vmatprep.mubr.f32.mxu0 0.0
    %2084 = vmatmul.mubr.f32.gmra.mrb[0].mxu0 %v76
    %v2085 = vpop.f32.mrb[0].mxu0
    %v2086 = vadd.f32 0.0, %v2085
    %v2087 = vpop.f32.mrb[0].mxu0
    %2088 = vmatprep.mubr.f32.mxu0 0.0
    %2089 = vmatmul.mubr.f32.gmra.mrb[0].mxu0 %v79
    %v2090 = vpop.f32.mrb[0].mxu0
    %v2091 = vadd.f32 0.0, %v2090
    %v2092 = vpop.f32.mrb[0].mxu0
    %2093 = vmatprep.mubr.f32.mxu0 0.0
    %2094 = vmatmul.mubr.f32.gmra.mrb[0].mxu0 %v82
    %v2095 = vpop.f32.mrb[0].mxu0
    %v2096 = vadd.f32 0.0, %v2095
    %v2097 = vpop.f32.mrb[0].mxu0
    %2098 = vmatprep.mubr.f32.mxu0 0.0
    %2099 = vmatmul.mubr.f32.gmra.mrb[0].mxu0 %v85
    %v2100 = vpop.f32.mrb[0].mxu0
    %v2101 = vadd.f32 0.0, %v2100
    %v2102 = vpop.f32.mrb[0].mxu0
    %2103 = vmatprep.mubr.f32.mxu0 0.0
    %2104 = vmatmul.mubr.f32.gmra.mrb[0].mxu0 %v88
    %v2105 = vpop.f32.mrb[0].mxu0
    %v2106 = vadd.f32 0.0, %v2105
    %v2107 = vpop.f32.mrb[0].mxu0
    %2108 = vmatprep.mubr.f32.mxu0 0.0
    %2109 = vmatmul.mubr.f32.gmra.mrb[0].mxu0 %v91
    %v2110 = vpop.f32.mrb[0].mxu0
    %v2111 = vadd.f32 0.0, %v2110
    %v2112 = vpop.f32.mrb[0].mxu0
    %2113 = vmatprep.mubr.f32.mxu0 0.0
    %2114 = vmatmul.mubr.f32.gmra.mrb[0].mxu0 %v94
    %v2115 = vpop.f32.mrb[0].mxu0
    %v2116 = vadd.f32 0.0, %v2115
    %v2117 = vpop.f32.mrb[0].mxu0
    %2118 = vmatprep.mubr.f32.mxu0 0.0
    %2119 = vmatmul.mubr.f32.gmra.mrb[0].mxu0 %v97
    %v2120 = vpop.f32.mrb[0].mxu0
    %v2121 = vadd.f32 0.0, %v2120
    %v2122 = vpop.f32.mrb[0].mxu0
    %2123 = vmatprep.mubr.f32.mxu0 0.0
    %2124 = vmatmul.mubr.f32.gmra.mrb[0].mxu0 %v100
    %v2125 = vpop.f32.mrb[0].mxu0
    %v2126 = vadd.f32 0.0, %v2125
    %v2127 = vpop.f32.mrb[0].mxu0
    %2128 = vmatprep.mubr.f32.mxu0 0.0
    %2129 = vmatmul.mubr.f32.gmra.mrb[0].mxu0 %v103
    %v2130 = vpop.f32.mrb[0].mxu0
    %v2131 = vadd.f32 0.0, %v2130
    %v2132 = vpop.f32.mrb[0].mxu0
    %2133 = vmatprep.mubr.f32.mxu0 0.0
    %2134 = vmatmul.mubr.f32.gmra.mrb[0].mxu0 %v106
    %v2135 = vpop.f32.mrb[0].mxu0
    %v2136 = vadd.f32 0.0, %v2135
    %v2137 = vpop.f32.mrb[0].mxu0
    %2138 = vmatprep.mubr.f32.mxu0 0.0
    %2139 = vmatmul.mubr.f32.gmra.mrb[0].mxu0 %v109
    %v2140 = vpop.f32.mrb[0].mxu0
    %v2141 = vadd.f32 0.0, %v2140
    %v2142 = vpop.f32.mrb[0].mxu0
    %2143 = vmatprep.mubr.f32.mxu0 0.0
    %2144 = vmatmul.mubr.f32.gmra.mrb[0].mxu0 %v112
    %v2145 = vpop.f32.mrb[0].mxu0
    %v2146 = vadd.f32 0.0, %v2145
    %v2147 = vpop.f32.mrb[0].mxu0
    %2148 = vmatprep.mubr.f32.mxu0 0.0
    %2149 = vmatmul.mubr.f32.gmra.mrb[0].mxu0 %v115
    %v2150 = vpop.f32.mrb[0].mxu0
    %v2151 = vadd.f32 0.0, %v2150
    %v2152 = vpop.f32.mrb[0].mxu0
    %2153 = vmatprep.mubr.f32.mxu0 0.0
    %2154 = vmatmul.mubr.f32.gmra.mrb[0].mxu0 %v118
    %v2155 = vpop.f32.mrb[0].mxu0
    %v2156 = vadd.f32 0.0, %v2155
    %v2157 = vpop.f32.mrb[0].mxu0
    %2158 = vmatprep.mubr.f32.mxu0 0.0
    %2159 = vmatmul.mubr.f32.gmra.mrb[0].mxu0 %v121
    %v2160 = vpop.f32.mrb[0].mxu0
    %v2161 = vadd.f32 0.0, %v2160
    %v2162 = vpop.f32.mrb[0].mxu0
    %2163 = vmatprep.mubr.f32.mxu0 0.0
    %2164 = vmatmul.mubr.f32.gmra.mrb[0].mxu0 %v124
    %v2165 = vpop.f32.mrb[0].mxu0
    %v2166 = vadd.f32 0.0, %v2165
    %v2167 = vpop.f32.mrb[0].mxu0
    %2168 = vmatprep.mubr.f32.mxu0 0.0
    %2169 = vmatmul.mubr.f32.gmra.mrb[0].mxu0 %v127
    %v2170 = vpop.f32.mrb[0].mxu0
    %v2171 = vadd.f32 0.0, %v2170
    %v2172 = vpop.f32.mrb[0].mxu0
    %2173 = vmatprep.mubr.f32.mxu0 0.0
    %2174 = vmatmul.mubr.f32.gmra.mrb[0].mxu0 %v130
    %v2175 = vpop.f32.mrb[0].mxu0
    %v2176 = vadd.f32 0.0, %v2175
    %v2177 = vpop.f32.mrb[0].mxu0
    %2178 = vmatprep.mubr.f32.mxu0 0.0
    %2179 = vmatmul.mubr.f32.gmra.mrb[0].mxu0 %v133
    %v2180 = vpop.f32.mrb[0].mxu0
    %v2181 = vadd.f32 0.0, %v2180
    %v2182 = vpop.f32.mrb[0].mxu0
    %2183 = vmatprep.mubr.f32.mxu0 0.0
    %2184 = vmatmul.mubr.f32.gmra.mrb[0].mxu0 %v136
    %v2185 = vpop.f32.mrb[0].mxu0
    %v2186 = vadd.f32 0.0, %v2185
    %v2187 = vpop.f32.mrb[0].mxu0
    %2188 = vmatprep.mubr.f32.mxu0 0.0
    %2189 = vmatmul.mubr.f32.gmra.mrb[0].mxu0 %v139
    %v2190 = vpop.f32.mrb[0].mxu0
    %v2191 = vadd.f32 0.0, %v2190
    %v2192 = vpop.f32.mrb[0].mxu0
    %2193 = vmatprep.mubr.f32.mxu0 0.0
    %2194 = vmatmul.mubr.f32.gmra.mrb[0].mxu0 %v142
    %v2195 = vpop.f32.mrb[0].mxu0
    %v2196 = vadd.f32 0.0, %v2195
    %v2197 = vpop.f32.mrb[0].mxu0
    %2198 = vmatprep.mubr.f32.mxu0 0.0
    %2199 = vmatmul.mubr.f32.gmra.mrb[0].mxu0 %v145
    %v2200 = vpop.f32.mrb[0].mxu0
    %v2201 = vadd.f32 0.0, %v2200
    %v2202 = vpop.f32.mrb[0].mxu0
    %2203 = vmatprep.mubr.f32.mxu0 0.0
    %2204 = vmatmul.mubr.f32.gmra.mrb[0].mxu0 %v148
    %v2205 = vpop.f32.mrb[0].mxu0
    %v2206 = vadd.f32 0.0, %v2205
    %v2207 = vpop.f32.mrb[0].mxu0
    %2208 = vmatprep.mubr.f32.mxu0 0.0
    %2209 = vmatmul.mubr.f32.gmra.mrb[0].mxu0 %v151
    %v2210 = vpop.f32.mrb[0].mxu0
    %v2211 = vadd.f32 0.0, %v2210
    %v2212 = vpop.f32.mrb[0].mxu0
    %2213 = vmatprep.mubr.f32.mxu0 0.0
    %2214 = vmatmul.mubr.f32.gmra.mrb[0].mxu0 %v154
    %v2215 = vpop.f32.mrb[0].mxu0
    %v2216 = vadd.f32 0.0, %v2215
    %v2217 = vpop.f32.mrb[0].mxu0
    %2218 = vmatprep.mubr.f32.mxu0 0.0
    %2219 = vmatmul.mubr.f32.gmra.mrb[0].mxu0 %v157
    %v2220 = vpop.f32.mrb[0].mxu0
    %v2221 = vadd.f32 0.0, %v2220
    %v2222 = vpop.f32.mrb[0].mxu0
    %2223 = vmatprep.mubr.f32.mxu0 0.0
    %2224 = vmatmul.mubr.f32.gmra.mrb[0].mxu0 %v160
    %v2225 = vpop.f32.mrb[0].mxu0
    %v2226 = vadd.f32 0.0, %v2225
    %v2227 = vpop.f32.mrb[0].mxu0
    %2228 = vmatprep.mubr.f32.mxu0 0.0
    %2229 = vmatmul.mubr.f32.gmra.mrb[0].mxu0 %v163
    %v2230 = vpop.f32.mrb[0].mxu0
    %v2231 = vadd.f32 0.0, %v2230
    %v2232 = vpop.f32.mrb[0].mxu0
    %2233 = vmatprep.mubr.f32.mxu0 0.0
    %2234 = vmatmul.mubr.f32.gmra.mrb[0].mxu0 %v166
    %v2235 = vpop.f32.mrb[0].mxu0
    %v2236 = vadd.f32 0.0, %v2235
    %v2237 = vpop.f32.mrb[0].mxu0
    %2238 = vmatprep.mubr.f32.mxu0 0.0
    %2239 = vmatmul.mubr.f32.gmra.mrb[0].mxu0 %v169
    %v2240 = vpop.f32.mrb[0].mxu0
    %v2241 = vadd.f32 0.0, %v2240
    %v2242 = vpop.f32.mrb[0].mxu0
    %2243 = vmatprep.mubr.f32.mxu0 0.0
    %2244 = vmatmul.mubr.f32.gmra.mrb[0].mxu0 %v172
    %v2245 = vpop.f32.mrb[0].mxu0
    %v2246 = vadd.f32 0.0, %v2245
    %v2247 = vpop.f32.mrb[0].mxu0
    %2248 = vmatprep.mubr.f32.mxu0 0.0
    %2249 = vmatmul.mubr.f32.gmra.mrb[0].mxu0 %v175
    %v2250 = vpop.f32.mrb[0].mxu0
    %v2251 = vadd.f32 0.0, %v2250
    %v2252 = vpop.f32.mrb[0].mxu0
    %2253 = vmatprep.mubr.f32.mxu0 0.0
    %2254 = vmatmul.mubr.f32.gmra.mrb[0].mxu0 %v178
    %v2255 = vpop.f32.mrb[0].mxu0
    %v2256 = vadd.f32 0.0, %v2255
    %v2257 = vpop.f32.mrb[0].mxu0
    %2258 = vmatprep.mubr.f32.mxu0 0.0
    %2259 = vmatmul.mubr.f32.gmra.mrb[0].mxu0 %v181
    %v2260 = vpop.f32.mrb[0].mxu0
    %v2261 = vadd.f32 0.0, %v2260
    %v2262 = vpop.f32.mrb[0].mxu0
    %2263 = vmatprep.mubr.f32.mxu0 0.0
    %2264 = vmatmul.mubr.f32.gmra.mrb[0].mxu0 %v184
    %v2265 = vpop.f32.mrb[0].mxu0
    %v2266 = vadd.f32 0.0, %v2265
    %v2267 = vpop.f32.mrb[0].mxu0
    %2268 = vmatprep.mubr.f32.mxu0 0.0
    %2269 = vmatmul.mubr.f32.gmra.mrb[0].mxu0 %v187
    %v2270 = vpop.f32.mrb[0].mxu0
    %v2271 = vadd.f32 0.0, %v2270
    %v2272 = vpop.f32.mrb[0].mxu0
    %2273 = vmatprep.mubr.f32.mxu0 0.0
    %2274 = vmatmul.mubr.f32.gmra.mrb[0].mxu0 %v190
    %v2275 = vpop.f32.mrb[0].mxu0
    %v2276 = vadd.f32 0.0, %v2275
    %v2277 = vpop.f32.mrb[0].mxu0
    %2278 = vmatprep.mubr.f32.mxu0 0.0
    %2279 = vmatmul.mubr.f32.gmra.mrb[0].mxu0 %v193
    %v2280 = vpop.f32.mrb[0].mxu0
    %v2281 = vadd.f32 0.0, %v2280
    %v2282 = vpop.f32.mrb[0].mxu0
    %2283 = vmatprep.mubr.f32.mxu0 0.0
    %2284 = vmatmul.mubr.f32.gmra.mrb[0].mxu0 %v196
    %v2285 = vpop.f32.mrb[0].mxu0
    %v2286 = vadd.f32 0.0, %v2285
    %v2287 = vpop.f32.mrb[0].mxu0
    %2288 = vmatprep.mubr.f32.mxu0 0.0
    %2289 = vmatmul.mubr.f32.gmra.mrb[0].mxu0 %v199
    %v2290 = vpop.f32.mrb[0].mxu0
    %v2291 = vadd.f32 0.0, %v2290
    %v2292 = vpop.f32.mrb[0].mxu0
    %2293 = vmatprep.mubr.f32.mxu0 0.0
    %2294 = vmatmul.mubr.f32.gmra.mrb[0].mxu0 %v202
    %v2295 = vpop.f32.mrb[0].mxu0
    %v2296 = vadd.f32 0.0, %v2295
    %v2297 = vpop.f32.mrb[0].mxu0
    %2298 = vmatprep.mubr.f32.mxu0 0.0
    %2299 = vmatmul.mubr.f32.gmra.mrb[0].mxu0 %v205
    %v2300 = vpop.f32.mrb[0].mxu0
    %v2301 = vadd.f32 0.0, %v2300
    %v2302 = vpop.f32.mrb[0].mxu0
    %2303 = vmatprep.mubr.f32.mxu0 0.0
    %2304 = vmatmul.mubr.f32.gmra.mrb[0].mxu0 %v208
    %v2305 = vpop.f32.mrb[0].mxu0
    %v2306 = vadd.f32 0.0, %v2305
    %v2307 = vpop.f32.mrb[0].mxu0
    %2308 = vmatprep.mubr.f32.mxu0 0.0
    %2309 = vmatmul.mubr.f32.gmra.mrb[0].mxu0 %v211
    %v2310 = vpop.f32.mrb[0].mxu0
    %v2311 = vadd.f32 0.0, %v2310
    %v2312 = vpop.f32.mrb[0].mxu0
    %2313 = vdwg.mxu0
    %v2314 = vadd.f32 %v2136, %v2076
    %v2315 = vadd.f32 %v2141, %v2081
    %v2316 = vadd.f32 %v2146, %v2086
    %v2317 = vadd.f32 %v2151, %v2091
    %v2318 = vxor.u32 %v2314, 2147483648
    %v2319 = vxor.u32 %v2315, 2147483648
    %v2320 = vxor.u32 %v2316, 2147483648
    %v2321 = vxor.u32 %v2317, 2147483648
    %v2322 = vmul.f32 %v2318, 1.442695
    %v2323 = vpow.pop %v2322
    %v2324 = vmul.f32 %v2319, 1.442695
    %v2325 = vpow.pop %v2324
    %v2326 = vmul.f32 %v2320, 1.442695
    %v2327 = vpow.pop %v2326
    %v2328 = vmul.f32 %v2321, 1.442695
    %v2329 = vpow.pop %v2328
    %v2330 = vadd.f32 %v2323, 1.0
    %v2331 = vadd.f32 %v2325, 1.0
    %v2332 = vadd.f32 %v2327, 1.0
    %v2333 = vadd.f32 %v2329, 1.0
    %v2334 = vrcp.pop %v2330
    %v2335 = vmul.f32 1.0, %v2334
    %v2336 = vrcp.pop %v2331
    %v2337 = vmul.f32 1.0, %v2336
    %v2338 = vrcp.pop %v2332
    %v2339 = vmul.f32 1.0, %v2338
    %v2340 = vrcp.pop %v2333
    %v2341 = vmul.f32 1.0, %v2340
    %v2342 = vadd.f32 %v2156, %v2096
    %v2343 = vadd.f32 %v2161, %v2101
    %v2344 = vadd.f32 %v2166, %v2106
    %v2345 = vadd.f32 %v2171, %v2111
    %v2346 = vxor.u32 %v2342, 2147483648
    %v2347 = vxor.u32 %v2343, 2147483648
    %v2348 = vxor.u32 %v2344, 2147483648
    %v2349 = vxor.u32 %v2345, 2147483648
    %v2350 = vmul.f32 %v2346, 1.442695
    %v2351 = vpow.pop %v2350
    %v2352 = vmul.f32 %v2347, 1.442695
    %v2353 = vpow.pop %v2352
    %v2354 = vmul.f32 %v2348, 1.442695
    %v2355 = vpow.pop %v2354
    %v2356 = vmul.f32 %v2349, 1.442695
    %v2357 = vpow.pop %v2356
    %v2358 = vadd.f32 %v2351, 1.0
    %v2359 = vadd.f32 %v2353, 1.0
    %v2360 = vadd.f32 %v2355, 1.0
    %v2361 = vadd.f32 %v2357, 1.0
    %v2362 = vrcp.pop %v2358
    %v2363 = vmul.f32 1.0, %v2362
    %v2364 = vrcp.pop %v2359
    %v2365 = vmul.f32 1.0, %v2364
    %v2366 = vrcp.pop %v2360
    %v2367 = vmul.f32 1.0, %v2366
    %v2368 = vrcp.pop %v2361
    %v2369 = vmul.f32 1.0, %v2368
    %v2370 = vmul.f32 %v2335, %v2116
    %v2371 = vmul.f32 %v2337, %v2121
    %v2372 = vmul.f32 %v2339, %v2126
    %v2373 = vmul.f32 %v2341, %v2131
    %v2374 = vadd.f32 %v2176, %v2370
    %v2375 = vadd.f32 %v2181, %v2371
    %v2376 = vadd.f32 %v2186, %v2372
    %v2377 = vadd.f32 %v2191, %v2373
    %v2378 = vtanh.pop %v2374
    %v2379 = vtanh.pop %v2375
    %v2380 = vtanh.pop %v2376
    %v2381 = vtanh.pop %v2377
    %v2382 = vsub.f32 1.0, %v2363
    %v2383 = vsub.f32 1.0, %v2365
    %v2384 = vsub.f32 1.0, %v2367
    %v2385 = vsub.f32 1.0, %v2369
    %v2386 = vmul.f32 %v2382, %v2378
    %v2387 = vmul.f32 %v2383, %v2379
    %v2388 = vmul.f32 %v2384, %v2380
    %v2389 = vmul.f32 %v2385, %v2381
    %v2390 = vmul.f32 %v2363, %v1918
    %v2391 = vmul.f32 %v2365, %v1919
    %v2392 = vmul.f32 %v2367, %v1920
    %v2393 = vmul.f32 %v2369, %v1921
    %v2394 = vadd.f32 %v2386, %v2390
    %v2395 = vadd.f32 %v2387, %v2391
    %v2396 = vadd.f32 %v2388, %v2392
    %v2397 = vadd.f32 %v2389, %v2393
    %v2398 = vadd.f32 %v2256, %v2196
    %v2399 = vadd.f32 %v2261, %v2201
    %v2400 = vadd.f32 %v2266, %v2206
    %v2401 = vadd.f32 %v2271, %v2211
    %v2402 = vxor.u32 %v2398, 2147483648
    %v2403 = vxor.u32 %v2399, 2147483648
    %v2404 = vxor.u32 %v2400, 2147483648
    %v2405 = vxor.u32 %v2401, 2147483648
    %v2406 = vmul.f32 %v2402, 1.442695
    %v2407 = vpow.pop %v2406
    %v2408 = vmul.f32 %v2403, 1.442695
    %v2409 = vpow.pop %v2408
    %v2410 = vmul.f32 %v2404, 1.442695
    %v2411 = vpow.pop %v2410
    %v2412 = vmul.f32 %v2405, 1.442695
    %v2413 = vpow.pop %v2412
    %v2414 = vadd.f32 %v2407, 1.0
    %v2415 = vadd.f32 %v2409, 1.0
    %v2416 = vadd.f32 %v2411, 1.0
    %v2417 = vadd.f32 %v2413, 1.0
    %v2418 = vrcp.pop %v2414
    %v2419 = vmul.f32 1.0, %v2418
    %v2420 = vrcp.pop %v2415
    %v2421 = vmul.f32 1.0, %v2420
    %v2422 = vrcp.pop %v2416
    %v2423 = vmul.f32 1.0, %v2422
    %v2424 = vrcp.pop %v2417
    %v2425 = vmul.f32 1.0, %v2424
    %v2426 = vadd.f32 %v2276, %v2216
    %v2427 = vadd.f32 %v2281, %v2221
    %v2428 = vadd.f32 %v2286, %v2226
    %v2429 = vadd.f32 %v2291, %v2231
    %v2430 = vxor.u32 %v2426, 2147483648
    %v2431 = vxor.u32 %v2427, 2147483648
    %v2432 = vxor.u32 %v2428, 2147483648
    %v2433 = vxor.u32 %v2429, 2147483648
    %v2434 = vmul.f32 %v2430, 1.442695
    %v2435 = vpow.pop %v2434
    %v2436 = vmul.f32 %v2431, 1.442695
    %v2437 = vpow.pop %v2436
    %v2438 = vmul.f32 %v2432, 1.442695
    %v2439 = vpow.pop %v2438
    %v2440 = vmul.f32 %v2433, 1.442695
    %v2441 = vpow.pop %v2440
    %v2442 = vadd.f32 %v2435, 1.0
    %v2443 = vadd.f32 %v2437, 1.0
    %v2444 = vadd.f32 %v2439, 1.0
    %v2445 = vadd.f32 %v2441, 1.0
    %v2446 = vrcp.pop %v2442
    %v2447 = vmul.f32 1.0, %v2446
    %v2448 = vrcp.pop %v2443
    %v2449 = vmul.f32 1.0, %v2448
    %v2450 = vrcp.pop %v2444
    %v2451 = vmul.f32 1.0, %v2450
    %v2452 = vrcp.pop %v2445
    %v2453 = vmul.f32 1.0, %v2452
    %v2454 = vmul.f32 %v2419, %v2236
    %v2455 = vmul.f32 %v2421, %v2241
    %v2456 = vmul.f32 %v2423, %v2246
    %v2457 = vmul.f32 %v2425, %v2251
    %v2458 = vadd.f32 %v2296, %v2454
    %v2459 = vadd.f32 %v2301, %v2455
    %v2460 = vadd.f32 %v2306, %v2456
    %v2461 = vadd.f32 %v2311, %v2457
    %v2462 = vtanh.pop %v2458
    %v2463 = vtanh.pop %v2459
    %v2464 = vtanh.pop %v2460
    %v2465 = vtanh.pop %v2461
    %v2466 = vsub.f32 1.0, %v2447
    %v2467 = vsub.f32 1.0, %v2449
    %v2468 = vsub.f32 1.0, %v2451
    %v2469 = vsub.f32 1.0, %v2453
    %v2470 = vmul.f32 %v2466, %v2462
    %v2471 = vmul.f32 %v2467, %v2463
    %v2472 = vmul.f32 %v2468, %v2464
    %v2473 = vmul.f32 %v2469, %v2465
    %v2474 = vmul.f32 %v2447, %v2002
    %v2475 = vmul.f32 %v2449, %v2003
    %v2476 = vmul.f32 %v2451, %v2004
    %v2477 = vmul.f32 %v2453, %v2005
    %v2478 = vadd.f32 %v2470, %v2474
    %v2479 = vadd.f32 %v2471, %v2475
    %v2480 = vadd.f32 %v2472, %v2476
    %v2481 = vadd.f32 %v2473, %v2477
    %s2482 = scalar_lea.vmem %s0, 80
    %v2483 = vld [vmem:[%s2482] sm:$0xff]
    %v2484 = vld [vmem:[%s2482 + $0x8] sm:$0xff]
    %2485 = vmatprep.subr.mxu0 0.0
    %2486 = vmatpush1.msra.mxu0 %v2394
    %2487 = vmatprep.subr.mxu0 0.0
    %2488 = vmatpush1.msra.mxu0 %v2395
    %2489 = vmatprep.subr.mxu0 0.0
    %2490 = vmatpush1.msra.mxu0 %v2396
    %2491 = vmatprep.subr.mxu0 0.0
    %2492 = vmatpush1.msra.mxu0 %v2397
    %2493 = vmatprep.subr.mxu0 0.0
    %2494 = vmatpush1.msra.mxu0 %v2478
    %2495 = vmatprep.subr.mxu0 0.0
    %2496 = vmatpush1.msra.mxu0 %v2479
    %2497 = vmatprep.subr.mxu0 0.0
    %2498 = vmatpush1.msra.mxu0 %v2480
    %2499 = vmatprep.subr.mxu0 0.0
    %2500 = vmatpush1.msra.mxu0 %v2481
    %2501 = vmatprep.subr.mxu0 0.0
    %2502 = vmatpush1.msra.mxu0 %v2483
    %2503 = vmatprep.subr.mxu0 0.0
    %2504 = vmatpush1.msra.mxu0 %v2484
    %2505 = vmatprep.subr.mxu0 0.0
    %2506 = vmatpush1.msra.mxu0 0.0
    %2507 = vmatprep.subr.mxu0 0.0
    %2508 = vmatpush1.msra.mxu0 0.0
    %2509 = vmatprep.subr.mxu0 0.0
    %2510 = vmatpush1.msra.mxu0 0.0
    %2511 = vmatprep.subr.mxu0 0.0
    %2512 = vmatpush1.msra.mxu0 0.0
    %2513 = vmatprep.subr.mxu0 0.0
    %2514 = vmatpush1.msra.mxu0 0.0
    %2515 = vmatprep.subr.mxu0 0.0
    %2516 = vmatpush1.msra.mxu0 0.0
    %2517 = vmatprep.subr.mxu0 0.0
    %2518 = vmatpush1.msra.mxu0 0.0
    %2519 = vmatprep.subr.mxu0 0.0
    %2520 = vmatpush1.msra.mxu0 0.0
    %2521 = vmatprep.subr.mxu0 0.0
    %2522 = vmatpush1.msra.mxu0 0.0
    %2523 = vmatprep.subr.mxu0 0.0
    %2524 = vmatpush1.msra.mxu0 0.0
    %2525 = vmatprep.subr.mxu0 0.0
    %2526 = vmatpush1.msra.mxu0 0.0
    %2527 = vmatprep.subr.mxu0 0.0
    %2528 = vmatpush1.msra.mxu0 0.0
    %2529 = vmatprep.subr.mxu0 0.0
    %2530 = vmatpush1.msra.mxu0 0.0
    %2531 = vmatprep.subr.mxu0 0.0
    %2532 = vmatpush1.msra.mxu0 0.0
    %2533 = vmatprep.subr.mxu0 0.0
    %2534 = vmatpush1.msra.mxu0 0.0
    %2535 = vmatprep.subr.mxu0 0.0
    %2536 = vmatpush1.msra.mxu0 0.0
    %2537 = vmatprep.subr.mxu0 0.0
    %2538 = vmatpush1.msra.mxu0 0.0
    %2539 = vmatprep.subr.mxu0 0.0
    %2540 = vmatpush1.msra.mxu0 0.0
    %2541 = vmatprep.subr.mxu0 0.0
    %2542 = vmatpush1.msra.mxu0 0.0
    %2543 = vmatprep.subr.mxu0 0.0
    %2544 = vmatpush1.msra.mxu0 0.0
    %2545 = vmatprep.subr.mxu0 0.0
    %2546 = vmatpush1.msra.mxu0 0.0
    %2547 = vmatprep.subr.mxu0 0.0
    %2548 = vmatpush1.msra.mxu0 0.0
    %2549 = vmatprep.mubr.f32.mxu0 0.0
    %2550 = vmatmul.mubr.f32.gmra.mrb[0].mxu0 %v70
    %v2551 = vpop.f32.mrb[0].mxu0
    %v2552 = vadd.f32 0.0, %v2551
    %v2553 = vpop.f32.mrb[0].mxu0
    %2554 = vmatprep.mubr.f32.mxu0 0.0
    %2555 = vmatmul.mubr.f32.gmra.mrb[0].mxu0 %v73
    %v2556 = vpop.f32.mrb[0].mxu0
    %v2557 = vadd.f32 0.0, %v2556
    %v2558 = vpop.f32.mrb[0].mxu0
    %2559 = vmatprep.mubr.f32.mxu0 0.0
    %2560 = vmatmul.mubr.f32.gmra.mrb[0].mxu0 %v76
    %v2561 = vpop.f32.mrb[0].mxu0
    %v2562 = vadd.f32 0.0, %v2561
    %v2563 = vpop.f32.mrb[0].mxu0
    %2564 = vmatprep.mubr.f32.mxu0 0.0
    %2565 = vmatmul.mubr.f32.gmra.mrb[0].mxu0 %v79
    %v2566 = vpop.f32.mrb[0].mxu0
    %v2567 = vadd.f32 0.0, %v2566
    %v2568 = vpop.f32.mrb[0].mxu0
    %2569 = vmatprep.mubr.f32.mxu0 0.0
    %2570 = vmatmul.mubr.f32.gmra.mrb[0].mxu0 %v82
    %v2571 = vpop.f32.mrb[0].mxu0
    %v2572 = vadd.f32 0.0, %v2571
    %v2573 = vpop.f32.mrb[0].mxu0
    %2574 = vmatprep.mubr.f32.mxu0 0.0
    %2575 = vmatmul.mubr.f32.gmra.mrb[0].mxu0 %v85
    %v2576 = vpop.f32.mrb[0].mxu0
    %v2577 = vadd.f32 0.0, %v2576
    %v2578 = vpop.f32.mrb[0].mxu0
    %2579 = vmatprep.mubr.f32.mxu0 0.0
    %2580 = vmatmul.mubr.f32.gmra.mrb[0].mxu0 %v88
    %v2581 = vpop.f32.mrb[0].mxu0
    %v2582 = vadd.f32 0.0, %v2581
    %v2583 = vpop.f32.mrb[0].mxu0
    %2584 = vmatprep.mubr.f32.mxu0 0.0
    %2585 = vmatmul.mubr.f32.gmra.mrb[0].mxu0 %v91
    %v2586 = vpop.f32.mrb[0].mxu0
    %v2587 = vadd.f32 0.0, %v2586
    %v2588 = vpop.f32.mrb[0].mxu0
    %2589 = vmatprep.mubr.f32.mxu0 0.0
    %2590 = vmatmul.mubr.f32.gmra.mrb[0].mxu0 %v94
    %v2591 = vpop.f32.mrb[0].mxu0
    %v2592 = vadd.f32 0.0, %v2591
    %v2593 = vpop.f32.mrb[0].mxu0
    %2594 = vmatprep.mubr.f32.mxu0 0.0
    %2595 = vmatmul.mubr.f32.gmra.mrb[0].mxu0 %v97
    %v2596 = vpop.f32.mrb[0].mxu0
    %v2597 = vadd.f32 0.0, %v2596
    %v2598 = vpop.f32.mrb[0].mxu0
    %2599 = vmatprep.mubr.f32.mxu0 0.0
    %2600 = vmatmul.mubr.f32.gmra.mrb[0].mxu0 %v100
    %v2601 = vpop.f32.mrb[0].mxu0
    %v2602 = vadd.f32 0.0, %v2601
    %v2603 = vpop.f32.mrb[0].mxu0
    %2604 = vmatprep.mubr.f32.mxu0 0.0
    %2605 = vmatmul.mubr.f32.gmra.mrb[0].mxu0 %v103
    %v2606 = vpop.f32.mrb[0].mxu0
    %v2607 = vadd.f32 0.0, %v2606
    %v2608 = vpop.f32.mrb[0].mxu0
    %2609 = vmatprep.mubr.f32.mxu0 0.0
    %2610 = vmatmul.mubr.f32.gmra.mrb[0].mxu0 %v106
    %v2611 = vpop.f32.mrb[0].mxu0
    %v2612 = vadd.f32 0.0, %v2611
    %v2613 = vpop.f32.mrb[0].mxu0
    %2614 = vmatprep.mubr.f32.mxu0 0.0
    %2615 = vmatmul.mubr.f32.gmra.mrb[0].mxu0 %v109
    %v2616 = vpop.f32.mrb[0].mxu0
    %v2617 = vadd.f32 0.0, %v2616
    %v2618 = vpop.f32.mrb[0].mxu0
    %2619 = vmatprep.mubr.f32.mxu0 0.0
    %2620 = vmatmul.mubr.f32.gmra.mrb[0].mxu0 %v112
    %v2621 = vpop.f32.mrb[0].mxu0
    %v2622 = vadd.f32 0.0, %v2621
    %v2623 = vpop.f32.mrb[0].mxu0
    %2624 = vmatprep.mubr.f32.mxu0 0.0
    %2625 = vmatmul.mubr.f32.gmra.mrb[0].mxu0 %v115
    %v2626 = vpop.f32.mrb[0].mxu0
    %v2627 = vadd.f32 0.0, %v2626
    %v2628 = vpop.f32.mrb[0].mxu0
    %2629 = vmatprep.mubr.f32.mxu0 0.0
    %2630 = vmatmul.mubr.f32.gmra.mrb[0].mxu0 %v118
    %v2631 = vpop.f32.mrb[0].mxu0
    %v2632 = vadd.f32 0.0, %v2631
    %v2633 = vpop.f32.mrb[0].mxu0
    %2634 = vmatprep.mubr.f32.mxu0 0.0
    %2635 = vmatmul.mubr.f32.gmra.mrb[0].mxu0 %v121
    %v2636 = vpop.f32.mrb[0].mxu0
    %v2637 = vadd.f32 0.0, %v2636
    %v2638 = vpop.f32.mrb[0].mxu0
    %2639 = vmatprep.mubr.f32.mxu0 0.0
    %2640 = vmatmul.mubr.f32.gmra.mrb[0].mxu0 %v124
    %v2641 = vpop.f32.mrb[0].mxu0
    %v2642 = vadd.f32 0.0, %v2641
    %v2643 = vpop.f32.mrb[0].mxu0
    %2644 = vmatprep.mubr.f32.mxu0 0.0
    %2645 = vmatmul.mubr.f32.gmra.mrb[0].mxu0 %v127
    %v2646 = vpop.f32.mrb[0].mxu0
    %v2647 = vadd.f32 0.0, %v2646
    %v2648 = vpop.f32.mrb[0].mxu0
    %2649 = vmatprep.mubr.f32.mxu0 0.0
    %2650 = vmatmul.mubr.f32.gmra.mrb[0].mxu0 %v130
    %v2651 = vpop.f32.mrb[0].mxu0
    %v2652 = vadd.f32 0.0, %v2651
    %v2653 = vpop.f32.mrb[0].mxu0
    %2654 = vmatprep.mubr.f32.mxu0 0.0
    %2655 = vmatmul.mubr.f32.gmra.mrb[0].mxu0 %v133
    %v2656 = vpop.f32.mrb[0].mxu0
    %v2657 = vadd.f32 0.0, %v2656
    %v2658 = vpop.f32.mrb[0].mxu0
    %2659 = vmatprep.mubr.f32.mxu0 0.0
    %2660 = vmatmul.mubr.f32.gmra.mrb[0].mxu0 %v136
    %v2661 = vpop.f32.mrb[0].mxu0
    %v2662 = vadd.f32 0.0, %v2661
    %v2663 = vpop.f32.mrb[0].mxu0
    %2664 = vmatprep.mubr.f32.mxu0 0.0
    %2665 = vmatmul.mubr.f32.gmra.mrb[0].mxu0 %v139
    %v2666 = vpop.f32.mrb[0].mxu0
    %v2667 = vadd.f32 0.0, %v2666
    %v2668 = vpop.f32.mrb[0].mxu0
    %2669 = vmatprep.mubr.f32.mxu0 0.0
    %2670 = vmatmul.mubr.f32.gmra.mrb[0].mxu0 %v142
    %v2671 = vpop.f32.mrb[0].mxu0
    %v2672 = vadd.f32 0.0, %v2671
    %v2673 = vpop.f32.mrb[0].mxu0
    %2674 = vmatprep.mubr.f32.mxu0 0.0
    %2675 = vmatmul.mubr.f32.gmra.mrb[0].mxu0 %v145
    %v2676 = vpop.f32.mrb[0].mxu0
    %v2677 = vadd.f32 0.0, %v2676
    %v2678 = vpop.f32.mrb[0].mxu0
    %2679 = vmatprep.mubr.f32.mxu0 0.0
    %2680 = vmatmul.mubr.f32.gmra.mrb[0].mxu0 %v148
    %v2681 = vpop.f32.mrb[0].mxu0
    %v2682 = vadd.f32 0.0, %v2681
    %v2683 = vpop.f32.mrb[0].mxu0
    %2684 = vmatprep.mubr.f32.mxu0 0.0
    %2685 = vmatmul.mubr.f32.gmra.mrb[0].mxu0 %v151
    %v2686 = vpop.f32.mrb[0].mxu0
    %v2687 = vadd.f32 0.0, %v2686
    %v2688 = vpop.f32.mrb[0].mxu0
    %2689 = vmatprep.mubr.f32.mxu0 0.0
    %2690 = vmatmul.mubr.f32.gmra.mrb[0].mxu0 %v154
    %v2691 = vpop.f32.mrb[0].mxu0
    %v2692 = vadd.f32 0.0, %v2691
    %v2693 = vpop.f32.mrb[0].mxu0
    %2694 = vmatprep.mubr.f32.mxu0 0.0
    %2695 = vmatmul.mubr.f32.gmra.mrb[0].mxu0 %v157
    %v2696 = vpop.f32.mrb[0].mxu0
    %v2697 = vadd.f32 0.0, %v2696
    %v2698 = vpop.f32.mrb[0].mxu0
    %2699 = vmatprep.mubr.f32.mxu0 0.0
    %2700 = vmatmul.mubr.f32.gmra.mrb[0].mxu0 %v160
    %v2701 = vpop.f32.mrb[0].mxu0
    %v2702 = vadd.f32 0.0, %v2701
    %v2703 = vpop.f32.mrb[0].mxu0
    %2704 = vmatprep.mubr.f32.mxu0 0.0
    %2705 = vmatmul.mubr.f32.gmra.mrb[0].mxu0 %v163
    %v2706 = vpop.f32.mrb[0].mxu0
    %v2707 = vadd.f32 0.0, %v2706
    %v2708 = vpop.f32.mrb[0].mxu0
    %2709 = vmatprep.mubr.f32.mxu0 0.0
    %2710 = vmatmul.mubr.f32.gmra.mrb[0].mxu0 %v166
    %v2711 = vpop.f32.mrb[0].mxu0
    %v2712 = vadd.f32 0.0, %v2711
    %v2713 = vpop.f32.mrb[0].mxu0
    %2714 = vmatprep.mubr.f32.mxu0 0.0
    %2715 = vmatmul.mubr.f32.gmra.mrb[0].mxu0 %v169
    %v2716 = vpop.f32.mrb[0].mxu0
    %v2717 = vadd.f32 0.0, %v2716
    %v2718 = vpop.f32.mrb[0].mxu0
    %2719 = vmatprep.mubr.f32.mxu0 0.0
    %2720 = vmatmul.mubr.f32.gmra.mrb[0].mxu0 %v172
    %v2721 = vpop.f32.mrb[0].mxu0
    %v2722 = vadd.f32 0.0, %v2721
    %v2723 = vpop.f32.mrb[0].mxu0
    %2724 = vmatprep.mubr.f32.mxu0 0.0
    %2725 = vmatmul.mubr.f32.gmra.mrb[0].mxu0 %v175
    %v2726 = vpop.f32.mrb[0].mxu0
    %v2727 = vadd.f32 0.0, %v2726
    %v2728 = vpop.f32.mrb[0].mxu0
    %2729 = vmatprep.mubr.f32.mxu0 0.0
    %2730 = vmatmul.mubr.f32.gmra.mrb[0].mxu0 %v178
    %v2731 = vpop.f32.mrb[0].mxu0
    %v2732 = vadd.f32 0.0, %v2731
    %v2733 = vpop.f32.mrb[0].mxu0
    %2734 = vmatprep.mubr.f32.mxu0 0.0
    %2735 = vmatmul.mubr.f32.gmra.mrb[0].mxu0 %v181
    %v2736 = vpop.f32.mrb[0].mxu0
    %v2737 = vadd.f32 0.0, %v2736
    %v2738 = vpop.f32.mrb[0].mxu0
    %2739 = vmatprep.mubr.f32.mxu0 0.0
    %2740 = vmatmul.mubr.f32.gmra.mrb[0].mxu0 %v184
    %v2741 = vpop.f32.mrb[0].mxu0
    %v2742 = vadd.f32 0.0, %v2741
    %v2743 = vpop.f32.mrb[0].mxu0
    %2744 = vmatprep.mubr.f32.mxu0 0.0
    %2745 = vmatmul.mubr.f32.gmra.mrb[0].mxu0 %v187
    %v2746 = vpop.f32.mrb[0].mxu0
    %v2747 = vadd.f32 0.0, %v2746
    %v2748 = vpop.f32.mrb[0].mxu0
    %2749 = vmatprep.mubr.f32.mxu0 0.0
    %2750 = vmatmul.mubr.f32.gmra.mrb[0].mxu0 %v190
    %v2751 = vpop.f32.mrb[0].mxu0
    %v2752 = vadd.f32 0.0, %v2751
    %v2753 = vpop.f32.mrb[0].mxu0
    %2754 = vmatprep.mubr.f32.mxu0 0.0
    %2755 = vmatmul.mubr.f32.gmra.mrb[0].mxu0 %v193
    %v2756 = vpop.f32.mrb[0].mxu0
    %v2757 = vadd.f32 0.0, %v2756
    %v2758 = vpop.f32.mrb[0].mxu0
    %2759 = vmatprep.mubr.f32.mxu0 0.0
    %2760 = vmatmul.mubr.f32.gmra.mrb[0].mxu0 %v196
    %v2761 = vpop.f32.mrb[0].mxu0
    %v2762 = vadd.f32 0.0, %v2761
    %v2763 = vpop.f32.mrb[0].mxu0
    %2764 = vmatprep.mubr.f32.mxu0 0.0
    %2765 = vmatmul.mubr.f32.gmra.mrb[0].mxu0 %v199
    %v2766 = vpop.f32.mrb[0].mxu0
    %v2767 = vadd.f32 0.0, %v2766
    %v2768 = vpop.f32.mrb[0].mxu0
    %2769 = vmatprep.mubr.f32.mxu0 0.0
    %2770 = vmatmul.mubr.f32.gmra.mrb[0].mxu0 %v202
    %v2771 = vpop.f32.mrb[0].mxu0
    %v2772 = vadd.f32 0.0, %v2771
    %v2773 = vpop.f32.mrb[0].mxu0
    %2774 = vmatprep.mubr.f32.mxu0 0.0
    %2775 = vmatmul.mubr.f32.gmra.mrb[0].mxu0 %v205
    %v2776 = vpop.f32.mrb[0].mxu0
    %v2777 = vadd.f32 0.0, %v2776
    %v2778 = vpop.f32.mrb[0].mxu0
    %2779 = vmatprep.mubr.f32.mxu0 0.0
    %2780 = vmatmul.mubr.f32.gmra.mrb[0].mxu0 %v208
    %v2781 = vpop.f32.mrb[0].mxu0
    %v2782 = vadd.f32 0.0, %v2781
    %v2783 = vpop.f32.mrb[0].mxu0
    %2784 = vmatprep.mubr.f32.mxu0 0.0
    %2785 = vmatmul.mubr.f32.gmra.mrb[0].mxu0 %v211
    %v2786 = vpop.f32.mrb[0].mxu0
    %v2787 = vadd.f32 0.0, %v2786
    %v2788 = vpop.f32.mrb[0].mxu0
    %2789 = vdwg.mxu0
    %v2790 = vadd.f32 %v2612, %v2552
    %v2791 = vadd.f32 %v2617, %v2557
    %v2792 = vadd.f32 %v2622, %v2562
    %v2793 = vadd.f32 %v2627, %v2567
    %v2794 = vxor.u32 %v2790, 2147483648
    %v2795 = vxor.u32 %v2791, 2147483648
    %v2796 = vxor.u32 %v2792, 2147483648
    %v2797 = vxor.u32 %v2793, 2147483648
    %v2798 = vmul.f32 %v2794, 1.442695
    %v2799 = vpow.pop %v2798
    %v2800 = vmul.f32 %v2795, 1.442695
    %v2801 = vpow.pop %v2800
    %v2802 = vmul.f32 %v2796, 1.442695
    %v2803 = vpow.pop %v2802
    %v2804 = vmul.f32 %v2797, 1.442695
    %v2805 = vpow.pop %v2804
    %v2806 = vadd.f32 %v2799, 1.0
    %v2807 = vadd.f32 %v2801, 1.0
    %v2808 = vadd.f32 %v2803, 1.0
    %v2809 = vadd.f32 %v2805, 1.0
    %v2810 = vrcp.pop %v2806
    %v2811 = vmul.f32 1.0, %v2810
    %v2812 = vrcp.pop %v2807
    %v2813 = vmul.f32 1.0, %v2812
    %v2814 = vrcp.pop %v2808
    %v2815 = vmul.f32 1.0, %v2814
    %v2816 = vrcp.pop %v2809
    %v2817 = vmul.f32 1.0, %v2816
    %v2818 = vadd.f32 %v2632, %v2572
    %v2819 = vadd.f32 %v2637, %v2577
    %v2820 = vadd.f32 %v2642, %v2582
    %v2821 = vadd.f32 %v2647, %v2587
    %v2822 = vxor.u32 %v2818, 2147483648
    %v2823 = vxor.u32 %v2819, 2147483648
    %v2824 = vxor.u32 %v2820, 2147483648
    %v2825 = vxor.u32 %v2821, 2147483648
    %v2826 = vmul.f32 %v2822, 1.442695
    %v2827 = vpow.pop %v2826
    %v2828 = vmul.f32 %v2823, 1.442695
    %v2829 = vpow.pop %v2828
    %v2830 = vmul.f32 %v2824, 1.442695
    %v2831 = vpow.pop %v2830
    %v2832 = vmul.f32 %v2825, 1.442695
    %v2833 = vpow.pop %v2832
    %v2834 = vadd.f32 %v2827, 1.0
    %v2835 = vadd.f32 %v2829, 1.0
    %v2836 = vadd.f32 %v2831, 1.0
    %v2837 = vadd.f32 %v2833, 1.0
    %v2838 = vrcp.pop %v2834
    %v2839 = vmul.f32 1.0, %v2838
    %v2840 = vrcp.pop %v2835
    %v2841 = vmul.f32 1.0, %v2840
    %v2842 = vrcp.pop %v2836
    %v2843 = vmul.f32 1.0, %v2842
    %v2844 = vrcp.pop %v2837
    %v2845 = vmul.f32 1.0, %v2844
    %v2846 = vmul.f32 %v2811, %v2592
    %v2847 = vmul.f32 %v2813, %v2597
    %v2848 = vmul.f32 %v2815, %v2602
    %v2849 = vmul.f32 %v2817, %v2607
    %v2850 = vadd.f32 %v2652, %v2846
    %v2851 = vadd.f32 %v2657, %v2847
    %v2852 = vadd.f32 %v2662, %v2848
    %v2853 = vadd.f32 %v2667, %v2849
    %v2854 = vtanh.pop %v2850
    %v2855 = vtanh.pop %v2851
    %v2856 = vtanh.pop %v2852
    %v2857 = vtanh.pop %v2853
    %v2858 = vsub.f32 1.0, %v2839
    %v2859 = vsub.f32 1.0, %v2841
    %v2860 = vsub.f32 1.0, %v2843
    %v2861 = vsub.f32 1.0, %v2845
    %v2862 = vmul.f32 %v2858, %v2854
    %v2863 = vmul.f32 %v2859, %v2855
    %v2864 = vmul.f32 %v2860, %v2856
    %v2865 = vmul.f32 %v2861, %v2857
    %v2866 = vmul.f32 %v2839, %v2394
    %v2867 = vmul.f32 %v2841, %v2395
    %v2868 = vmul.f32 %v2843, %v2396
    %v2869 = vmul.f32 %v2845, %v2397
    %v2870 = vadd.f32 %v2862, %v2866
    %v2871 = vadd.f32 %v2863, %v2867
    %v2872 = vadd.f32 %v2864, %v2868
    %v2873 = vadd.f32 %v2865, %v2869
    %v2874 = vadd.f32 %v2732, %v2672
    %v2875 = vadd.f32 %v2737, %v2677
    %v2876 = vadd.f32 %v2742, %v2682
    %v2877 = vadd.f32 %v2747, %v2687
    %v2878 = vxor.u32 %v2874, 2147483648
    %v2879 = vxor.u32 %v2875, 2147483648
    %v2880 = vxor.u32 %v2876, 2147483648
    %v2881 = vxor.u32 %v2877, 2147483648
    %v2882 = vmul.f32 %v2878, 1.442695
    %v2883 = vpow.pop %v2882
    %v2884 = vmul.f32 %v2879, 1.442695
    %v2885 = vpow.pop %v2884
    %v2886 = vmul.f32 %v2880, 1.442695
    %v2887 = vpow.pop %v2886
    %v2888 = vmul.f32 %v2881, 1.442695
    %v2889 = vpow.pop %v2888
    %v2890 = vadd.f32 %v2883, 1.0
    %v2891 = vadd.f32 %v2885, 1.0
    %v2892 = vadd.f32 %v2887, 1.0
    %v2893 = vadd.f32 %v2889, 1.0
    %v2894 = vrcp.pop %v2890
    %v2895 = vmul.f32 1.0, %v2894
    %v2896 = vrcp.pop %v2891
    %v2897 = vmul.f32 1.0, %v2896
    %v2898 = vrcp.pop %v2892
    %v2899 = vmul.f32 1.0, %v2898
    %v2900 = vrcp.pop %v2893
    %v2901 = vmul.f32 1.0, %v2900
    %v2902 = vadd.f32 %v2752, %v2692
    %v2903 = vadd.f32 %v2757, %v2697
    %v2904 = vadd.f32 %v2762, %v2702
    %v2905 = vadd.f32 %v2767, %v2707
    %v2906 = vxor.u32 %v2902, 2147483648
    %v2907 = vxor.u32 %v2903, 2147483648
    %v2908 = vxor.u32 %v2904, 2147483648
    %v2909 = vxor.u32 %v2905, 2147483648
    %v2910 = vmul.f32 %v2906, 1.442695
    %v2911 = vpow.pop %v2910
    %v2912 = vmul.f32 %v2907, 1.442695
    %v2913 = vpow.pop %v2912
    %v2914 = vmul.f32 %v2908, 1.442695
    %v2915 = vpow.pop %v2914
    %v2916 = vmul.f32 %v2909, 1.442695
    %v2917 = vpow.pop %v2916
    %v2918 = vadd.f32 %v2911, 1.0
    %v2919 = vadd.f32 %v2913, 1.0
    %v2920 = vadd.f32 %v2915, 1.0
    %v2921 = vadd.f32 %v2917, 1.0
    %v2922 = vrcp.pop %v2918
    %v2923 = vmul.f32 1.0, %v2922
    %v2924 = vrcp.pop %v2919
    %v2925 = vmul.f32 1.0, %v2924
    %v2926 = vrcp.pop %v2920
    %v2927 = vmul.f32 1.0, %v2926
    %v2928 = vrcp.pop %v2921
    %v2929 = vmul.f32 1.0, %v2928
    %v2930 = vmul.f32 %v2895, %v2712
    %v2931 = vmul.f32 %v2897, %v2717
    %v2932 = vmul.f32 %v2899, %v2722
    %v2933 = vmul.f32 %v2901, %v2727
    %v2934 = vadd.f32 %v2772, %v2930
    %v2935 = vadd.f32 %v2777, %v2931
    %v2936 = vadd.f32 %v2782, %v2932
    %v2937 = vadd.f32 %v2787, %v2933
    %v2938 = vtanh.pop %v2934
    %v2939 = vtanh.pop %v2935
    %v2940 = vtanh.pop %v2936
    %v2941 = vtanh.pop %v2937
    %v2942 = vsub.f32 1.0, %v2923
    %v2943 = vsub.f32 1.0, %v2925
    %v2944 = vsub.f32 1.0, %v2927
    %v2945 = vsub.f32 1.0, %v2929
    %v2946 = vmul.f32 %v2942, %v2938
    %v2947 = vmul.f32 %v2943, %v2939
    %v2948 = vmul.f32 %v2944, %v2940
    %v2949 = vmul.f32 %v2945, %v2941
    %v2950 = vmul.f32 %v2923, %v2478
    %v2951 = vmul.f32 %v2925, %v2479
    %v2952 = vmul.f32 %v2927, %v2480
    %v2953 = vmul.f32 %v2929, %v2481
    %v2954 = vadd.f32 %v2946, %v2950
    %v2955 = vadd.f32 %v2947, %v2951
    %v2956 = vadd.f32 %v2948, %v2952
    %v2957 = vadd.f32 %v2949, %v2953
    %s2958 = scalar_lea.vmem %s0, 96
    %v2959 = vld [vmem:[%s2958] sm:$0xff]
    %v2960 = vld [vmem:[%s2958 + $0x8] sm:$0xff]
    %2961 = vmatprep.subr.mxu0 0.0
    %2962 = vmatpush1.msra.mxu0 %v2870
    %2963 = vmatprep.subr.mxu0 0.0
    %2964 = vmatpush1.msra.mxu0 %v2871
    %2965 = vmatprep.subr.mxu0 0.0
    %2966 = vmatpush1.msra.mxu0 %v2872
    %2967 = vmatprep.subr.mxu0 0.0
    %2968 = vmatpush1.msra.mxu0 %v2873
    %2969 = vmatprep.subr.mxu0 0.0
    %2970 = vmatpush1.msra.mxu0 %v2954
    %2971 = vmatprep.subr.mxu0 0.0
    %2972 = vmatpush1.msra.mxu0 %v2955
    %2973 = vmatprep.subr.mxu0 0.0
    %2974 = vmatpush1.msra.mxu0 %v2956
    %2975 = vmatprep.subr.mxu0 0.0
    %2976 = vmatpush1.msra.mxu0 %v2957
    %2977 = vmatprep.subr.mxu0 0.0
    %2978 = vmatpush1.msra.mxu0 %v2959
    %2979 = vmatprep.subr.mxu0 0.0
    %2980 = vmatpush1.msra.mxu0 %v2960
    %2981 = vmatprep.subr.mxu0 0.0
    %2982 = vmatpush1.msra.mxu0 0.0
    %2983 = vmatprep.subr.mxu0 0.0
    %2984 = vmatpush1.msra.mxu0 0.0
    %2985 = vmatprep.subr.mxu0 0.0
    %2986 = vmatpush1.msra.mxu0 0.0
    %2987 = vmatprep.subr.mxu0 0.0
    %2988 = vmatpush1.msra.mxu0 0.0
    %2989 = vmatprep.subr.mxu0 0.0
    %2990 = vmatpush1.msra.mxu0 0.0
    %2991 = vmatprep.subr.mxu0 0.0
    %2992 = vmatpush1.msra.mxu0 0.0
    %2993 = vmatprep.subr.mxu0 0.0
    %2994 = vmatpush1.msra.mxu0 0.0
    %2995 = vmatprep.subr.mxu0 0.0
    %2996 = vmatpush1.msra.mxu0 0.0
    %2997 = vmatprep.subr.mxu0 0.0
    %2998 = vmatpush1.msra.mxu0 0.0
    %2999 = vmatprep.subr.mxu0 0.0
    %3000 = vmatpush1.msra.mxu0 0.0
    %3001 = vmatprep.subr.mxu0 0.0
    %3002 = vmatpush1.msra.mxu0 0.0
    %3003 = vmatprep.subr.mxu0 0.0
    %3004 = vmatpush1.msra.mxu0 0.0
    %3005 = vmatprep.subr.mxu0 0.0
    %3006 = vmatpush1.msra.mxu0 0.0
    %3007 = vmatprep.subr.mxu0 0.0
    %3008 = vmatpush1.msra.mxu0 0.0
    %3009 = vmatprep.subr.mxu0 0.0
    %3010 = vmatpush1.msra.mxu0 0.0
    %3011 = vmatprep.subr.mxu0 0.0
    %3012 = vmatpush1.msra.mxu0 0.0
    %3013 = vmatprep.subr.mxu0 0.0
    %3014 = vmatpush1.msra.mxu0 0.0
    %3015 = vmatprep.subr.mxu0 0.0
    %3016 = vmatpush1.msra.mxu0 0.0
    %3017 = vmatprep.subr.mxu0 0.0
    %3018 = vmatpush1.msra.mxu0 0.0
    %3019 = vmatprep.subr.mxu0 0.0
    %3020 = vmatpush1.msra.mxu0 0.0
    %3021 = vmatprep.subr.mxu0 0.0
    %3022 = vmatpush1.msra.mxu0 0.0
    %3023 = vmatprep.subr.mxu0 0.0
    %3024 = vmatpush1.msra.mxu0 0.0
    %3025 = vmatprep.mubr.f32.mxu0 0.0
    %3026 = vmatmul.mubr.f32.gmra.mrb[0].mxu0 %v70
    %v3027 = vpop.f32.mrb[0].mxu0
    %v3028 = vadd.f32 0.0, %v3027
    %v3029 = vpop.f32.mrb[0].mxu0
    %3030 = vmatprep.mubr.f32.mxu0 0.0
    %3031 = vmatmul.mubr.f32.gmra.mrb[0].mxu0 %v73
    %v3032 = vpop.f32.mrb[0].mxu0
    %v3033 = vadd.f32 0.0, %v3032
    %v3034 = vpop.f32.mrb[0].mxu0
    %3035 = vmatprep.mubr.f32.mxu0 0.0
    %3036 = vmatmul.mubr.f32.gmra.mrb[0].mxu0 %v76
    %v3037 = vpop.f32.mrb[0].mxu0
    %v3038 = vadd.f32 0.0, %v3037
    %v3039 = vpop.f32.mrb[0].mxu0
    %3040 = vmatprep.mubr.f32.mxu0 0.0
    %3041 = vmatmul.mubr.f32.gmra.mrb[0].mxu0 %v79
    %v3042 = vpop.f32.mrb[0].mxu0
    %v3043 = vadd.f32 0.0, %v3042
    %v3044 = vpop.f32.mrb[0].mxu0
    %3045 = vmatprep.mubr.f32.mxu0 0.0
    %3046 = vmatmul.mubr.f32.gmra.mrb[0].mxu0 %v82
    %v3047 = vpop.f32.mrb[0].mxu0
    %v3048 = vadd.f32 0.0, %v3047
    %v3049 = vpop.f32.mrb[0].mxu0
    %3050 = vmatprep.mubr.f32.mxu0 0.0
    %3051 = vmatmul.mubr.f32.gmra.mrb[0].mxu0 %v85
    %v3052 = vpop.f32.mrb[0].mxu0
    %v3053 = vadd.f32 0.0, %v3052
    %v3054 = vpop.f32.mrb[0].mxu0
    %3055 = vmatprep.mubr.f32.mxu0 0.0
    %3056 = vmatmul.mubr.f32.gmra.mrb[0].mxu0 %v88
    %v3057 = vpop.f32.mrb[0].mxu0
    %v3058 = vadd.f32 0.0, %v3057
    %v3059 = vpop.f32.mrb[0].mxu0
    %3060 = vmatprep.mubr.f32.mxu0 0.0
    %3061 = vmatmul.mubr.f32.gmra.mrb[0].mxu0 %v91
    %v3062 = vpop.f32.mrb[0].mxu0
    %v3063 = vadd.f32 0.0, %v3062
    %v3064 = vpop.f32.mrb[0].mxu0
    %3065 = vmatprep.mubr.f32.mxu0 0.0
    %3066 = vmatmul.mubr.f32.gmra.mrb[0].mxu0 %v94
    %v3067 = vpop.f32.mrb[0].mxu0
    %v3068 = vadd.f32 0.0, %v3067
    %v3069 = vpop.f32.mrb[0].mxu0
    %3070 = vmatprep.mubr.f32.mxu0 0.0
    %3071 = vmatmul.mubr.f32.gmra.mrb[0].mxu0 %v97
    %v3072 = vpop.f32.mrb[0].mxu0
    %v3073 = vadd.f32 0.0, %v3072
    %v3074 = vpop.f32.mrb[0].mxu0
    %3075 = vmatprep.mubr.f32.mxu0 0.0
    %3076 = vmatmul.mubr.f32.gmra.mrb[0].mxu0 %v100
    %v3077 = vpop.f32.mrb[0].mxu0
    %v3078 = vadd.f32 0.0, %v3077
    %v3079 = vpop.f32.mrb[0].mxu0
    %3080 = vmatprep.mubr.f32.mxu0 0.0
    %3081 = vmatmul.mubr.f32.gmra.mrb[0].mxu0 %v103
    %v3082 = vpop.f32.mrb[0].mxu0
    %v3083 = vadd.f32 0.0, %v3082
    %v3084 = vpop.f32.mrb[0].mxu0
    %3085 = vmatprep.mubr.f32.mxu0 0.0
    %3086 = vmatmul.mubr.f32.gmra.mrb[0].mxu0 %v106
    %v3087 = vpop.f32.mrb[0].mxu0
    %v3088 = vadd.f32 0.0, %v3087
    %v3089 = vpop.f32.mrb[0].mxu0
    %3090 = vmatprep.mubr.f32.mxu0 0.0
    %3091 = vmatmul.mubr.f32.gmra.mrb[0].mxu0 %v109
    %v3092 = vpop.f32.mrb[0].mxu0
    %v3093 = vadd.f32 0.0, %v3092
    %v3094 = vpop.f32.mrb[0].mxu0
    %3095 = vmatprep.mubr.f32.mxu0 0.0
    %3096 = vmatmul.mubr.f32.gmra.mrb[0].mxu0 %v112
    %v3097 = vpop.f32.mrb[0].mxu0
    %v3098 = vadd.f32 0.0, %v3097
    %v3099 = vpop.f32.mrb[0].mxu0
    %3100 = vmatprep.mubr.f32.mxu0 0.0
    %3101 = vmatmul.mubr.f32.gmra.mrb[0].mxu0 %v115
    %v3102 = vpop.f32.mrb[0].mxu0
    %v3103 = vadd.f32 0.0, %v3102
    %v3104 = vpop.f32.mrb[0].mxu0
    %3105 = vmatprep.mubr.f32.mxu0 0.0
    %3106 = vmatmul.mubr.f32.gmra.mrb[0].mxu0 %v118
    %v3107 = vpop.f32.mrb[0].mxu0
    %v3108 = vadd.f32 0.0, %v3107
    %v3109 = vpop.f32.mrb[0].mxu0
    %3110 = vmatprep.mubr.f32.mxu0 0.0
    %3111 = vmatmul.mubr.f32.gmra.mrb[0].mxu0 %v121
    %v3112 = vpop.f32.mrb[0].mxu0
    %v3113 = vadd.f32 0.0, %v3112
    %v3114 = vpop.f32.mrb[0].mxu0
    %3115 = vmatprep.mubr.f32.mxu0 0.0
    %3116 = vmatmul.mubr.f32.gmra.mrb[0].mxu0 %v124
    %v3117 = vpop.f32.mrb[0].mxu0
    %v3118 = vadd.f32 0.0, %v3117
    %v3119 = vpop.f32.mrb[0].mxu0
    %3120 = vmatprep.mubr.f32.mxu0 0.0
    %3121 = vmatmul.mubr.f32.gmra.mrb[0].mxu0 %v127
    %v3122 = vpop.f32.mrb[0].mxu0
    %v3123 = vadd.f32 0.0, %v3122
    %v3124 = vpop.f32.mrb[0].mxu0
    %3125 = vmatprep.mubr.f32.mxu0 0.0
    %3126 = vmatmul.mubr.f32.gmra.mrb[0].mxu0 %v130
    %v3127 = vpop.f32.mrb[0].mxu0
    %v3128 = vadd.f32 0.0, %v3127
    %v3129 = vpop.f32.mrb[0].mxu0
    %3130 = vmatprep.mubr.f32.mxu0 0.0
    %3131 = vmatmul.mubr.f32.gmra.mrb[0].mxu0 %v133
    %v3132 = vpop.f32.mrb[0].mxu0
    %v3133 = vadd.f32 0.0, %v3132
    %v3134 = vpop.f32.mrb[0].mxu0
    %3135 = vmatprep.mubr.f32.mxu0 0.0
    %3136 = vmatmul.mubr.f32.gmra.mrb[0].mxu0 %v136
    %v3137 = vpop.f32.mrb[0].mxu0
    %v3138 = vadd.f32 0.0, %v3137
    %v3139 = vpop.f32.mrb[0].mxu0
    %3140 = vmatprep.mubr.f32.mxu0 0.0
    %3141 = vmatmul.mubr.f32.gmra.mrb[0].mxu0 %v139
    %v3142 = vpop.f32.mrb[0].mxu0
    %v3143 = vadd.f32 0.0, %v3142
    %v3144 = vpop.f32.mrb[0].mxu0
    %3145 = vmatprep.mubr.f32.mxu0 0.0
    %3146 = vmatmul.mubr.f32.gmra.mrb[0].mxu0 %v142
    %v3147 = vpop.f32.mrb[0].mxu0
    %v3148 = vadd.f32 0.0, %v3147
    %v3149 = vpop.f32.mrb[0].mxu0
    %3150 = vmatprep.mubr.f32.mxu0 0.0
    %3151 = vmatmul.mubr.f32.gmra.mrb[0].mxu0 %v145
    %v3152 = vpop.f32.mrb[0].mxu0
    %v3153 = vadd.f32 0.0, %v3152
    %v3154 = vpop.f32.mrb[0].mxu0
    %3155 = vmatprep.mubr.f32.mxu0 0.0
    %3156 = vmatmul.mubr.f32.gmra.mrb[0].mxu0 %v148
    %v3157 = vpop.f32.mrb[0].mxu0
    %v3158 = vadd.f32 0.0, %v3157
    %v3159 = vpop.f32.mrb[0].mxu0
    %3160 = vmatprep.mubr.f32.mxu0 0.0
    %3161 = vmatmul.mubr.f32.gmra.mrb[0].mxu0 %v151
    %v3162 = vpop.f32.mrb[0].mxu0
    %v3163 = vadd.f32 0.0, %v3162
    %v3164 = vpop.f32.mrb[0].mxu0
    %3165 = vmatprep.mubr.f32.mxu0 0.0
    %3166 = vmatmul.mubr.f32.gmra.mrb[0].mxu0 %v154
    %v3167 = vpop.f32.mrb[0].mxu0
    %v3168 = vadd.f32 0.0, %v3167
    %v3169 = vpop.f32.mrb[0].mxu0
    %3170 = vmatprep.mubr.f32.mxu0 0.0
    %3171 = vmatmul.mubr.f32.gmra.mrb[0].mxu0 %v157
    %v3172 = vpop.f32.mrb[0].mxu0
    %v3173 = vadd.f32 0.0, %v3172
    %v3174 = vpop.f32.mrb[0].mxu0
    %3175 = vmatprep.mubr.f32.mxu0 0.0
    %3176 = vmatmul.mubr.f32.gmra.mrb[0].mxu0 %v160
    %v3177 = vpop.f32.mrb[0].mxu0
    %v3178 = vadd.f32 0.0, %v3177
    %v3179 = vpop.f32.mrb[0].mxu0
    %3180 = vmatprep.mubr.f32.mxu0 0.0
    %3181 = vmatmul.mubr.f32.gmra.mrb[0].mxu0 %v163
    %v3182 = vpop.f32.mrb[0].mxu0
    %v3183 = vadd.f32 0.0, %v3182
    %v3184 = vpop.f32.mrb[0].mxu0
    %3185 = vmatprep.mubr.f32.mxu0 0.0
    %3186 = vmatmul.mubr.f32.gmra.mrb[0].mxu0 %v166
    %v3187 = vpop.f32.mrb[0].mxu0
    %v3188 = vadd.f32 0.0, %v3187
    %v3189 = vpop.f32.mrb[0].mxu0
    %3190 = vmatprep.mubr.f32.mxu0 0.0
    %3191 = vmatmul.mubr.f32.gmra.mrb[0].mxu0 %v169
    %v3192 = vpop.f32.mrb[0].mxu0
    %v3193 = vadd.f32 0.0, %v3192
    %v3194 = vpop.f32.mrb[0].mxu0
    %3195 = vmatprep.mubr.f32.mxu0 0.0
    %3196 = vmatmul.mubr.f32.gmra.mrb[0].mxu0 %v172
    %v3197 = vpop.f32.mrb[0].mxu0
    %v3198 = vadd.f32 0.0, %v3197
    %v3199 = vpop.f32.mrb[0].mxu0
    %3200 = vmatprep.mubr.f32.mxu0 0.0
    %3201 = vmatmul.mubr.f32.gmra.mrb[0].mxu0 %v175
    %v3202 = vpop.f32.mrb[0].mxu0
    %v3203 = vadd.f32 0.0, %v3202
    %v3204 = vpop.f32.mrb[0].mxu0
    %3205 = vmatprep.mubr.f32.mxu0 0.0
    %3206 = vmatmul.mubr.f32.gmra.mrb[0].mxu0 %v178
    %v3207 = vpop.f32.mrb[0].mxu0
    %v3208 = vadd.f32 0.0, %v3207
    %v3209 = vpop.f32.mrb[0].mxu0
    %3210 = vmatprep.mubr.f32.mxu0 0.0
    %3211 = vmatmul.mubr.f32.gmra.mrb[0].mxu0 %v181
    %v3212 = vpop.f32.mrb[0].mxu0
    %v3213 = vadd.f32 0.0, %v3212
    %v3214 = vpop.f32.mrb[0].mxu0
    %3215 = vmatprep.mubr.f32.mxu0 0.0
    %3216 = vmatmul.mubr.f32.gmra.mrb[0].mxu0 %v184
    %v3217 = vpop.f32.mrb[0].mxu0
    %v3218 = vadd.f32 0.0, %v3217
    %v3219 = vpop.f32.mrb[0].mxu0
    %3220 = vmatprep.mubr.f32.mxu0 0.0
    %3221 = vmatmul.mubr.f32.gmra.mrb[0].mxu0 %v187
    %v3222 = vpop.f32.mrb[0].mxu0
    %v3223 = vadd.f32 0.0, %v3222
    %v3224 = vpop.f32.mrb[0].mxu0
    %3225 = vmatprep.mubr.f32.mxu0 0.0
    %3226 = vmatmul.mubr.f32.gmra.mrb[0].mxu0 %v190
    %v3227 = vpop.f32.mrb[0].mxu0
    %v3228 = vadd.f32 0.0, %v3227
    %v3229 = vpop.f32.mrb[0].mxu0
    %3230 = vmatprep.mubr.f32.mxu0 0.0
    %3231 = vmatmul.mubr.f32.gmra.mrb[0].mxu0 %v193
    %v3232 = vpop.f32.mrb[0].mxu0
    %v3233 = vadd.f32 0.0, %v3232
    %v3234 = vpop.f32.mrb[0].mxu0
    %3235 = vmatprep.mubr.f32.mxu0 0.0
    %3236 = vmatmul.mubr.f32.gmra.mrb[0].mxu0 %v196
    %v3237 = vpop.f32.mrb[0].mxu0
    %v3238 = vadd.f32 0.0, %v3237
    %v3239 = vpop.f32.mrb[0].mxu0
    %3240 = vmatprep.mubr.f32.mxu0 0.0
    %3241 = vmatmul.mubr.f32.gmra.mrb[0].mxu0 %v199
    %v3242 = vpop.f32.mrb[0].mxu0
    %v3243 = vadd.f32 0.0, %v3242
    %v3244 = vpop.f32.mrb[0].mxu0
    %3245 = vmatprep.mubr.f32.mxu0 0.0
    %3246 = vmatmul.mubr.f32.gmra.mrb[0].mxu0 %v202
    %v3247 = vpop.f32.mrb[0].mxu0
    %v3248 = vadd.f32 0.0, %v3247
    %v3249 = vpop.f32.mrb[0].mxu0
    %3250 = vmatprep.mubr.f32.mxu0 0.0
    %3251 = vmatmul.mubr.f32.gmra.mrb[0].mxu0 %v205
    %v3252 = vpop.f32.mrb[0].mxu0
    %v3253 = vadd.f32 0.0, %v3252
    %v3254 = vpop.f32.mrb[0].mxu0
    %3255 = vmatprep.mubr.f32.mxu0 0.0
    %3256 = vmatmul.mubr.f32.gmra.mrb[0].mxu0 %v208
    %v3257 = vpop.f32.mrb[0].mxu0
    %v3258 = vadd.f32 0.0, %v3257
    %v3259 = vpop.f32.mrb[0].mxu0
    %3260 = vmatprep.mubr.f32.mxu0 0.0
    %3261 = vmatmul.mubr.f32.gmra.mrb[0].mxu0 %v211
    %v3262 = vpop.f32.mrb[0].mxu0
    %v3263 = vadd.f32 0.0, %v3262
    %v3264 = vpop.f32.mrb[0].mxu0
    %3265 = vdwg.mxu0
    %v3266 = vadd.f32 %v3088, %v3028
    %v3267 = vadd.f32 %v3093, %v3033
    %v3268 = vadd.f32 %v3098, %v3038
    %v3269 = vadd.f32 %v3103, %v3043
    %v3270 = vxor.u32 %v3266, 2147483648
    %v3271 = vxor.u32 %v3267, 2147483648
    %v3272 = vxor.u32 %v3268, 2147483648
    %v3273 = vxor.u32 %v3269, 2147483648
    %v3274 = vmul.f32 %v3270, 1.442695
    %v3275 = vpow.pop %v3274
    %v3276 = vmul.f32 %v3271, 1.442695
    %v3277 = vpow.pop %v3276
    %v3278 = vmul.f32 %v3272, 1.442695
    %v3279 = vpow.pop %v3278
    %v3280 = vmul.f32 %v3273, 1.442695
    %v3281 = vpow.pop %v3280
    %v3282 = vadd.f32 %v3275, 1.0
    %v3283 = vadd.f32 %v3277, 1.0
    %v3284 = vadd.f32 %v3279, 1.0
    %v3285 = vadd.f32 %v3281, 1.0
    %v3286 = vrcp.pop %v3282
    %v3287 = vmul.f32 1.0, %v3286
    %v3288 = vrcp.pop %v3283
    %v3289 = vmul.f32 1.0, %v3288
    %v3290 = vrcp.pop %v3284
    %v3291 = vmul.f32 1.0, %v3290
    %v3292 = vrcp.pop %v3285
    %v3293 = vmul.f32 1.0, %v3292
    %v3294 = vadd.f32 %v3108, %v3048
    %v3295 = vadd.f32 %v3113, %v3053
    %v3296 = vadd.f32 %v3118, %v3058
    %v3297 = vadd.f32 %v3123, %v3063
    %v3298 = vxor.u32 %v3294, 2147483648
    %v3299 = vxor.u32 %v3295, 2147483648
    %v3300 = vxor.u32 %v3296, 2147483648
    %v3301 = vxor.u32 %v3297, 2147483648
    %v3302 = vmul.f32 %v3298, 1.442695
    %v3303 = vpow.pop %v3302
    %v3304 = vmul.f32 %v3299, 1.442695
    %v3305 = vpow.pop %v3304
    %v3306 = vmul.f32 %v3300, 1.442695
    %v3307 = vpow.pop %v3306
    %v3308 = vmul.f32 %v3301, 1.442695
    %v3309 = vpow.pop %v3308
    %v3310 = vadd.f32 %v3303, 1.0
    %v3311 = vadd.f32 %v3305, 1.0
    %v3312 = vadd.f32 %v3307, 1.0
    %v3313 = vadd.f32 %v3309, 1.0
    %v3314 = vrcp.pop %v3310
    %v3315 = vmul.f32 1.0, %v3314
    %v3316 = vrcp.pop %v3311
    %v3317 = vmul.f32 1.0, %v3316
    %v3318 = vrcp.pop %v3312
    %v3319 = vmul.f32 1.0, %v3318
    %v3320 = vrcp.pop %v3313
    %v3321 = vmul.f32 1.0, %v3320
    %v3322 = vmul.f32 %v3287, %v3068
    %v3323 = vmul.f32 %v3289, %v3073
    %v3324 = vmul.f32 %v3291, %v3078
    %v3325 = vmul.f32 %v3293, %v3083
    %v3326 = vadd.f32 %v3128, %v3322
    %v3327 = vadd.f32 %v3133, %v3323
    %v3328 = vadd.f32 %v3138, %v3324
    %v3329 = vadd.f32 %v3143, %v3325
    %v3330 = vtanh.pop %v3326
    %v3331 = vtanh.pop %v3327
    %v3332 = vtanh.pop %v3328
    %v3333 = vtanh.pop %v3329
    %v3334 = vsub.f32 1.0, %v3315
    %v3335 = vsub.f32 1.0, %v3317
    %v3336 = vsub.f32 1.0, %v3319
    %v3337 = vsub.f32 1.0, %v3321
    %v3338 = vmul.f32 %v3334, %v3330
    %v3339 = vmul.f32 %v3335, %v3331
    %v3340 = vmul.f32 %v3336, %v3332
    %v3341 = vmul.f32 %v3337, %v3333
    %v3342 = vmul.f32 %v3315, %v2870
    %v3343 = vmul.f32 %v3317, %v2871
    %v3344 = vmul.f32 %v3319, %v2872
    %v3345 = vmul.f32 %v3321, %v2873
    %v3346 = vadd.f32 %v3338, %v3342
    %v3347 = vadd.f32 %v3339, %v3343
    %v3348 = vadd.f32 %v3340, %v3344
    %v3349 = vadd.f32 %v3341, %v3345
    %v3350 = vadd.f32 %v3208, %v3148
    %v3351 = vadd.f32 %v3213, %v3153
    %v3352 = vadd.f32 %v3218, %v3158
    %v3353 = vadd.f32 %v3223, %v3163
    %v3354 = vxor.u32 %v3350, 2147483648
    %v3355 = vxor.u32 %v3351, 2147483648
    %v3356 = vxor.u32 %v3352, 2147483648
    %v3357 = vxor.u32 %v3353, 2147483648
    %v3358 = vmul.f32 %v3354, 1.442695
    %v3359 = vpow.pop %v3358
    %v3360 = vmul.f32 %v3355, 1.442695
    %v3361 = vpow.pop %v3360
    %v3362 = vmul.f32 %v3356, 1.442695
    %v3363 = vpow.pop %v3362
    %v3364 = vmul.f32 %v3357, 1.442695
    %v3365 = vpow.pop %v3364
    %v3366 = vadd.f32 %v3359, 1.0
    %v3367 = vadd.f32 %v3361, 1.0
    %v3368 = vadd.f32 %v3363, 1.0
    %v3369 = vadd.f32 %v3365, 1.0
    %v3370 = vrcp.pop %v3366
    %v3371 = vmul.f32 1.0, %v3370
    %v3372 = vrcp.pop %v3367
    %v3373 = vmul.f32 1.0, %v3372
    %v3374 = vrcp.pop %v3368
    %v3375 = vmul.f32 1.0, %v3374
    %v3376 = vrcp.pop %v3369
    %v3377 = vmul.f32 1.0, %v3376
    %v3378 = vadd.f32 %v3228, %v3168
    %v3379 = vadd.f32 %v3233, %v3173
    %v3380 = vadd.f32 %v3238, %v3178
    %v3381 = vadd.f32 %v3243, %v3183
    %v3382 = vxor.u32 %v3378, 2147483648
    %v3383 = vxor.u32 %v3379, 2147483648
    %v3384 = vxor.u32 %v3380, 2147483648
    %v3385 = vxor.u32 %v3381, 2147483648
    %v3386 = vmul.f32 %v3382, 1.442695
    %v3387 = vpow.pop %v3386
    %v3388 = vmul.f32 %v3383, 1.442695
    %v3389 = vpow.pop %v3388
    %v3390 = vmul.f32 %v3384, 1.442695
    %v3391 = vpow.pop %v3390
    %v3392 = vmul.f32 %v3385, 1.442695
    %v3393 = vpow.pop %v3392
    %v3394 = vadd.f32 %v3387, 1.0
    %v3395 = vadd.f32 %v3389, 1.0
    %v3396 = vadd.f32 %v3391, 1.0
    %v3397 = vadd.f32 %v3393, 1.0
    %v3398 = vrcp.pop %v3394
    %v3399 = vmul.f32 1.0, %v3398
    %v3400 = vrcp.pop %v3395
    %v3401 = vmul.f32 1.0, %v3400
    %v3402 = vrcp.pop %v3396
    %v3403 = vmul.f32 1.0, %v3402
    %v3404 = vrcp.pop %v3397
    %v3405 = vmul.f32 1.0, %v3404
    %v3406 = vmul.f32 %v3371, %v3188
    %v3407 = vmul.f32 %v3373, %v3193
    %v3408 = vmul.f32 %v3375, %v3198
    %v3409 = vmul.f32 %v3377, %v3203
    %v3410 = vadd.f32 %v3248, %v3406
    %v3411 = vadd.f32 %v3253, %v3407
    %v3412 = vadd.f32 %v3258, %v3408
    %v3413 = vadd.f32 %v3263, %v3409
    %v3414 = vtanh.pop %v3410
    %v3415 = vtanh.pop %v3411
    %v3416 = vtanh.pop %v3412
    %v3417 = vtanh.pop %v3413
    %v3418 = vsub.f32 1.0, %v3399
    %v3419 = vsub.f32 1.0, %v3401
    %v3420 = vsub.f32 1.0, %v3403
    %v3421 = vsub.f32 1.0, %v3405
    %v3422 = vmul.f32 %v3418, %v3414
    %v3423 = vmul.f32 %v3419, %v3415
    %v3424 = vmul.f32 %v3420, %v3416
    %v3425 = vmul.f32 %v3421, %v3417
    %v3426 = vmul.f32 %v3399, %v2954
    %v3427 = vmul.f32 %v3401, %v2955
    %v3428 = vmul.f32 %v3403, %v2956
    %v3429 = vmul.f32 %v3405, %v2957
    %v3430 = vadd.f32 %v3422, %v3426
    %v3431 = vadd.f32 %v3423, %v3427
    %v3432 = vadd.f32 %v3424, %v3428
    %v3433 = vadd.f32 %v3425, %v3429
    %s3434 = scalar_lea.vmem %s0, 112
    %v3435 = vld [vmem:[%s3434] sm:$0xff]
    %v3436 = vld [vmem:[%s3434 + $0x8] sm:$0xff]
    %3437 = vmatprep.subr.mxu0 0.0
    %3438 = vmatpush1.msra.mxu0 %v3346
    %3439 = vmatprep.subr.mxu0 0.0
    %3440 = vmatpush1.msra.mxu0 %v3347
    %3441 = vmatprep.subr.mxu0 0.0
    %3442 = vmatpush1.msra.mxu0 %v3348
    %3443 = vmatprep.subr.mxu0 0.0
    %3444 = vmatpush1.msra.mxu0 %v3349
    %3445 = vmatprep.subr.mxu0 0.0
    %3446 = vmatpush1.msra.mxu0 %v3430
    %3447 = vmatprep.subr.mxu0 0.0
    %3448 = vmatpush1.msra.mxu0 %v3431
    %3449 = vmatprep.subr.mxu0 0.0
    %3450 = vmatpush1.msra.mxu0 %v3432
    %3451 = vmatprep.subr.mxu0 0.0
    %3452 = vmatpush1.msra.mxu0 %v3433
    %3453 = vmatprep.subr.mxu0 0.0
    %3454 = vmatpush1.msra.mxu0 %v3435
    %3455 = vmatprep.subr.mxu0 0.0
    %3456 = vmatpush1.msra.mxu0 %v3436
    %3457 = vmatprep.subr.mxu0 0.0
    %3458 = vmatpush1.msra.mxu0 0.0
    %3459 = vmatprep.subr.mxu0 0.0
    %3460 = vmatpush1.msra.mxu0 0.0
    %3461 = vmatprep.subr.mxu0 0.0
    %3462 = vmatpush1.msra.mxu0 0.0
    %3463 = vmatprep.subr.mxu0 0.0
    %3464 = vmatpush1.msra.mxu0 0.0
    %3465 = vmatprep.subr.mxu0 0.0
    %3466 = vmatpush1.msra.mxu0 0.0
    %3467 = vmatprep.subr.mxu0 0.0
    %3468 = vmatpush1.msra.mxu0 0.0
    %3469 = vmatprep.subr.mxu0 0.0
    %3470 = vmatpush1.msra.mxu0 0.0
    %3471 = vmatprep.subr.mxu0 0.0
    %3472 = vmatpush1.msra.mxu0 0.0
    %3473 = vmatprep.subr.mxu0 0.0
    %3474 = vmatpush1.msra.mxu0 0.0
    %3475 = vmatprep.subr.mxu0 0.0
    %3476 = vmatpush1.msra.mxu0 0.0
    %3477 = vmatprep.subr.mxu0 0.0
    %3478 = vmatpush1.msra.mxu0 0.0
    %3479 = vmatprep.subr.mxu0 0.0
    %3480 = vmatpush1.msra.mxu0 0.0
    %3481 = vmatprep.subr.mxu0 0.0
    %3482 = vmatpush1.msra.mxu0 0.0
    %3483 = vmatprep.subr.mxu0 0.0
    %3484 = vmatpush1.msra.mxu0 0.0
    %3485 = vmatprep.subr.mxu0 0.0
    %3486 = vmatpush1.msra.mxu0 0.0
    %3487 = vmatprep.subr.mxu0 0.0
    %3488 = vmatpush1.msra.mxu0 0.0
    %3489 = vmatprep.subr.mxu0 0.0
    %3490 = vmatpush1.msra.mxu0 0.0
    %3491 = vmatprep.subr.mxu0 0.0
    %3492 = vmatpush1.msra.mxu0 0.0
    %3493 = vmatprep.subr.mxu0 0.0
    %3494 = vmatpush1.msra.mxu0 0.0
    %3495 = vmatprep.subr.mxu0 0.0
    %3496 = vmatpush1.msra.mxu0 0.0
    %3497 = vmatprep.subr.mxu0 0.0
    %3498 = vmatpush1.msra.mxu0 0.0
    %3499 = vmatprep.subr.mxu0 0.0
    %3500 = vmatpush1.msra.mxu0 0.0
    %3501 = vmatprep.mubr.f32.mxu0 0.0
    %3502 = vmatmul.mubr.f32.gmra.mrb[0].mxu0 %v70
    %v3503 = vpop.f32.mrb[0].mxu0
    %v3504 = vadd.f32 0.0, %v3503
    %v3505 = vpop.f32.mrb[0].mxu0
    %3506 = vmatprep.mubr.f32.mxu0 0.0
    %3507 = vmatmul.mubr.f32.gmra.mrb[0].mxu0 %v73
    %v3508 = vpop.f32.mrb[0].mxu0
    %v3509 = vadd.f32 0.0, %v3508
    %v3510 = vpop.f32.mrb[0].mxu0
    %3511 = vmatprep.mubr.f32.mxu0 0.0
    %3512 = vmatmul.mubr.f32.gmra.mrb[0].mxu0 %v76
    %v3513 = vpop.f32.mrb[0].mxu0
    %v3514 = vadd.f32 0.0, %v3513
    %v3515 = vpop.f32.mrb[0].mxu0
    %3516 = vmatprep.mubr.f32.mxu0 0.0
    %3517 = vmatmul.mubr.f32.gmra.mrb[0].mxu0 %v79
    %v3518 = vpop.f32.mrb[0].mxu0
    %v3519 = vadd.f32 0.0, %v3518
    %v3520 = vpop.f32.mrb[0].mxu0
    %3521 = vmatprep.mubr.f32.mxu0 0.0
    %3522 = vmatmul.mubr.f32.gmra.mrb[0].mxu0 %v82
    %v3523 = vpop.f32.mrb[0].mxu0
    %v3524 = vadd.f32 0.0, %v3523
    %v3525 = vpop.f32.mrb[0].mxu0
    %3526 = vmatprep.mubr.f32.mxu0 0.0
    %3527 = vmatmul.mubr.f32.gmra.mrb[0].mxu0 %v85
    %v3528 = vpop.f32.mrb[0].mxu0
    %v3529 = vadd.f32 0.0, %v3528
    %v3530 = vpop.f32.mrb[0].mxu0
    %3531 = vmatprep.mubr.f32.mxu0 0.0
    %3532 = vmatmul.mubr.f32.gmra.mrb[0].mxu0 %v88
    %v3533 = vpop.f32.mrb[0].mxu0
    %v3534 = vadd.f32 0.0, %v3533
    %v3535 = vpop.f32.mrb[0].mxu0
    %3536 = vmatprep.mubr.f32.mxu0 0.0
    %3537 = vmatmul.mubr.f32.gmra.mrb[0].mxu0 %v91
    %v3538 = vpop.f32.mrb[0].mxu0
    %v3539 = vadd.f32 0.0, %v3538
    %v3540 = vpop.f32.mrb[0].mxu0
    %3541 = vmatprep.mubr.f32.mxu0 0.0
    %3542 = vmatmul.mubr.f32.gmra.mrb[0].mxu0 %v94
    %v3543 = vpop.f32.mrb[0].mxu0
    %v3544 = vadd.f32 0.0, %v3543
    %v3545 = vpop.f32.mrb[0].mxu0
    %3546 = vmatprep.mubr.f32.mxu0 0.0
    %3547 = vmatmul.mubr.f32.gmra.mrb[0].mxu0 %v97
    %v3548 = vpop.f32.mrb[0].mxu0
    %v3549 = vadd.f32 0.0, %v3548
    %v3550 = vpop.f32.mrb[0].mxu0
    %3551 = vmatprep.mubr.f32.mxu0 0.0
    %3552 = vmatmul.mubr.f32.gmra.mrb[0].mxu0 %v100
    %v3553 = vpop.f32.mrb[0].mxu0
    %v3554 = vadd.f32 0.0, %v3553
    %v3555 = vpop.f32.mrb[0].mxu0
    %3556 = vmatprep.mubr.f32.mxu0 0.0
    %3557 = vmatmul.mubr.f32.gmra.mrb[0].mxu0 %v103
    %v3558 = vpop.f32.mrb[0].mxu0
    %v3559 = vadd.f32 0.0, %v3558
    %v3560 = vpop.f32.mrb[0].mxu0
    %3561 = vmatprep.mubr.f32.mxu0 0.0
    %3562 = vmatmul.mubr.f32.gmra.mrb[0].mxu0 %v106
    %v3563 = vpop.f32.mrb[0].mxu0
    %v3564 = vadd.f32 0.0, %v3563
    %v3565 = vpop.f32.mrb[0].mxu0
    %3566 = vmatprep.mubr.f32.mxu0 0.0
    %3567 = vmatmul.mubr.f32.gmra.mrb[0].mxu0 %v109
    %v3568 = vpop.f32.mrb[0].mxu0
    %v3569 = vadd.f32 0.0, %v3568
    %v3570 = vpop.f32.mrb[0].mxu0
    %3571 = vmatprep.mubr.f32.mxu0 0.0
    %3572 = vmatmul.mubr.f32.gmra.mrb[0].mxu0 %v112
    %v3573 = vpop.f32.mrb[0].mxu0
    %v3574 = vadd.f32 0.0, %v3573
    %v3575 = vpop.f32.mrb[0].mxu0
    %3576 = vmatprep.mubr.f32.mxu0 0.0
    %3577 = vmatmul.mubr.f32.gmra.mrb[0].mxu0 %v115
    %v3578 = vpop.f32.mrb[0].mxu0
    %v3579 = vadd.f32 0.0, %v3578
    %v3580 = vpop.f32.mrb[0].mxu0
    %3581 = vmatprep.mubr.f32.mxu0 0.0
    %3582 = vmatmul.mubr.f32.gmra.mrb[0].mxu0 %v118
    %v3583 = vpop.f32.mrb[0].mxu0
    %v3584 = vadd.f32 0.0, %v3583
    %v3585 = vpop.f32.mrb[0].mxu0
    %3586 = vmatprep.mubr.f32.mxu0 0.0
    %3587 = vmatmul.mubr.f32.gmra.mrb[0].mxu0 %v121
    %v3588 = vpop.f32.mrb[0].mxu0
    %v3589 = vadd.f32 0.0, %v3588
    %v3590 = vpop.f32.mrb[0].mxu0
    %3591 = vmatprep.mubr.f32.mxu0 0.0
    %3592 = vmatmul.mubr.f32.gmra.mrb[0].mxu0 %v124
    %v3593 = vpop.f32.mrb[0].mxu0
    %v3594 = vadd.f32 0.0, %v3593
    %v3595 = vpop.f32.mrb[0].mxu0
    %3596 = vmatprep.mubr.f32.mxu0 0.0
    %3597 = vmatmul.mubr.f32.gmra.mrb[0].mxu0 %v127
    %v3598 = vpop.f32.mrb[0].mxu0
    %v3599 = vadd.f32 0.0, %v3598
    %v3600 = vpop.f32.mrb[0].mxu0
    %3601 = vmatprep.mubr.f32.mxu0 0.0
    %3602 = vmatmul.mubr.f32.gmra.mrb[0].mxu0 %v130
    %v3603 = vpop.f32.mrb[0].mxu0
    %v3604 = vadd.f32 0.0, %v3603
    %v3605 = vpop.f32.mrb[0].mxu0
    %3606 = vmatprep.mubr.f32.mxu0 0.0
    %3607 = vmatmul.mubr.f32.gmra.mrb[0].mxu0 %v133
    %v3608 = vpop.f32.mrb[0].mxu0
    %v3609 = vadd.f32 0.0, %v3608
    %v3610 = vpop.f32.mrb[0].mxu0
    %3611 = vmatprep.mubr.f32.mxu0 0.0
    %3612 = vmatmul.mubr.f32.gmra.mrb[0].mxu0 %v136
    %v3613 = vpop.f32.mrb[0].mxu0
    %v3614 = vadd.f32 0.0, %v3613
    %v3615 = vpop.f32.mrb[0].mxu0
    %3616 = vmatprep.mubr.f32.mxu0 0.0
    %3617 = vmatmul.mubr.f32.gmra.mrb[0].mxu0 %v139
    %v3618 = vpop.f32.mrb[0].mxu0
    %v3619 = vadd.f32 0.0, %v3618
    %v3620 = vpop.f32.mrb[0].mxu0
    %3621 = vmatprep.mubr.f32.mxu0 0.0
    %3622 = vmatmul.mubr.f32.gmra.mrb[0].mxu0 %v142
    %v3623 = vpop.f32.mrb[0].mxu0
    %v3624 = vadd.f32 0.0, %v3623
    %v3625 = vpop.f32.mrb[0].mxu0
    %3626 = vmatprep.mubr.f32.mxu0 0.0
    %3627 = vmatmul.mubr.f32.gmra.mrb[0].mxu0 %v145
    %v3628 = vpop.f32.mrb[0].mxu0
    %v3629 = vadd.f32 0.0, %v3628
    %v3630 = vpop.f32.mrb[0].mxu0
    %3631 = vmatprep.mubr.f32.mxu0 0.0
    %3632 = vmatmul.mubr.f32.gmra.mrb[0].mxu0 %v148
    %v3633 = vpop.f32.mrb[0].mxu0
    %v3634 = vadd.f32 0.0, %v3633
    %v3635 = vpop.f32.mrb[0].mxu0
    %3636 = vmatprep.mubr.f32.mxu0 0.0
    %3637 = vmatmul.mubr.f32.gmra.mrb[0].mxu0 %v151
    %v3638 = vpop.f32.mrb[0].mxu0
    %v3639 = vadd.f32 0.0, %v3638
    %v3640 = vpop.f32.mrb[0].mxu0
    %3641 = vmatprep.mubr.f32.mxu0 0.0
    %3642 = vmatmul.mubr.f32.gmra.mrb[0].mxu0 %v154
    %v3643 = vpop.f32.mrb[0].mxu0
    %v3644 = vadd.f32 0.0, %v3643
    %v3645 = vpop.f32.mrb[0].mxu0
    %3646 = vmatprep.mubr.f32.mxu0 0.0
    %3647 = vmatmul.mubr.f32.gmra.mrb[0].mxu0 %v157
    %v3648 = vpop.f32.mrb[0].mxu0
    %v3649 = vadd.f32 0.0, %v3648
    %v3650 = vpop.f32.mrb[0].mxu0
    %3651 = vmatprep.mubr.f32.mxu0 0.0
    %3652 = vmatmul.mubr.f32.gmra.mrb[0].mxu0 %v160
    %v3653 = vpop.f32.mrb[0].mxu0
    %v3654 = vadd.f32 0.0, %v3653
    %v3655 = vpop.f32.mrb[0].mxu0
    %3656 = vmatprep.mubr.f32.mxu0 0.0
    %3657 = vmatmul.mubr.f32.gmra.mrb[0].mxu0 %v163
    %v3658 = vpop.f32.mrb[0].mxu0
    %v3659 = vadd.f32 0.0, %v3658
    %v3660 = vpop.f32.mrb[0].mxu0
    %3661 = vmatprep.mubr.f32.mxu0 0.0
    %3662 = vmatmul.mubr.f32.gmra.mrb[0].mxu0 %v166
    %v3663 = vpop.f32.mrb[0].mxu0
    %v3664 = vadd.f32 0.0, %v3663
    %v3665 = vpop.f32.mrb[0].mxu0
    %3666 = vmatprep.mubr.f32.mxu0 0.0
    %3667 = vmatmul.mubr.f32.gmra.mrb[0].mxu0 %v169
    %v3668 = vpop.f32.mrb[0].mxu0
    %v3669 = vadd.f32 0.0, %v3668
    %v3670 = vpop.f32.mrb[0].mxu0
    %3671 = vmatprep.mubr.f32.mxu0 0.0
    %3672 = vmatmul.mubr.f32.gmra.mrb[0].mxu0 %v172
    %v3673 = vpop.f32.mrb[0].mxu0
    %v3674 = vadd.f32 0.0, %v3673
    %v3675 = vpop.f32.mrb[0].mxu0
    %3676 = vmatprep.mubr.f32.mxu0 0.0
    %3677 = vmatmul.mubr.f32.gmra.mrb[0].mxu0 %v175
    %v3678 = vpop.f32.mrb[0].mxu0
    %v3679 = vadd.f32 0.0, %v3678
    %v3680 = vpop.f32.mrb[0].mxu0
    %3681 = vmatprep.mubr.f32.mxu0 0.0
    %3682 = vmatmul.mubr.f32.gmra.mrb[0].mxu0 %v178
    %v3683 = vpop.f32.mrb[0].mxu0
    %v3684 = vadd.f32 0.0, %v3683
    %v3685 = vpop.f32.mrb[0].mxu0
    %3686 = vmatprep.mubr.f32.mxu0 0.0
    %3687 = vmatmul.mubr.f32.gmra.mrb[0].mxu0 %v181
    %v3688 = vpop.f32.mrb[0].mxu0
    %v3689 = vadd.f32 0.0, %v3688
    %v3690 = vpop.f32.mrb[0].mxu0
    %3691 = vmatprep.mubr.f32.mxu0 0.0
    %3692 = vmatmul.mubr.f32.gmra.mrb[0].mxu0 %v184
    %v3693 = vpop.f32.mrb[0].mxu0
    %v3694 = vadd.f32 0.0, %v3693
    %v3695 = vpop.f32.mrb[0].mxu0
    %3696 = vmatprep.mubr.f32.mxu0 0.0
    %3697 = vmatmul.mubr.f32.gmra.mrb[0].mxu0 %v187
    %v3698 = vpop.f32.mrb[0].mxu0
    %v3699 = vadd.f32 0.0, %v3698
    %v3700 = vpop.f32.mrb[0].mxu0
    %3701 = vmatprep.mubr.f32.mxu0 0.0
    %3702 = vmatmul.mubr.f32.gmra.mrb[0].mxu0 %v190
    %v3703 = vpop.f32.mrb[0].mxu0
    %v3704 = vadd.f32 0.0, %v3703
    %v3705 = vpop.f32.mrb[0].mxu0
    %3706 = vmatprep.mubr.f32.mxu0 0.0
    %3707 = vmatmul.mubr.f32.gmra.mrb[0].mxu0 %v193
    %v3708 = vpop.f32.mrb[0].mxu0
    %v3709 = vadd.f32 0.0, %v3708
    %v3710 = vpop.f32.mrb[0].mxu0
    %3711 = vmatprep.mubr.f32.mxu0 0.0
    %3712 = vmatmul.mubr.f32.gmra.mrb[0].mxu0 %v196
    %v3713 = vpop.f32.mrb[0].mxu0
    %v3714 = vadd.f32 0.0, %v3713
    %v3715 = vpop.f32.mrb[0].mxu0
    %3716 = vmatprep.mubr.f32.mxu0 0.0
    %3717 = vmatmul.mubr.f32.gmra.mrb[0].mxu0 %v199
    %v3718 = vpop.f32.mrb[0].mxu0
    %v3719 = vadd.f32 0.0, %v3718
    %v3720 = vpop.f32.mrb[0].mxu0
    %3721 = vmatprep.mubr.f32.mxu0 0.0
    %3722 = vmatmul.mubr.f32.gmra.mrb[0].mxu0 %v202
    %v3723 = vpop.f32.mrb[0].mxu0
    %v3724 = vadd.f32 0.0, %v3723
    %v3725 = vpop.f32.mrb[0].mxu0
    %3726 = vmatprep.mubr.f32.mxu0 0.0
    %3727 = vmatmul.mubr.f32.gmra.mrb[0].mxu0 %v205
    %v3728 = vpop.f32.mrb[0].mxu0
    %v3729 = vadd.f32 0.0, %v3728
    %v3730 = vpop.f32.mrb[0].mxu0
    %3731 = vmatprep.mubr.f32.mxu0 0.0
    %3732 = vmatmul.mubr.f32.gmra.mrb[0].mxu0 %v208
    %v3733 = vpop.f32.mrb[0].mxu0
    %v3734 = vadd.f32 0.0, %v3733
    %v3735 = vpop.f32.mrb[0].mxu0
    %3736 = vmatprep.mubr.f32.mxu0 0.0
    %3737 = vmatmul.mubr.f32.gmra.mrb[0].mxu0 %v211
    %v3738 = vpop.f32.mrb[0].mxu0
    %v3739 = vadd.f32 0.0, %v3738
    %v3740 = vpop.f32.mrb[0].mxu0
    %3741 = vdwg.mxu0
    %v3742 = vadd.f32 %v3564, %v3504
    %v3743 = vadd.f32 %v3569, %v3509
    %v3744 = vadd.f32 %v3574, %v3514
    %v3745 = vadd.f32 %v3579, %v3519
    %v3746 = vxor.u32 %v3742, 2147483648
    %v3747 = vxor.u32 %v3743, 2147483648
    %v3748 = vxor.u32 %v3744, 2147483648
    %v3749 = vxor.u32 %v3745, 2147483648
    %v3750 = vmul.f32 %v3746, 1.442695
    %v3751 = vpow.pop %v3750
    %v3752 = vmul.f32 %v3747, 1.442695
    %v3753 = vpow.pop %v3752
    %v3754 = vmul.f32 %v3748, 1.442695
    %v3755 = vpow.pop %v3754
    %v3756 = vmul.f32 %v3749, 1.442695
    %v3757 = vpow.pop %v3756
    %v3758 = vadd.f32 %v3751, 1.0
    %v3759 = vadd.f32 %v3753, 1.0
    %v3760 = vadd.f32 %v3755, 1.0
    %v3761 = vadd.f32 %v3757, 1.0
    %v3762 = vrcp.pop %v3758
    %v3763 = vmul.f32 1.0, %v3762
    %v3764 = vrcp.pop %v3759
    %v3765 = vmul.f32 1.0, %v3764
    %v3766 = vrcp.pop %v3760
    %v3767 = vmul.f32 1.0, %v3766
    %v3768 = vrcp.pop %v3761
    %v3769 = vmul.f32 1.0, %v3768
    %v3770 = vadd.f32 %v3584, %v3524
    %v3771 = vadd.f32 %v3589, %v3529
    %v3772 = vadd.f32 %v3594, %v3534
    %v3773 = vadd.f32 %v3599, %v3539
    %v3774 = vxor.u32 %v3770, 2147483648
    %v3775 = vxor.u32 %v3771, 2147483648
    %v3776 = vxor.u32 %v3772, 2147483648
    %v3777 = vxor.u32 %v3773, 2147483648
    %v3778 = vmul.f32 %v3774, 1.442695
    %v3779 = vpow.pop %v3778
    %v3780 = vmul.f32 %v3775, 1.442695
    %v3781 = vpow.pop %v3780
    %v3782 = vmul.f32 %v3776, 1.442695
    %v3783 = vpow.pop %v3782
    %v3784 = vmul.f32 %v3777, 1.442695
    %v3785 = vpow.pop %v3784
    %v3786 = vadd.f32 %v3779, 1.0
    %v3787 = vadd.f32 %v3781, 1.0
    %v3788 = vadd.f32 %v3783, 1.0
    %v3789 = vadd.f32 %v3785, 1.0
    %v3790 = vrcp.pop %v3786
    %v3791 = vmul.f32 1.0, %v3790
    %v3792 = vrcp.pop %v3787
    %v3793 = vmul.f32 1.0, %v3792
    %v3794 = vrcp.pop %v3788
    %v3795 = vmul.f32 1.0, %v3794
    %v3796 = vrcp.pop %v3789
    %v3797 = vmul.f32 1.0, %v3796
    %v3798 = vmul.f32 %v3763, %v3544
    %v3799 = vmul.f32 %v3765, %v3549
    %v3800 = vmul.f32 %v3767, %v3554
    %v3801 = vmul.f32 %v3769, %v3559
    %v3802 = vadd.f32 %v3604, %v3798
    %v3803 = vadd.f32 %v3609, %v3799
    %v3804 = vadd.f32 %v3614, %v3800
    %v3805 = vadd.f32 %v3619, %v3801
    %v3806 = vtanh.pop %v3802
    %v3807 = vtanh.pop %v3803
    %v3808 = vtanh.pop %v3804
    %v3809 = vtanh.pop %v3805
    %v3810 = vsub.f32 1.0, %v3791
    %v3811 = vsub.f32 1.0, %v3793
    %v3812 = vsub.f32 1.0, %v3795
    %v3813 = vsub.f32 1.0, %v3797
    %v3814 = vmul.f32 %v3810, %v3806
    %v3815 = vmul.f32 %v3811, %v3807
    %v3816 = vmul.f32 %v3812, %v3808
    %v3817 = vmul.f32 %v3813, %v3809
    %v3818 = vmul.f32 %v3791, %v3346
    %v3819 = vmul.f32 %v3793, %v3347
    %v3820 = vmul.f32 %v3795, %v3348
    %v3821 = vmul.f32 %v3797, %v3349
    %v3822 = vadd.f32 %v3814, %v3818
    %v3823 = vadd.f32 %v3815, %v3819
    %v3824 = vadd.f32 %v3816, %v3820
    %v3825 = vadd.f32 %v3817, %v3821
    %v3826 = vadd.f32 %v3684, %v3624
    %v3827 = vadd.f32 %v3689, %v3629
    %v3828 = vadd.f32 %v3694, %v3634
    %v3829 = vadd.f32 %v3699, %v3639
    %v3830 = vxor.u32 %v3826, 2147483648
    %v3831 = vxor.u32 %v3827, 2147483648
    %v3832 = vxor.u32 %v3828, 2147483648
    %v3833 = vxor.u32 %v3829, 2147483648
    %v3834 = vmul.f32 %v3830, 1.442695
    %v3835 = vpow.pop %v3834
    %v3836 = vmul.f32 %v3831, 1.442695
    %v3837 = vpow.pop %v3836
    %v3838 = vmul.f32 %v3832, 1.442695
    %v3839 = vpow.pop %v3838
    %v3840 = vmul.f32 %v3833, 1.442695
    %v3841 = vpow.pop %v3840
    %v3842 = vadd.f32 %v3835, 1.0
    %v3843 = vadd.f32 %v3837, 1.0
    %v3844 = vadd.f32 %v3839, 1.0
    %v3845 = vadd.f32 %v3841, 1.0
    %v3846 = vrcp.pop %v3842
    %v3847 = vmul.f32 1.0, %v3846
    %v3848 = vrcp.pop %v3843
    %v3849 = vmul.f32 1.0, %v3848
    %v3850 = vrcp.pop %v3844
    %v3851 = vmul.f32 1.0, %v3850
    %v3852 = vrcp.pop %v3845
    %v3853 = vmul.f32 1.0, %v3852
    %v3854 = vadd.f32 %v3704, %v3644
    %v3855 = vadd.f32 %v3709, %v3649
    %v3856 = vadd.f32 %v3714, %v3654
    %v3857 = vadd.f32 %v3719, %v3659
    %v3858 = vxor.u32 %v3854, 2147483648
    %v3859 = vxor.u32 %v3855, 2147483648
    %v3860 = vxor.u32 %v3856, 2147483648
    %v3861 = vxor.u32 %v3857, 2147483648
    %v3862 = vmul.f32 %v3858, 1.442695
    %v3863 = vpow.pop %v3862
    %v3864 = vmul.f32 %v3859, 1.442695
    %v3865 = vpow.pop %v3864
    %v3866 = vmul.f32 %v3860, 1.442695
    %v3867 = vpow.pop %v3866
    %v3868 = vmul.f32 %v3861, 1.442695
    %v3869 = vpow.pop %v3868
    %v3870 = vadd.f32 %v3863, 1.0
    %v3871 = vadd.f32 %v3865, 1.0
    %v3872 = vadd.f32 %v3867, 1.0
    %v3873 = vadd.f32 %v3869, 1.0
    %v3874 = vrcp.pop %v3870
    %v3875 = vmul.f32 1.0, %v3874
    %v3876 = vrcp.pop %v3871
    %v3877 = vmul.f32 1.0, %v3876
    %v3878 = vrcp.pop %v3872
    %v3879 = vmul.f32 1.0, %v3878
    %v3880 = vrcp.pop %v3873
    %v3881 = vmul.f32 1.0, %v3880
    %v3882 = vmul.f32 %v3847, %v3664
    %v3883 = vmul.f32 %v3849, %v3669
    %v3884 = vmul.f32 %v3851, %v3674
    %v3885 = vmul.f32 %v3853, %v3679
    %v3886 = vadd.f32 %v3724, %v3882
    %v3887 = vadd.f32 %v3729, %v3883
    %v3888 = vadd.f32 %v3734, %v3884
    %v3889 = vadd.f32 %v3739, %v3885
    %v3890 = vtanh.pop %v3886
    %v3891 = vtanh.pop %v3887
    %v3892 = vtanh.pop %v3888
    %v3893 = vtanh.pop %v3889
    %v3894 = vsub.f32 1.0, %v3875
    %v3895 = vsub.f32 1.0, %v3877
    %v3896 = vsub.f32 1.0, %v3879
    %v3897 = vsub.f32 1.0, %v3881
    %v3898 = vmul.f32 %v3894, %v3890
    %v3899 = vmul.f32 %v3895, %v3891
    %v3900 = vmul.f32 %v3896, %v3892
    %v3901 = vmul.f32 %v3897, %v3893
    %v3902 = vmul.f32 %v3875, %v3430
    %v3903 = vmul.f32 %v3877, %v3431
    %v3904 = vmul.f32 %v3879, %v3432
    %v3905 = vmul.f32 %v3881, %v3433
    %v3906 = vadd.f32 %v3898, %v3902
    %v3907 = vadd.f32 %v3899, %v3903
    %v3908 = vadd.f32 %v3900, %v3904
    %v3909 = vadd.f32 %v3901, %v3905
    %3910 = vmatprep.subr.mxu0 0.0
    %3911 = vmatpush1.msra.mxu0 %v3822
    %3912 = vmatprep.subr.mxu0 0.0
    %3913 = vmatpush1.msra.mxu0 %v3823
    %3914 = vmatprep.subr.mxu0 0.0
    %3915 = vmatpush1.msra.mxu0 %v3824
    %3916 = vmatprep.subr.mxu0 0.0
    %3917 = vmatpush1.msra.mxu0 %v3825
    %3918 = vmatprep.subr.mxu0 0.0
    %3919 = vmatpush1.msra.mxu0 %v3906
    %3920 = vmatprep.subr.mxu0 0.0
    %3921 = vmatpush1.msra.mxu0 %v3907
    %3922 = vmatprep.subr.mxu0 0.0
    %3923 = vmatpush1.msra.mxu0 %v3908
    %3924 = vmatprep.subr.mxu0 0.0
    %3925 = vmatpush1.msra.mxu0 %v3909
    %3926 = vmatprep.subr.mxu0 0.0
    %3927 = vmatpush1.msra.mxu0 %v3435
    %3928 = vmatprep.subr.mxu0 0.0
    %3929 = vmatpush1.msra.mxu0 %v3436
    %3930 = vmatprep.subr.mxu0 0.0
    %3931 = vmatpush1.msra.mxu0 0.0
    %3932 = vmatprep.subr.mxu0 0.0
    %3933 = vmatpush1.msra.mxu0 0.0
    %3934 = vmatprep.subr.mxu0 0.0
    %3935 = vmatpush1.msra.mxu0 0.0
    %3936 = vmatprep.subr.mxu0 0.0
    %3937 = vmatpush1.msra.mxu0 0.0
    %3938 = vmatprep.subr.mxu0 0.0
    %3939 = vmatpush1.msra.mxu0 0.0
    %3940 = vmatprep.subr.mxu0 0.0
    %3941 = vmatpush1.msra.mxu0 0.0
    %3942 = vmatprep.subr.mxu0 0.0
    %3943 = vmatpush1.msra.mxu0 0.0
    %3944 = vmatprep.subr.mxu0 0.0
    %3945 = vmatpush1.msra.mxu0 0.0
    %3946 = vmatprep.subr.mxu0 0.0
    %3947 = vmatpush1.msra.mxu0 0.0
    %3948 = vmatprep.subr.mxu0 0.0
    %3949 = vmatpush1.msra.mxu0 0.0
    %3950 = vmatprep.subr.mxu0 0.0
    %3951 = vmatpush1.msra.mxu0 0.0
    %3952 = vmatprep.subr.mxu0 0.0
    %3953 = vmatpush1.msra.mxu0 0.0
    %3954 = vmatprep.subr.mxu0 0.0
    %3955 = vmatpush1.msra.mxu0 0.0
    %3956 = vmatprep.subr.mxu0 0.0
    %3957 = vmatpush1.msra.mxu0 0.0
    %3958 = vmatprep.subr.mxu0 0.0
    %3959 = vmatpush1.msra.mxu0 0.0
    %3960 = vmatprep.subr.mxu0 0.0
    %3961 = vmatpush1.msra.mxu0 0.0
    %3962 = vmatprep.subr.mxu0 0.0
    %3963 = vmatpush1.msra.mxu0 0.0
    %3964 = vmatprep.subr.mxu0 0.0
    %3965 = vmatpush1.msra.mxu0 0.0
    %3966 = vmatprep.subr.mxu0 0.0
    %3967 = vmatpush1.msra.mxu0 0.0
    %3968 = vmatprep.subr.mxu0 0.0
    %3969 = vmatpush1.msra.mxu0 0.0
    %3970 = vmatprep.subr.mxu0 0.0
    %3971 = vmatpush1.msra.mxu0 0.0
    %3972 = vmatprep.subr.mxu0 0.0
    %3973 = vmatpush1.msra.mxu0 0.0
    %3974 = vmatprep.mubr.f32.mxu0 0.0
    %3975 = vmatmul.mubr.f32.gmra.mrb[0].mxu0 %v70
    %v3976 = vpop.f32.mrb[0].mxu0
    %v3977 = vpop.f32.mrb[0].mxu0
    %3978 = vmatprep.mubr.f32.mxu0 0.0
    %3979 = vmatmul.mubr.f32.gmra.mrb[0].mxu0 %v73
    %v3980 = vpop.f32.mrb[0].mxu0
    %v3981 = vpop.f32.mrb[0].mxu0
    %3982 = vmatprep.mubr.f32.mxu0 0.0
    %3983 = vmatmul.mubr.f32.gmra.mrb[0].mxu0 %v76
    %v3984 = vpop.f32.mrb[0].mxu0
    %v3985 = vpop.f32.mrb[0].mxu0
    %3986 = vmatprep.mubr.f32.mxu0 0.0
    %3987 = vmatmul.mubr.f32.gmra.mrb[0].mxu0 %v79
    %v3988 = vpop.f32.mrb[0].mxu0
    %v3989 = vpop.f32.mrb[0].mxu0
    %3990 = vmatprep.mubr.f32.mxu0 0.0
    %3991 = vmatmul.mubr.f32.gmra.mrb[0].mxu0 %v82
    %v3992 = vpop.f32.mrb[0].mxu0
    %v3993 = vpop.f32.mrb[0].mxu0
    %3994 = vmatprep.mubr.f32.mxu0 0.0
    %3995 = vmatmul.mubr.f32.gmra.mrb[0].mxu0 %v85
    %v3996 = vpop.f32.mrb[0].mxu0
    %v3997 = vpop.f32.mrb[0].mxu0
    %3998 = vmatprep.mubr.f32.mxu0 0.0
    %3999 = vmatmul.mubr.f32.gmra.mrb[0].mxu0 %v88
    %v4000 = vpop.f32.mrb[0].mxu0
    %v4001 = vpop.f32.mrb[0].mxu0
    %4002 = vmatprep.mubr.f32.mxu0 0.0
    %4003 = vmatmul.mubr.f32.gmra.mrb[0].mxu0 %v91
    %v4004 = vpop.f32.mrb[0].mxu0
    %v4005 = vpop.f32.mrb[0].mxu0
    %4006 = vmatprep.mubr.f32.mxu0 0.0
    %4007 = vmatmul.mubr.f32.gmra.mrb[0].mxu0 %v94
    %v4008 = vpop.f32.mrb[0].mxu0
    %v4009 = vpop.f32.mrb[0].mxu0
    %4010 = vmatprep.mubr.f32.mxu0 0.0
    %4011 = vmatmul.mubr.f32.gmra.mrb[0].mxu0 %v97
    %v4012 = vpop.f32.mrb[0].mxu0
    %v4013 = vpop.f32.mrb[0].mxu0
    %4014 = vmatprep.mubr.f32.mxu0 0.0
    %4015 = vmatmul.mubr.f32.gmra.mrb[0].mxu0 %v100
    %v4016 = vpop.f32.mrb[0].mxu0
    %v4017 = vpop.f32.mrb[0].mxu0
    %4018 = vmatprep.mubr.f32.mxu0 0.0
    %4019 = vmatmul.mubr.f32.gmra.mrb[0].mxu0 %v103
    %v4020 = vpop.f32.mrb[0].mxu0
    %v4021 = vpop.f32.mrb[0].mxu0
    %4022 = vmatprep.mubr.f32.mxu0 0.0
    %4023 = vmatmul.mubr.f32.gmra.mrb[0].mxu0 %v106
    %v4024 = vpop.f32.mrb[0].mxu0
    %v4025 = vpop.f32.mrb[0].mxu0
    %4026 = vmatprep.mubr.f32.mxu0 0.0
    %4027 = vmatmul.mubr.f32.gmra.mrb[0].mxu0 %v109
    %v4028 = vpop.f32.mrb[0].mxu0
    %v4029 = vpop.f32.mrb[0].mxu0
    %4030 = vmatprep.mubr.f32.mxu0 0.0
    %4031 = vmatmul.mubr.f32.gmra.mrb[0].mxu0 %v112
    %v4032 = vpop.f32.mrb[0].mxu0
    %v4033 = vpop.f32.mrb[0].mxu0
    %4034 = vmatprep.mubr.f32.mxu0 0.0
    %4035 = vmatmul.mubr.f32.gmra.mrb[0].mxu0 %v115
    %v4036 = vpop.f32.mrb[0].mxu0
    %v4037 = vpop.f32.mrb[0].mxu0
    %4038 = vmatprep.mubr.f32.mxu0 0.0
    %4039 = vmatmul.mubr.f32.gmra.mrb[0].mxu0 %v118
    %v4040 = vpop.f32.mrb[0].mxu0
    %v4041 = vpop.f32.mrb[0].mxu0
    %4042 = vmatprep.mubr.f32.mxu0 0.0
    %4043 = vmatmul.mubr.f32.gmra.mrb[0].mxu0 %v121
    %v4044 = vpop.f32.mrb[0].mxu0
    %v4045 = vpop.f32.mrb[0].mxu0
    %4046 = vmatprep.mubr.f32.mxu0 0.0
    %4047 = vmatmul.mubr.f32.gmra.mrb[0].mxu0 %v124
    %v4048 = vpop.f32.mrb[0].mxu0
    %v4049 = vpop.f32.mrb[0].mxu0
    %4050 = vmatprep.mubr.f32.mxu0 0.0
    %4051 = vmatmul.mubr.f32.gmra.mrb[0].mxu0 %v127
    %v4052 = vpop.f32.mrb[0].mxu0
    %v4053 = vpop.f32.mrb[0].mxu0
    %4054 = vmatprep.mubr.f32.mxu0 0.0
    %4055 = vmatmul.mubr.f32.gmra.mrb[0].mxu0 %v130
    %v4056 = vpop.f32.mrb[0].mxu0
    %v4057 = vpop.f32.mrb[0].mxu0
    %4058 = vmatprep.mubr.f32.mxu0 0.0
    %4059 = vmatmul.mubr.f32.gmra.mrb[0].mxu0 %v133
    %v4060 = vpop.f32.mrb[0].mxu0
    %v4061 = vpop.f32.mrb[0].mxu0
    %4062 = vmatprep.mubr.f32.mxu0 0.0
    %4063 = vmatmul.mubr.f32.gmra.mrb[0].mxu0 %v136
    %v4064 = vpop.f32.mrb[0].mxu0
    %v4065 = vpop.f32.mrb[0].mxu0
    %4066 = vmatprep.mubr.f32.mxu0 0.0
    %4067 = vmatmul.mubr.f32.gmra.mrb[0].mxu0 %v139
    %v4068 = vpop.f32.mrb[0].mxu0
    %v4069 = vpop.f32.mrb[0].mxu0
    %4070 = vmatprep.mubr.f32.mxu0 0.0
    %4071 = vmatmul.mubr.f32.gmra.mrb[0].mxu0 %v142
    %v4072 = vpop.f32.mrb[0].mxu0
    %v4073 = vadd.f32 0.0, %v4072
    %v4074 = vpop.f32.mrb[0].mxu0
    %4075 = vmatprep.mubr.f32.mxu0 0.0
    %4076 = vmatmul.mubr.f32.gmra.mrb[0].mxu0 %v145
    %v4077 = vpop.f32.mrb[0].mxu0
    %v4078 = vadd.f32 0.0, %v4077
    %v4079 = vpop.f32.mrb[0].mxu0
    %4080 = vmatprep.mubr.f32.mxu0 0.0
    %4081 = vmatmul.mubr.f32.gmra.mrb[0].mxu0 %v148
    %v4082 = vpop.f32.mrb[0].mxu0
    %v4083 = vadd.f32 0.0, %v4082
    %v4084 = vpop.f32.mrb[0].mxu0
    %4085 = vmatprep.mubr.f32.mxu0 0.0
    %4086 = vmatmul.mubr.f32.gmra.mrb[0].mxu0 %v151
    %v4087 = vpop.f32.mrb[0].mxu0
    %v4088 = vadd.f32 0.0, %v4087
    %v4089 = vpop.f32.mrb[0].mxu0
    %4090 = vmatprep.mubr.f32.mxu0 0.0
    %4091 = vmatmul.mubr.f32.gmra.mrb[0].mxu0 %v154
    %v4092 = vpop.f32.mrb[0].mxu0
    %v4093 = vadd.f32 0.0, %v4092
    %v4094 = vpop.f32.mrb[0].mxu0
    %4095 = vmatprep.mubr.f32.mxu0 0.0
    %4096 = vmatmul.mubr.f32.gmra.mrb[0].mxu0 %v157
    %v4097 = vpop.f32.mrb[0].mxu0
    %v4098 = vadd.f32 0.0, %v4097
    %v4099 = vpop.f32.mrb[0].mxu0
    %4100 = vmatprep.mubr.f32.mxu0 0.0
    %4101 = vmatmul.mubr.f32.gmra.mrb[0].mxu0 %v160
    %v4102 = vpop.f32.mrb[0].mxu0
    %v4103 = vadd.f32 0.0, %v4102
    %v4104 = vpop.f32.mrb[0].mxu0
    %4105 = vmatprep.mubr.f32.mxu0 0.0
    %4106 = vmatmul.mubr.f32.gmra.mrb[0].mxu0 %v163
    %v4107 = vpop.f32.mrb[0].mxu0
    %v4108 = vadd.f32 0.0, %v4107
    %v4109 = vpop.f32.mrb[0].mxu0
    %4110 = vmatprep.mubr.f32.mxu0 0.0
    %4111 = vmatmul.mubr.f32.gmra.mrb[0].mxu0 %v166
    %v4112 = vpop.f32.mrb[0].mxu0
    %v4113 = vadd.f32 0.0, %v4112
    %v4114 = vpop.f32.mrb[0].mxu0
    %4115 = vmatprep.mubr.f32.mxu0 0.0
    %4116 = vmatmul.mubr.f32.gmra.mrb[0].mxu0 %v169
    %v4117 = vpop.f32.mrb[0].mxu0
    %v4118 = vadd.f32 0.0, %v4117
    %v4119 = vpop.f32.mrb[0].mxu0
    %4120 = vmatprep.mubr.f32.mxu0 0.0
    %4121 = vmatmul.mubr.f32.gmra.mrb[0].mxu0 %v172
    %v4122 = vpop.f32.mrb[0].mxu0
    %v4123 = vadd.f32 0.0, %v4122
    %v4124 = vpop.f32.mrb[0].mxu0
    %4125 = vmatprep.mubr.f32.mxu0 0.0
    %4126 = vmatmul.mubr.f32.gmra.mrb[0].mxu0 %v175
    %v4127 = vpop.f32.mrb[0].mxu0
    %v4128 = vadd.f32 0.0, %v4127
    %v4129 = vpop.f32.mrb[0].mxu0
    %4130 = vmatprep.mubr.f32.mxu0 0.0
    %4131 = vmatmul.mubr.f32.gmra.mrb[0].mxu0 %v178
    %v4132 = vpop.f32.mrb[0].mxu0
    %v4133 = vadd.f32 0.0, %v4132
    %v4134 = vpop.f32.mrb[0].mxu0
    %4135 = vmatprep.mubr.f32.mxu0 0.0
    %4136 = vmatmul.mubr.f32.gmra.mrb[0].mxu0 %v181
    %v4137 = vpop.f32.mrb[0].mxu0
    %v4138 = vadd.f32 0.0, %v4137
    %v4139 = vpop.f32.mrb[0].mxu0
    %4140 = vmatprep.mubr.f32.mxu0 0.0
    %4141 = vmatmul.mubr.f32.gmra.mrb[0].mxu0 %v184
    %v4142 = vpop.f32.mrb[0].mxu0
    %v4143 = vadd.f32 0.0, %v4142
    %v4144 = vpop.f32.mrb[0].mxu0
    %4145 = vmatprep.mubr.f32.mxu0 0.0
    %4146 = vmatmul.mubr.f32.gmra.mrb[0].mxu0 %v187
    %v4147 = vpop.f32.mrb[0].mxu0
    %v4148 = vadd.f32 0.0, %v4147
    %v4149 = vpop.f32.mrb[0].mxu0
    %4150 = vmatprep.mubr.f32.mxu0 0.0
    %4151 = vmatmul.mubr.f32.gmra.mrb[0].mxu0 %v190
    %v4152 = vpop.f32.mrb[0].mxu0
    %v4153 = vadd.f32 0.0, %v4152
    %v4154 = vpop.f32.mrb[0].mxu0
    %4155 = vmatprep.mubr.f32.mxu0 0.0
    %4156 = vmatmul.mubr.f32.gmra.mrb[0].mxu0 %v193
    %v4157 = vpop.f32.mrb[0].mxu0
    %v4158 = vadd.f32 0.0, %v4157
    %v4159 = vpop.f32.mrb[0].mxu0
    %4160 = vmatprep.mubr.f32.mxu0 0.0
    %4161 = vmatmul.mubr.f32.gmra.mrb[0].mxu0 %v196
    %v4162 = vpop.f32.mrb[0].mxu0
    %v4163 = vadd.f32 0.0, %v4162
    %v4164 = vpop.f32.mrb[0].mxu0
    %4165 = vmatprep.mubr.f32.mxu0 0.0
    %4166 = vmatmul.mubr.f32.gmra.mrb[0].mxu0 %v199
    %v4167 = vpop.f32.mrb[0].mxu0
    %v4168 = vadd.f32 0.0, %v4167
    %v4169 = vpop.f32.mrb[0].mxu0
    %4170 = vmatprep.mubr.f32.mxu0 0.0
    %4171 = vmatmul.mubr.f32.gmra.mrb[0].mxu0 %v202
    %v4172 = vpop.f32.mrb[0].mxu0
    %v4173 = vadd.f32 0.0, %v4172
    %v4174 = vpop.f32.mrb[0].mxu0
    %4175 = vmatprep.mubr.f32.mxu0 0.0
    %4176 = vmatmul.mubr.f32.gmra.mrb[0].mxu0 %v205
    %v4177 = vpop.f32.mrb[0].mxu0
    %v4178 = vadd.f32 0.0, %v4177
    %v4179 = vpop.f32.mrb[0].mxu0
    %4180 = vmatprep.mubr.f32.mxu0 0.0
    %4181 = vmatmul.mubr.f32.gmra.mrb[0].mxu0 %v208
    %v4182 = vpop.f32.mrb[0].mxu0
    %v4183 = vadd.f32 0.0, %v4182
    %v4184 = vpop.f32.mrb[0].mxu0
    %4185 = vmatprep.mubr.f32.mxu0 0.0
    %4186 = vmatmul.mubr.f32.gmra.mrb[0].mxu0 %v211
    %v4187 = vpop.f32.mrb[0].mxu0
    %v4188 = vadd.f32 0.0, %v4187
    %v4189 = vpop.f32.mrb[0].mxu0
    %4190 = vdwg.mxu0
    %v4191 = vadd.f32 %v4133, %v4073
    %v4192 = vadd.f32 %v4138, %v4078
    %v4193 = vadd.f32 %v4143, %v4083
    %v4194 = vadd.f32 %v4148, %v4088
    %v4195 = vxor.u32 %v4191, 2147483648
    %v4196 = vxor.u32 %v4192, 2147483648
    %v4197 = vxor.u32 %v4193, 2147483648
    %v4198 = vxor.u32 %v4194, 2147483648
    %v4199 = vmul.f32 %v4195, 1.442695
    %v4200 = vpow.pop %v4199
    %v4201 = vmul.f32 %v4196, 1.442695
    %v4202 = vpow.pop %v4201
    %v4203 = vmul.f32 %v4197, 1.442695
    %v4204 = vpow.pop %v4203
    %v4205 = vmul.f32 %v4198, 1.442695
    %v4206 = vpow.pop %v4205
    %v4207 = vadd.f32 %v4200, 1.0
    %v4208 = vadd.f32 %v4202, 1.0
    %v4209 = vadd.f32 %v4204, 1.0
    %v4210 = vadd.f32 %v4206, 1.0
    %v4211 = vrcp.pop %v4207
    %v4212 = vmul.f32 1.0, %v4211
    %v4213 = vrcp.pop %v4208
    %v4214 = vmul.f32 1.0, %v4213
    %v4215 = vrcp.pop %v4209
    %v4216 = vmul.f32 1.0, %v4215
    %v4217 = vrcp.pop %v4210
    %v4218 = vmul.f32 1.0, %v4217
    %v4219 = vadd.f32 %v4153, %v4093
    %v4220 = vadd.f32 %v4158, %v4098
    %v4221 = vadd.f32 %v4163, %v4103
    %v4222 = vadd.f32 %v4168, %v4108
    %v4223 = vxor.u32 %v4219, 2147483648
    %v4224 = vxor.u32 %v4220, 2147483648
    %v4225 = vxor.u32 %v4221, 2147483648
    %v4226 = vxor.u32 %v4222, 2147483648
    %v4227 = vmul.f32 %v4223, 1.442695
    %v4228 = vpow.pop %v4227
    %v4229 = vmul.f32 %v4224, 1.442695
    %v4230 = vpow.pop %v4229
    %v4231 = vmul.f32 %v4225, 1.442695
    %v4232 = vpow.pop %v4231
    %v4233 = vmul.f32 %v4226, 1.442695
    %v4234 = vpow.pop %v4233
    %v4235 = vadd.f32 %v4228, 1.0
    %v4236 = vadd.f32 %v4230, 1.0
    %v4237 = vadd.f32 %v4232, 1.0
    %v4238 = vadd.f32 %v4234, 1.0
    %v4239 = vrcp.pop %v4235
    %v4240 = vmul.f32 1.0, %v4239
    %v4241 = vrcp.pop %v4236
    %v4242 = vmul.f32 1.0, %v4241
    %v4243 = vrcp.pop %v4237
    %v4244 = vmul.f32 1.0, %v4243
    %v4245 = vrcp.pop %v4238
    %v4246 = vmul.f32 1.0, %v4245
    %v4247 = vmul.f32 %v4212, %v4113
    %v4248 = vmul.f32 %v4214, %v4118
    %v4249 = vmul.f32 %v4216, %v4123
    %v4250 = vmul.f32 %v4218, %v4128
    %v4251 = vadd.f32 %v4173, %v4247
    %v4252 = vadd.f32 %v4178, %v4248
    %v4253 = vadd.f32 %v4183, %v4249
    %v4254 = vadd.f32 %v4188, %v4250
    %v4255 = vtanh.pop %v4251
    %v4256 = vtanh.pop %v4252
    %v4257 = vtanh.pop %v4253
    %v4258 = vtanh.pop %v4254
    %v4259 = vsub.f32 1.0, %v4240
    %v4260 = vsub.f32 1.0, %v4242
    %v4261 = vsub.f32 1.0, %v4244
    %v4262 = vsub.f32 1.0, %v4246
    %v4263 = vmul.f32 %v4259, %v4255
    %v4264 = vmul.f32 %v4260, %v4256
    %v4265 = vmul.f32 %v4261, %v4257
    %v4266 = vmul.f32 %v4262, %v4258
    %v4267 = vmul.f32 %v4240, %v3906
    %v4268 = vmul.f32 %v4242, %v3907
    %v4269 = vmul.f32 %v4244, %v3908
    %v4270 = vmul.f32 %v4246, %v3909
    %v4271 = vadd.f32 %v4263, %v4267
    %v4272 = vadd.f32 %v4264, %v4268
    %v4273 = vadd.f32 %v4265, %v4269
    %v4274 = vadd.f32 %v4266, %v4270
    %4275 = vxpose.xlu0.b32.start [1/16] %v4271, 128
    %4276 = vxpose.xlu0.b32.cont [2/16] %v4272, 128
    %4277 = vxpose.xlu0.b32.cont [3/16] %v4273, 128
    %4278 = vxpose.xlu0.b32.cont [4/16] %v4274, 128
    %4279 = vxpose.xlu0.b32.cont [5/16] 0.0, 128
    %4280 = vxpose.xlu0.b32.cont [6/16] 0.0, 128
    %4281 = vxpose.xlu0.b32.cont [7/16] 0.0, 128
    %4282 = vxpose.xlu0.b32.cont [8/16] 0.0, 128
    %4283 = vxpose.xlu0.b32.cont [9/16] 0.0, 128
    %4284 = vxpose.xlu0.b32.cont [10/16] 0.0, 128
    %4285 = vxpose.xlu0.b32.cont [11/16] 0.0, 128
    %4286 = vxpose.xlu0.b32.cont [12/16] 0.0, 128
    %4287 = vxpose.xlu0.b32.cont [13/16] 0.0, 128
    %4288 = vxpose.xlu0.b32.cont [14/16] 0.0, 128
    %4289 = vxpose.xlu0.b32.cont [15/16] 0.0, 128
    %4290 = vxpose.xlu0.b32.end [16/16] 0.0, 128
    %v4291 = vpop.trf.xlu0
    %v4292 = vpop.trf.xlu0
    %v4293 = vpop.trf.xlu0
    %v4294 = vpop.trf.xlu0
    %v4295 = vpop.trf.xlu0
    %v4296 = vpop.trf.xlu0
    %v4297 = vpop.trf.xlu0
    %v4298 = vpop.trf.xlu0
    %v4299 = vpop.trf.xlu0
    %v4300 = vpop.trf.xlu0
    %v4301 = vpop.trf.xlu0
    %v4302 = vpop.trf.xlu0
    %v4303 = vpop.trf.xlu0
    %v4304 = vpop.trf.xlu0
    %v4305 = vpop.trf.xlu0
    %v4306 = vpop.trf.xlu0
    %v4307 = vld [vmem:[%s1] sm:$0xff]
    %v4308 = vld [vmem:[%s1 + $0x8] sm:$0xff]
    %v4309 = vld [vmem:[%s1 + $0x10] sm:$0xff]
    %v4310 = vld [vmem:[%s1 + $0x18] sm:$0xff]
    %v4311 = vld [vmem:[%s1 + $0x20] sm:$0xff]
    %v4312 = vld [vmem:[%s1 + $0x28] sm:$0xff]
    %v4313 = vld [vmem:[%s1 + $0x30] sm:$0xff]
    %v4314 = vld [vmem:[%s1 + $0x38] sm:$0xff]
    %v4315 = vld [vmem:[%s1 + $0x40] sm:$0xff]
    %v4316 = vld [vmem:[%s1 + $0x48] sm:$0xff]
    %v4317 = vld [vmem:[%s1 + $0x50] sm:$0xff]
    %v4318 = vld [vmem:[%s1 + $0x58] sm:$0xff]
    %v4319 = vld [vmem:[%s1 + $0x60] sm:$0xff]
    %v4320 = vld [vmem:[%s1 + $0x68] sm:$0xff]
    %v4321 = vld [vmem:[%s1 + $0x70] sm:$0xff]
    %v4322 = vld [vmem:[%s1 + $0x78] sm:$0xff]
    %v4323 = vld [vmem:[%s3] sm:$0xff]
    %v4324 = vld [vmem:[%s3 + $0x8] sm:$0xff]
    %v4325 = vld [vmem:[%s3 + $0x10] sm:$0xff]
    %v4326 = vld [vmem:[%s3 + $0x18] sm:$0xff]
    %v4327 = vld [vmem:[%s3 + $0x20] sm:$0xff]
    %v4328 = vld [vmem:[%s3 + $0x28] sm:$0xff]
    %v4329 = vld [vmem:[%s3 + $0x30] sm:$0xff]
    %v4330 = vld [vmem:[%s3 + $0x38] sm:$0xff]
    %v4331 = vld [vmem:[%s3 + $0x40] sm:$0xff]
    %vm4332 = vcmask 588800
    %v4334 = vsel %vm4332, %v4307, 0
    %v4337 = vsel %vm4332, %v4308, 0
    %v4340 = vsel %vm4332, %v4309, 0
    %v4343 = vsel %vm4332, %v4310, 0
    %v4346 = vsel %vm4332, %v4311, 0
    %v4349 = vsel %vm4332, %v4312, 0
    %v4352 = vsel %vm4332, %v4313, 0
    %v4355 = vsel %vm4332, %v4314, 0
    %v4358 = vsel %vm4332, %v4315, 0
    %v4361 = vsel %vm4332, %v4316, 0
    %v4364 = vsel %vm4332, %v4317, 0
    %v4367 = vsel %vm4332, %v4318, 0
    %v4370 = vsel %vm4332, %v4319, 0
    %v4373 = vsel %vm4332, %v4320, 0
    %v4376 = vsel %vm4332, %v4321, 0
    %v4379 = vsel %vm4332, %v4322, 0
    %4381 = vmatprep.subr.mxu0 0.0
    %4382 = vmatpush1.msra.mxu0 %v4323
    %4383 = vmatprep.subr.mxu0 0.0
    %4384 = vmatpush1.msra.mxu0 %v4324
    %4385 = vmatprep.subr.mxu0 0.0
    %4386 = vmatpush1.msra.mxu0 %v4325
    %4387 = vmatprep.subr.mxu0 0.0
    %4388 = vmatpush1.msra.mxu0 %v4326
    %4389 = vmatprep.subr.mxu0 0.0
    %4390 = vmatpush1.msra.mxu0 %v4327
    %4391 = vmatprep.subr.mxu0 0.0
    %4392 = vmatpush1.msra.mxu0 %v4328
    %4393 = vmatprep.subr.mxu0 0.0
    %4394 = vmatpush1.msra.mxu0 %v4329
    %4395 = vmatprep.subr.mxu0 0.0
    %4396 = vmatpush1.msra.mxu0 %v4330
    %4397 = vmatprep.subr.mxu0 0.0
    %4398 = vmatpush1.msra.mxu0 %v4331
    %4399 = vmatprep.subr.mxu0 0.0
    %4400 = vmatpush1.msra.mxu0 0.0
    %4401 = vmatprep.subr.mxu0 0.0
    %4402 = vmatpush1.msra.mxu0 0.0
    %4403 = vmatprep.subr.mxu0 0.0
    %4404 = vmatpush1.msra.mxu0 0.0
    %4405 = vmatprep.subr.mxu0 0.0
    %4406 = vmatpush1.msra.mxu0 0.0
    %4407 = vmatprep.subr.mxu0 0.0
    %4408 = vmatpush1.msra.mxu0 0.0
    %4409 = vmatprep.subr.mxu0 0.0
    %4410 = vmatpush1.msra.mxu0 0.0
    %4411 = vmatprep.subr.mxu0 0.0
    %4412 = vmatpush1.msra.mxu0 0.0
    %4413 = vmatprep.subr.mxu0 0.0
    %4414 = vmatpush1.msra.mxu0 0.0
    %4415 = vmatprep.subr.mxu0 0.0
    %4416 = vmatpush1.msra.mxu0 0.0
    %4417 = vmatprep.subr.mxu0 0.0
    %4418 = vmatpush1.msra.mxu0 0.0
    %4419 = vmatprep.subr.mxu0 0.0
    %4420 = vmatpush1.msra.mxu0 0.0
    %4421 = vmatprep.subr.mxu0 0.0
    %4422 = vmatpush1.msra.mxu0 0.0
    %4423 = vmatprep.subr.mxu0 0.0
    %4424 = vmatpush1.msra.mxu0 0.0
    %4425 = vmatprep.subr.mxu0 0.0
    %4426 = vmatpush1.msra.mxu0 0.0
    %4427 = vmatprep.subr.mxu0 0.0
    %4428 = vmatpush1.msra.mxu0 0.0
    %4429 = vmatprep.subr.mxu0 0.0
    %4430 = vmatpush1.msra.mxu0 0.0
    %4431 = vmatprep.subr.mxu0 0.0
    %4432 = vmatpush1.msra.mxu0 0.0
    %4433 = vmatprep.subr.mxu0 0.0
    %4434 = vmatpush1.msra.mxu0 0.0
    %4435 = vmatprep.subr.mxu0 0.0
    %4436 = vmatpush1.msra.mxu0 0.0
    %4437 = vmatprep.subr.mxu0 0.0
    %4438 = vmatpush1.msra.mxu0 0.0
    %4439 = vmatprep.subr.mxu0 0.0
    %4440 = vmatpush1.msra.mxu0 0.0
    %4441 = vmatprep.subr.mxu0 0.0
    %4442 = vmatpush1.msra.mxu0 0.0
    %4443 = vmatprep.subr.mxu0 0.0
    %4444 = vmatpush1.msra.mxu0 0.0
    %4445 = vmatprep.mubr.f32.mxu0 0.0
    %4446 = vmatmul.mubr.f32.gmra.mrb[0].mxu0 %v4334
    %v4447 = vpop.f32.mrb[0].mxu0
    %v4448 = vadd.f32 0.0, %v4447
    %v4449 = vpop.f32.mrb[0].mxu0
    %4450 = vmatprep.mubr.f32.mxu0 0.0
    %4451 = vmatmul.mubr.f32.gmra.mrb[0].mxu0 %v4337
    %v4452 = vpop.f32.mrb[0].mxu0
    %v4453 = vadd.f32 0.0, %v4452
    %v4454 = vpop.f32.mrb[0].mxu0
    %4455 = vmatprep.mubr.f32.mxu0 0.0
    %4456 = vmatmul.mubr.f32.gmra.mrb[0].mxu0 %v4340
    %v4457 = vpop.f32.mrb[0].mxu0
    %v4458 = vadd.f32 0.0, %v4457
    %v4459 = vpop.f32.mrb[0].mxu0
    %4460 = vmatprep.mubr.f32.mxu0 0.0
    %4461 = vmatmul.mubr.f32.gmra.mrb[0].mxu0 %v4343
    %v4462 = vpop.f32.mrb[0].mxu0
    %v4463 = vadd.f32 0.0, %v4462
    %v4464 = vpop.f32.mrb[0].mxu0
    %4465 = vmatprep.mubr.f32.mxu0 0.0
    %4466 = vmatmul.mubr.f32.gmra.mrb[0].mxu0 %v4346
    %v4467 = vpop.f32.mrb[0].mxu0
    %v4468 = vadd.f32 0.0, %v4467
    %v4469 = vpop.f32.mrb[0].mxu0
    %4470 = vmatprep.mubr.f32.mxu0 0.0
    %4471 = vmatmul.mubr.f32.gmra.mrb[0].mxu0 %v4349
    %v4472 = vpop.f32.mrb[0].mxu0
    %v4473 = vadd.f32 0.0, %v4472
    %v4474 = vpop.f32.mrb[0].mxu0
    %4475 = vmatprep.mubr.f32.mxu0 0.0
    %4476 = vmatmul.mubr.f32.gmra.mrb[0].mxu0 %v4352
    %v4477 = vpop.f32.mrb[0].mxu0
    %v4478 = vadd.f32 0.0, %v4477
    %v4479 = vpop.f32.mrb[0].mxu0
    %4480 = vmatprep.mubr.f32.mxu0 0.0
    %4481 = vmatmul.mubr.f32.gmra.mrb[0].mxu0 %v4355
    %v4482 = vpop.f32.mrb[0].mxu0
    %v4483 = vadd.f32 0.0, %v4482
    %v4484 = vpop.f32.mrb[0].mxu0
    %4485 = vmatprep.mubr.f32.mxu0 0.0
    %4486 = vmatmul.mubr.f32.gmra.mrb[0].mxu0 %v4358
    %v4487 = vpop.f32.mrb[0].mxu0
    %v4488 = vadd.f32 0.0, %v4487
    %v4489 = vpop.f32.mrb[0].mxu0
    %4490 = vmatprep.mubr.f32.mxu0 0.0
    %4491 = vmatmul.mubr.f32.gmra.mrb[0].mxu0 %v4361
    %v4492 = vpop.f32.mrb[0].mxu0
    %v4493 = vadd.f32 0.0, %v4492
    %v4494 = vpop.f32.mrb[0].mxu0
    %4495 = vmatprep.mubr.f32.mxu0 0.0
    %4496 = vmatmul.mubr.f32.gmra.mrb[0].mxu0 %v4364
    %v4497 = vpop.f32.mrb[0].mxu0
    %v4498 = vadd.f32 0.0, %v4497
    %v4499 = vpop.f32.mrb[0].mxu0
    %4500 = vmatprep.mubr.f32.mxu0 0.0
    %4501 = vmatmul.mubr.f32.gmra.mrb[0].mxu0 %v4367
    %v4502 = vpop.f32.mrb[0].mxu0
    %v4503 = vadd.f32 0.0, %v4502
    %v4504 = vpop.f32.mrb[0].mxu0
    %4505 = vmatprep.mubr.f32.mxu0 0.0
    %4506 = vmatmul.mubr.f32.gmra.mrb[0].mxu0 %v4370
    %v4507 = vpop.f32.mrb[0].mxu0
    %v4508 = vadd.f32 0.0, %v4507
    %v4509 = vpop.f32.mrb[0].mxu0
    %4510 = vmatprep.mubr.f32.mxu0 0.0
    %4511 = vmatmul.mubr.f32.gmra.mrb[0].mxu0 %v4373
    %v4512 = vpop.f32.mrb[0].mxu0
    %v4513 = vadd.f32 0.0, %v4512
    %v4514 = vpop.f32.mrb[0].mxu0
    %4515 = vmatprep.mubr.f32.mxu0 0.0
    %4516 = vmatmul.mubr.f32.gmra.mrb[0].mxu0 %v4376
    %v4517 = vpop.f32.mrb[0].mxu0
    %v4518 = vadd.f32 0.0, %v4517
    %v4519 = vpop.f32.mrb[0].mxu0
    %4520 = vmatprep.mubr.f32.mxu0 0.0
    %4521 = vmatmul.mubr.f32.gmra.mrb[0].mxu0 %v4379
    %v4522 = vpop.f32.mrb[0].mxu0
    %v4523 = vadd.f32 0.0, %v4522
    %v4524 = vpop.f32.mrb[0].mxu0
    %4525 = vdwg.mxu0
    %v4526 = vmax.f32 %v4448, 0.0
    %v4527 = vmax.f32 %v4453, 0.0
    %v4528 = vmax.f32 %v4458, 0.0
    %v4529 = vmax.f32 %v4463, 0.0
    %v4530 = vmax.f32 %v4468, 0.0
    %v4531 = vmax.f32 %v4473, 0.0
    %v4532 = vmax.f32 %v4478, 0.0
    %v4533 = vmax.f32 %v4483, 0.0
    %v4534 = vmax.f32 %v4488, 0.0
    %v4535 = vmax.f32 %v4493, 0.0
    %v4536 = vmax.f32 %v4498, 0.0
    %v4537 = vmax.f32 %v4503, 0.0
    %v4538 = vmax.f32 %v4508, 0.0
    %v4539 = vmax.f32 %v4513, 0.0
    %v4540 = vmax.f32 %v4518, 0.0
    %v4541 = vmax.f32 %v4523, 0.0
    %4558 = vrot.lane.b32.xlu0 %v4291, 32
    %v4559 = vpop.permute.xlu0 %4558
    %4560 = vrot.lane.b32.xlu0 %v4292, 32
    %v4561 = vpop.permute.xlu0 %4560
    %4562 = vrot.lane.b32.xlu0 %v4293, 32
    %v4563 = vpop.permute.xlu0 %4562
    %4564 = vrot.lane.b32.xlu0 %v4294, 32
    %v4565 = vpop.permute.xlu0 %4564
    %4566 = vrot.lane.b32.xlu0 %v4295, 32
    %v4567 = vpop.permute.xlu0 %4566
    %4568 = vrot.lane.b32.xlu0 %v4296, 32
    %v4569 = vpop.permute.xlu0 %4568
    %4570 = vrot.lane.b32.xlu0 %v4297, 32
    %v4571 = vpop.permute.xlu0 %4570
    %4572 = vrot.lane.b32.xlu0 %v4298, 32
    %v4573 = vpop.permute.xlu0 %4572
    %4574 = vrot.lane.b32.xlu0 %v4299, 32
    %v4575 = vpop.permute.xlu0 %4574
    %4576 = vrot.lane.b32.xlu0 %v4300, 32
    %v4577 = vpop.permute.xlu0 %4576
    %4578 = vrot.lane.b32.xlu0 %v4301, 32
    %v4579 = vpop.permute.xlu0 %4578
    %4580 = vrot.lane.b32.xlu0 %v4302, 32
    %v4581 = vpop.permute.xlu0 %4580
    %4582 = vrot.lane.b32.xlu0 %v4303, 32
    %v4583 = vpop.permute.xlu0 %4582
    %4584 = vrot.lane.b32.xlu0 %v4304, 32
    %v4585 = vpop.permute.xlu0 %4584
    %4586 = vrot.lane.b32.xlu0 %v4305, 32
    %v4587 = vpop.permute.xlu0 %4586
    %4588 = vrot.lane.b32.xlu0 %v4306, 32
    %v4589 = vpop.permute.xlu0 %4588
    %vm4606 = vcmask 261120
    %v4607 = vsel %vm4606, %v4526, %v4559
    %v4608 = vsel %vm4606, %v4527, %v4561
    %v4609 = vsel %vm4606, %v4528, %v4563
    %v4610 = vsel %vm4606, %v4529, %v4565
    %v4611 = vsel %vm4606, %v4530, %v4567
    %v4612 = vsel %vm4606, %v4531, %v4569
    %v4613 = vsel %vm4606, %v4532, %v4571
    %v4614 = vsel %vm4606, %v4533, %v4573
    %v4615 = vsel %vm4606, %v4534, %v4575
    %v4616 = vsel %vm4606, %v4535, %v4577
    %v4617 = vsel %vm4606, %v4536, %v4579
    %v4618 = vsel %vm4606, %v4537, %v4581
    %v4619 = vsel %vm4606, %v4538, %v4583
    %v4620 = vsel %vm4606, %v4539, %v4585
    %v4621 = vsel %vm4606, %v4540, %v4587
    %v4622 = vsel %vm4606, %v4541, %v4589
    %vm4623 = vcmask 523264
    %v4624 = vsel %vm4623, %v4607, %v4448
    %v4625 = vsel %vm4623, %v4608, %v4453
    %v4626 = vsel %vm4623, %v4609, %v4458
    %v4627 = vsel %vm4623, %v4610, %v4463
    %v4628 = vsel %vm4623, %v4611, %v4468
    %v4629 = vsel %vm4623, %v4612, %v4473
    %v4630 = vsel %vm4623, %v4613, %v4478
    %v4631 = vsel %vm4623, %v4614, %v4483
    %v4632 = vsel %vm4623, %v4615, %v4488
    %v4633 = vsel %vm4623, %v4616, %v4493
    %v4634 = vsel %vm4623, %v4617, %v4498
    %v4635 = vsel %vm4623, %v4618, %v4503
    %v4636 = vsel %vm4623, %v4619, %v4508
    %v4637 = vsel %vm4623, %v4620, %v4513
    %v4638 = vsel %vm4623, %v4621, %v4518
    %v4639 = vsel %vm4623, %v4622, %v4523
    %4640 = vst [vmem:[#allocation2] sm:$0xff] %v4624
    %4641 = vst [vmem:[#allocation2 + $0x8] sm:$0xff] %v4625
    %4642 = vst [vmem:[#allocation2 + $0x10] sm:$0xff] %v4626
    %4643 = vst [vmem:[#allocation2 + $0x18] sm:$0xff] %v4627
    %4644 = vst [vmem:[#allocation2 + $0x20] sm:$0xff] %v4628
    %4645 = vst [vmem:[#allocation2 + $0x28] sm:$0xff] %v4629
    %4646 = vst [vmem:[#allocation2 + $0x30] sm:$0xff] %v4630
    %4647 = vst [vmem:[#allocation2 + $0x38] sm:$0xff] %v4631
    %4648 = vst [vmem:[#allocation2 + $0x40] sm:$0xff] %v4632
    %4649 = vst [vmem:[#allocation2 + $0x48] sm:$0xff] %v4633
    %4650 = vst [vmem:[#allocation2 + $0x50] sm:$0xff] %v4634
    %4651 = vst [vmem:[#allocation2 + $0x58] sm:$0xff] %v4635
    %4652 = vst [vmem:[#allocation2 + $0x60] sm:$0xff] %v4636
    %4653 = vst [vmem:[#allocation2 + $0x68] sm:$0xff] %v4637
    %4654 = vst [vmem:[#allocation2 + $0x70] sm:$0xff] %v4638
    %4655 = vst [vmem:[#allocation2 + $0x78] sm:$0xff] %v4639
    // Predicated region
    $region18: #{tpu_custom_call.1} parent=1 // pred_check
      _
    $region19: #{tpu_custom_call.1} parent=1 // pred_check_branch
      %4657 = sbr.rel (0) target = $region21
    $region20: #{tpu_custom_call.1} parent=1 // pred_region
      %s4659 = ssub.s32 2048, 2048
      %4660 = vsyncadd [#allocation3], %s4659
      %s4661 = sshll.u32 [#allocation2], 4
      %s4662 = int_to_ptr.vmem [resolvable:$true] %s4661
      %4667 = dma.vmem_to_hbm [thread:$0]  %s4662, 2048, %s4, [#allocation3], 128, 128, 8
    $region21: #{tpu_custom_call.1} parent=1 // pred_fallthru
      _
    // Predicated region
    $region22: #{tpu_custom_call.1} parent=1 // pred_check
      _
    $region23: #{tpu_custom_call.1} parent=1 // pred_check_branch
      %4669 = sbr.rel (0) target = $region25
    $region24: #{tpu_custom_call.1} parent=1 // pred_region
      %4670 = dma.done [#allocation3], 2048
    $region25: #{tpu_custom_call.1} parent=1 // pred_fallthru
      _
    %4671 = vsyncpa [#allocation3], 1

</llo_original>
